<compile_context>
chip_gen: v7x
topology: tpu7x:2x2x1
jax: 0.10.0
libtpu: 0.0.40
codegen_flags: <defaults>
</compile_context>

<pallas_src>
import functools

import numpy as np
import jax
import jax.numpy as jnp
from jax.experimental import pallas as pl
from jax.experimental.pallas import tpu as pltpu

_SQRT2 = np.float32(np.sqrt(2.0))
_INV_SQRT2 = np.float32(1.0 / np.sqrt(2.0))

# Scoped VMEM ceiling: 64 MiB is <= physical on every target chip (v7x has
# 64 MiB per TensorCore, v5e/v6e have 128 MiB) and above the 32 MiB default,
# so larger row tiles are not clipped by the scoped limit before the physical
# one.
_VMEM_LIMIT = 64 * 1024 * 1024

# Above this vertex count the (tm, V) one-hot gather is replaced by a dynamic
# gather on the resident VMEM w table.
_ONEHOT_MAX_V = 1024


# ----------------------------------------------------------------------------
# Small in-kernel helpers
# ----------------------------------------------------------------------------
def _lrelu(y):
    # StyleGAN2 bias_act 'lrelu': leaky_relu(., 0.2) * sqrt(2)  (f32 epilogue)
    return jnp.maximum(y, 0.2 * y) * _SQRT2


def _bf16_dot(x, w):
    # MXU matmul: bf16 x bf16 operands, f32 accumulation.
    return jnp.dot(x.astype(jnp.bfloat16), w.astype(jnp.bfloat16),
                   preferred_element_type=jnp.float32)


def _pick_tile(M, max_t=1024):
    """Largest row tile <= max_t dividing M with >=2 grid steps.

    Keeping >=2 steps preserves DMA/compute pipelining and lets the v7x
    megacore shard the "parallel" grid axis; the 128/64 fallbacks avoid
    collapsing to a single huge tm=M step for awkward M."""
    for cand in (2048, 1024, 512, 256, 128, 64):
        if cand <= max_t and M % cand == 0 and M // cand >= 2:
            return cand
    return M


# ----------------------------------------------------------------------------
# Kernel 1: fully fused map_network, row-tiled over vertices.
#   E (V, E_dim) -> w table (V, out_dim) in bf16; all layer weights are
#   constant-index blocks, activations/residual live in vregs for the whole
#   network.
# ----------------------------------------------------------------------------
def _make_mapper_kernel(n_combined):
    n_fc = 1 + n_combined                              # fromE0 + combined layers
    res_positions = [i for i in range(n_combined) if (i + 1) % 2 == 0]
    res_slot = {idx: k for k, idx in enumerate(res_positions)}

    def kernel(*refs):
        E_ref = refs[0]
        fc_refs = refs[1:1 + 2 * n_fc]
        res_refs = refs[1 + 2 * n_fc:1 + 2 * n_fc + 2 * len(res_positions)]
        out_ref = refs[-1]

        # fromE0 (lrelu)
        x = _lrelu(_bf16_dot(E_ref[...], fc_refs[0][...]) + fc_refs[1][...])
        residual = x
        for idx in range(n_combined):
            w_ref = fc_refs[2 + 2 * idx]
            b_ref = fc_refs[3 + 2 * idx]
            x = _lrelu(_bf16_dot(x, w_ref[...]) + b_ref[...])
            if idx in res_slot:
                k = res_slot[idx]
                rw_ref = res_refs[2 * k]
                rb_ref = res_refs[2 * k + 1]
                # Residual FC has activation='linear' (no lrelu) and the
                # residual source is reset to the post-add x, as in PyTorch.
                residual = _bf16_dot(residual, rw_ref[...]) + rb_ref[...]
                x = (x + residual) * _INV_SQRT2
                residual = x
        out_ref[...] = x.astype(out_ref.dtype)

    return kernel


def map_network_pallas(kp, *, V, out_dim, n_layer_combined):
    E = kp['E']
    E_dim = E.shape[1]
    tv = _pick_tile(V, max_t=1024)

    args = [E]
    for (w, b) in kp['fc']:
        args += [w, b]
    for (w, b) in kp['res']:
        args += [w, b]

    # E / out move with the grid; weights & biases keep a constant block index.
    # TODO(synk): pin constant-index weight blocks to a single buffer
    # (pipeline_mode=pl.Buffered(1)) once that mode is supported on top-level
    # pallas_call across target jax versions; default double-buffering wastes
    # VMEM on v7x at production table sizes.
    in_specs = [pl.BlockSpec((tv, E_dim), lambda i: (i, 0))]
    in_specs += [pl.BlockSpec(a.shape, lambda i: (0, 0)) for a in args[1:]]

    return pl.pallas_call(
        _make_mapper_kernel(n_layer_combined),
        grid=(V // tv,),
        in_specs=in_specs,
        out_specs=pl.BlockSpec((tv, out_dim), lambda i: (i, 0)),
        out_shape=jax.ShapeDtypeStruct((V, out_dim), jnp.bfloat16),
        compiler_params=pltpu.CompilerParams(
            dimension_semantics=("parallel",),
            vmem_limit_bytes=_VMEM_LIMIT),
    )(*args)


# ----------------------------------------------------------------------------
# Kernel 2: fused gather + E_mask multiply + global_mask 1x1 conv
#           (+ first decoder CSELinear head when its resolution matches).
# ----------------------------------------------------------------------------
def _make_head_kernel(V, fuse_dec0):
    use_onehot = V <= _ONEHOT_MAX_V

    def kernel(idx_ref, mask_ref, wtab_ref, gmw_ref, gmb_ref, gmd_ref, *rest):
        if fuse_dec0:
            (d0wg_ref, d0bg_ref, d0wb_ref, d0bb_ref,
             emb_out_ref, g_out_ref, b_out_ref) = rest
        else:
            (emb_out_ref,) = rest

        idx = idx_ref[...]                                   # (tm, 1) int32
        tm = idx.shape[0]
        if use_onehot:
            # Small-V path: row gather as a one-hot bf16 MXU matmul.
            lane = jax.lax.broadcasted_iota(jnp.int32, (tm, V), 1)
            onehot = jnp.where(idx == lane, 1.0, 0.0).astype(jnp.bfloat16)
            emb = jnp.dot(onehot, wtab_ref[...],
                          preferred_element_type=jnp.float32)  # (tm, D)
        else:
            # Large-V path: dynamic gather on the resident (V, D) VMEM table.
            # TODO(synk): for very large V (table no longer VMEM resident) this
            # should become a scalar-prefetched manual DMA row gather.
            emb = jnp.take(wtab_ref[...], idx[:, 0], axis=0).astype(jnp.float32)

        mask = mask_ref[...]                                 # (tm, 1) f32
        y = _bf16_dot(emb * mask, gmw_ref[...])              # global_mask main cols
        # mask / (1-mask) columns folded to base + mask * diff.
        y = y + gmb_ref[...] + mask * gmd_ref[...]
        emb_out_ref[...] = y.astype(emb_out_ref.dtype)       # bf16 inter-kernel

        if fuse_dec0:
            g_out_ref[...] = (_bf16_dot(y, d0wg_ref[...])
                              + d0bg_ref[...]).astype(g_out_ref.dtype)
            b_out_ref[...] = (_bf16_dot(y, d0wb_ref[...])
                              + d0bb_ref[...]).astype(b_out_ref.dtype)

    return kernel


def head_pallas(idx_flat, mask_flat, wtab, gm_main, gm_base, gm_diff, dec0, *,
                V, out_dim):
    M = idx_flat.shape[0]
    # Moderate tiles: the bf16 w table + gm/dec0 weights are VMEM resident;
    # budget re-derived for v7x's 64 MiB (bigger tiles buy little when
    # mem-bound).
    tm = _pick_tile(M, max_t=512)
    fuse = dec0 is not None

    args = [idx_flat, mask_flat, wtab, gm_main, gm_base, gm_diff]
    in_specs = [
        pl.BlockSpec((tm, 1), lambda i: (i, 0)),
        pl.BlockSpec((tm, 1), lambda i: (i, 0)),
        pl.BlockSpec(wtab.shape, lambda i: (0, 0)),
        pl.BlockSpec(gm_main.shape, lambda i: (0, 0)),
        pl.BlockSpec(gm_base.shape, lambda i: (0, 0)),
        pl.BlockSpec(gm_diff.shape, lambda i: (0, 0)),
    ]
    out_shape = [jax.ShapeDtypeStruct((M, out_dim), jnp.bfloat16)]
    out_specs = [pl.BlockSpec((tm, out_dim), lambda i: (i, 0))]
    if fuse:
        d0wg, d0bg, d0wb, d0bb = dec0
        args += [d0wg, d0bg, d0wb, d0bb]
        in_specs += [pl.BlockSpec(a.shape, lambda i: (0, 0))
                     for a in (d0wg, d0bg, d0wb, d0bb)]
        C0 = d0wg.shape[1]
        out_shape += [jax.ShapeDtypeStruct((M, C0), jnp.float32),
                      jax.ShapeDtypeStruct((M, C0), jnp.float32)]
        out_specs += [pl.BlockSpec((tm, C0), lambda i: (i, 0)),
                      pl.BlockSpec((tm, C0), lambda i: (i, 0))]

    outs = pl.pallas_call(
        _make_head_kernel(V, fuse),
        grid=(M // tm,),
        in_specs=in_specs,
        out_specs=tuple(out_specs) if fuse else out_specs[0],
        out_shape=tuple(out_shape) if fuse else out_shape[0],
        compiler_params=pltpu.CompilerParams(
            dimension_semantics=("parallel",),
            vmem_limit_bytes=_VMEM_LIMIT),
    )(*args)
    return outs if fuse else (outs,)


# ----------------------------------------------------------------------------
# Kernel 3: decoder CSELinear head — gamma and beta as two separate outputs,
#           gains and the "+1" on gamma pre-folded.
# ----------------------------------------------------------------------------
def _dec_linear_kernel(x_ref, wg_ref, bg_ref, wb_ref, bb_ref, g_ref, b_ref):
    x = x_ref[...]
    g_ref[...] = (_bf16_dot(x, wg_ref[...]) + bg_ref[...]).astype(g_ref.dtype)
    b_ref[...] = (_bf16_dot(x, wb_ref[...]) + bb_ref[...]).astype(b_ref.dtype)


def dec_linear_pallas(x, wg, bg, wb, bb):
    M, K = x.shape
    C = wg.shape[1]
    tm = _pick_tile(M, max_t=1024)
    const = lambda shp: pl.BlockSpec(shp, lambda i: (0, 0))
    return pl.pallas_call(
        _dec_linear_kernel,
        grid=(M // tm,),
        in_specs=[pl.BlockSpec((tm, K), lambda i: (i, 0)),
                  const(wg.shape), const(bg.shape),
                  const(wb.shape), const(bb.shape)],
        out_specs=(pl.BlockSpec((tm, C), lambda i: (i, 0)),
                   pl.BlockSpec((tm, C), lambda i: (i, 0))),
        out_shape=(jax.ShapeDtypeStruct((M, C), jnp.float32),
                   jax.ShapeDtypeStruct((M, C), jnp.float32)),
        compiler_params=pltpu.CompilerParams(
            dimension_semantics=("parallel",),
            vmem_limit_bytes=_VMEM_LIMIT),
    )(x, wg, bg, wb, bb)


# ----------------------------------------------------------------------------
# Glue: bilinear resize, align_corners=True, NHWC, static (numpy) weights.
# ----------------------------------------------------------------------------
def _axis_weights(in_s, out_s):
    if out_s == 1:
        pos = np.zeros((1,), np.float32)
    else:
        pos = np.arange(out_s, dtype=np.float32) * ((in_s - 1) / (out_s - 1))
    i0 = np.clip(np.floor(pos).astype(np.int32), 0, in_s - 1)
    i1 = np.clip(i0 + 1, 0, in_s - 1)
    frac = (pos - i0).astype(np.float32)
    return i0, i1, frac


def bilinear_align_corners_nhwc(x, out_h, out_w):
    # TODO(synk): fuse this fixed-stencil 2x resize (+ the following decoder
    # FC) into one pallas_call so the embedding never round-trips HBM between
    # scales; kept as XLA glue here.
    B, H, W, C = x.shape
    dtype = x.dtype
    xf = x.astype(jnp.float32)
    h0, h1, hf = _axis_weights(H, out_h)
    w0, w1, wf = _axis_weights(W, out_w)
    top = (xf[:, h0, :, :] * (1.0 - hf)[None, :, None, None]
           + xf[:, h1, :, :] * hf[None, :, None, None])
    out = (top[:, :, w0, :] * (1.0 - wf)[None, None, :, None]
           + top[:, :, w1, :] * wf[None, None, :, None])
    return out.astype(dtype)


# ----------------------------------------------------------------------------
# Parameters: synthetic init (PyTorch conventions) + kernel-ready preparation.
# ----------------------------------------------------------------------------
def init_params(key, *, V, E_dim, hidden, out_dim, n_layer_combined, feat_dec_rev):
    keys = iter(jax.random.split(key, 128))
    nrm = lambda shp: jax.random.normal(next(keys), shp, jnp.float32)
    p = {}
    p['E'] = nrm((V, E_dim))          # synthetic stand-in for the normalized E buffer
    p['fromE0_w'] = nrm((hidden, E_dim))
    p['fromE0_b'] = 0.01 * nrm((hidden,))
    features = [hidden] + [hidden] * (n_layer_combined - 1) + [out_dim]
    p['fc'] = []
    p['res'] = {}
    for idx in range(n_layer_combined):
        fin, fout = features[idx], features[idx + 1]
        p['fc'].append((nrm((fout, fin)), 0.01 * nrm((fout,)), fin))
        if (idx + 1) % 2 == 0:
            rin = features[idx - 1]
            p['res'][idx] = (nrm((fout, rin)), 0.01 * nrm((fout,)), rin)
    gm = nrm((out_dim, out_dim + 2))
    gm = gm.at[:, -2:].set(0.0)       # mirrors global_mask.weight[:, -2:].fill_(0)
    p['gm_w'] = gm
    p['dec'] = []
    for (C, _, _) in feat_dec_rev:
        p['dec'].append((nrm((2 * C, out_dim)), 0.01 * nrm((2 * C,))))
    return p


def prepare_params(p, *, E_dim, out_dim, feat_dec_rev):
    """Fold runtime gains into weights, transpose to (in, out) matmul layout,
    cast matmul operands to bf16; biases stay f32, "+1" folded into gamma bias,
    global_mask mask columns pre-folded into base/diff rows."""
    def fold(w, fan_in):
        return (jnp.transpose(w).astype(jnp.float32)
                * np.float32(1.0 / np.sqrt(fan_in))).astype(jnp.bfloat16)

    kp = {}
    kp['E'] = p['E'].astype(jnp.bfloat16)
    fc = [(fold(p['fromE0_w'], E_dim),
           p['fromE0_b'].reshape(1, -1).astype(jnp.float32))]
    for (w, b, fin) in p['fc']:
        fc.append((fold(w, fin), b.reshape(1, -1).astype(jnp.float32)))
    kp['fc'] = fc
    res = []
    for idx in sorted(p['res'].keys()):
        rw, rb, rin = p['res'][idx]
        res.append((fold(rw, rin), rb.reshape(1, -1).astype(jnp.float32)))
    kp['res'] = res

    gm = p['gm_w'].astype(jnp.float32) * np.float32(1.0 / np.sqrt(out_dim + 2))
    kp['gm_main'] = jnp.transpose(gm[:, :out_dim]).astype(jnp.bfloat16)   # (D, D)
    mask_col = gm[:, out_dim].reshape(1, -1)      # weight on the E_mask channel
    inv_col = gm[:, out_dim + 1].reshape(1, -1)   # weight on the (1 - E_mask) channel
    kp['gm_base'] = inv_col.astype(jnp.float32)                            # (1, D)
    kp['gm_diff'] = (mask_col - inv_col).astype(jnp.float32)               # (1, D)

    dec = []
    for (C, _, _), (dw, db) in zip(feat_dec_rev, p['dec']):
        w_t = fold(dw, out_dim)                                            # (D, 2C)
        wg = w_t[:, :C]
        wb = w_t[:, C:]
        bg = (db[:C].astype(jnp.float32) + 1.0).reshape(1, -1)             # +1 on gamma
        bb = db[C:].astype(jnp.float32).reshape(1, -1)
        dec.append((wg, bg, wb, bb))
    kp['dec'] = dec
    return kp


# ----------------------------------------------------------------------------
# Forward pass (input_z=False, w=None, E=None, no EMA update — eval path).
# ----------------------------------------------------------------------------
def _to_nchw(y_flat, B, H, W, C):
    return jnp.transpose(y_flat.reshape(B, H, W, C), (0, 3, 1, 2))


def unconditional_cse_style_mapper_forward(kp, z, vertices, E_mask, *,
                                           V, out_dim, n_layer_combined,
                                           feat_dec_rev):
    del z  # input_z=False: map_network ignores z
    # --- CSELatentMapper.map_network, one fused row-tiled kernel (bf16 w) ---
    wtab = map_network_pallas(kp, V=V, out_dim=out_dim,
                              n_layer_combined=n_layer_combined)   # (V, D) bf16

    # --- flatten NCHW inputs to channels-last rows ---
    idx = vertices.reshape(-1, vertices.shape[-2], vertices.shape[-1]).astype(jnp.int32)
    Bm, H, W = idx.shape
    # TODO(synk): if the gathered embedding resolution differed from E_mask the
    # module would bilinearly resize the embedding first; not needed here.
    assert E_mask.shape == (Bm, 1, H, W), (E_mask.shape, (Bm, 1, H, W))
    idx_flat = idx.reshape(Bm * H * W, 1)
    mask_flat = jnp.transpose(E_mask, (0, 2, 3, 1)).reshape(Bm * H * W, 1)
    mask_flat = mask_flat.astype(jnp.float32)

    # fuse the first decoder head when it runs at the full (E_mask) resolution
    C0, H0, W0 = feat_dec_rev[0]
    fuse0 = (H0 == H and W0 == W)
    outs = head_pallas(idx_flat, mask_flat, wtab,
                       kp['gm_main'], kp['gm_base'], kp['gm_diff'],
                       kp['dec'][0] if fuse0 else None,
                       V=V, out_dim=out_dim)
    embedding = outs[0].reshape(Bm, H, W, out_dim)                 # NHWC bf16

    modulation_params = []
    start = 0
    if fuse0:
        modulation_params.append({
            'gamma': _to_nchw(outs[1], Bm, H0, W0, C0),
            'beta': _to_nchw(outs[2], Bm, H0, W0, C0),
        })
        start = 1

    for k in range(start, len(feat_dec_rev)):
        C, Hs, Ws = feat_dec_rev[k]
        assert embedding.shape[1] >= Hs and embedding.shape[2] >= Ws
        while embedding.shape[1] != Hs or embedding.shape[2] != Ws:
            nh = embedding.shape[1] // 2
            nw = embedding.shape[2] // 2
            assert nh >= Hs and nw >= Ws, "target not reachable by exact 2x halving"
            embedding = bilinear_align_corners_nhwc(embedding, nh, nw)
        wg, bg, wb, bb = kp['dec'][k]
        Mk = embedding.shape[0] * Hs * Ws
        gamma, beta = dec_linear_pallas(embedding.reshape(Mk, out_dim),
                                        wg, bg, wb, bb)
        modulation_params.append({
            'gamma': _to_nchw(gamma, Bm, Hs, Ws, C),
            'beta': _to_nchw(beta, Bm, Hs, Ws, C),
        })

    modulation_params.reverse()   # back to the original feature_sizes_dec order
    return modulation_params


# ----------------------------------------------------------------------------
if __name__ == "__main__":
    # Small synthetic configuration
    V = 64            # n_vertices
    E_DIM = 16        # cse_nc
    HIDDEN = 32
    OUT_DIM = 32
    N_LAYER_COMBINED = 6
    B, H, W = 2, 16, 16
    Z_CH = 8
    FEATURE_SIZES_DEC = [(4, 4, 4), (8, 8, 8), (16, 16, 16)]
    feat_dec_rev = tuple(reversed(FEATURE_SIZES_DEC))   # module reverses the list

    key = jax.random.PRNGKey(0)
    kparam, kz, kv, km = jax.random.split(key, 4)

    raw = init_params(kparam, V=V, E_dim=E_DIM, hidden=HIDDEN, out_dim=OUT_DIM,
                      n_layer_combined=N_LAYER_COMBINED, feat_dec_rev=feat_dec_rev)
    params = prepare_params(raw, E_dim=E_DIM, out_dim=OUT_DIM,
                            feat_dec_rev=feat_dec_rev)

    z = jax.random.normal(kz, (B, Z_CH), jnp.float32)            # unused (input_z=False)
    vertices = jax.random.randint(kv, (B, H, W), 0, V, jnp.int32)
    E_mask = (jax.random.uniform(km, (B, 1, H, W)) > 0.3).astype(jnp.float32)

    fwd = jax.jit(functools.partial(
        unconditional_cse_style_mapper_forward,
        V=V, out_dim=OUT_DIM, n_layer_combined=N_LAYER_COMBINED,
        feat_dec_rev=feat_dec_rev))

    mods = fwd(params, z, vertices, E_mask)
    for m in mods:
        jax.block_until_ready(m['gamma'])
        jax.block_until_ready(m['beta'])

    # sanity: shapes follow the original (un-reversed) feature_sizes_dec order
    for (C, Hs, Ws), m in zip(FEATURE_SIZES_DEC, mods):
        assert m['gamma'].shape == (B, C, Hs, Ws), (m['gamma'].shape, (B, C, Hs, Ws))
        assert m['beta'].shape == (B, C, Hs, Ws)
        assert bool(jnp.isfinite(m['gamma']).all())
        assert bool(jnp.isfinite(m['beta']).all())

    print("KERNEL_OK")
</pallas_src>

<mosaic_0001>
module attributes {stable_mosaic.version = 11 : i64} {
  func.func @kernel(%arg0: i32, %arg1: memref<64x16xbf16, #tpu.memory_space<vmem>>, %arg2: memref<16x32xbf16, #tpu.memory_space<vmem>>, %arg3: memref<1x32xf32, #tpu.memory_space<vmem>>, %arg4: memref<32x32xbf16, #tpu.memory_space<vmem>>, %arg5: memref<1x32xf32, #tpu.memory_space<vmem>>, %arg6: memref<32x32xbf16, #tpu.memory_space<vmem>>, %arg7: memref<1x32xf32, #tpu.memory_space<vmem>>, %arg8: memref<32x32xbf16, #tpu.memory_space<vmem>>, %arg9: memref<1x32xf32, #tpu.memory_space<vmem>>, %arg10: memref<32x32xbf16, #tpu.memory_space<vmem>>, %arg11: memref<1x32xf32, #tpu.memory_space<vmem>>, %arg12: memref<32x32xbf16, #tpu.memory_space<vmem>>, %arg13: memref<1x32xf32, #tpu.memory_space<vmem>>, %arg14: memref<32x32xbf16, #tpu.memory_space<vmem>>, %arg15: memref<1x32xf32, #tpu.memory_space<vmem>>, %arg16: memref<32x32xbf16, #tpu.memory_space<vmem>>, %arg17: memref<1x32xf32, #tpu.memory_space<vmem>>, %arg18: memref<32x32xbf16, #tpu.memory_space<vmem>>, %arg19: memref<1x32xf32, #tpu.memory_space<vmem>>, %arg20: memref<32x32xbf16, #tpu.memory_space<vmem>>, %arg21: memref<1x32xf32, #tpu.memory_space<vmem>>, %arg22: memref<64x32xbf16, #tpu.memory_space<vmem>>) attributes {dimension_semantics = [#tpu.dimension_semantics<parallel>], iteration_bounds = array<i64: 1>, scalar_prefetch = 0 : i64, scratch_operands = 0 : i64, tpu.core_type = #tpu.core_type<tc>, window_params = [{transform_indices = @transform_0, window_bounds = array<i64: 64, 16>}, {pipeline_mode = #tpu.pipeline_mode<synchronous>, transform_indices = @transform_1, window_bounds = array<i64: 16, 32>}, {pipeline_mode = #tpu.pipeline_mode<synchronous>, transform_indices = @transform_2, window_bounds = array<i64: 1, 32>}, {pipeline_mode = #tpu.pipeline_mode<synchronous>, transform_indices = @transform_3, window_bounds = array<i64: 32, 32>}, {pipeline_mode = #tpu.pipeline_mode<synchronous>, transform_indices = @transform_4, window_bounds = array<i64: 1, 32>}, {pipeline_mode = #tpu.pipeline_mode<synchronous>, transform_indices = @transform_5, window_bounds = array<i64: 32, 32>}, {pipeline_mode = #tpu.pipeline_mode<synchronous>, transform_indices = @transform_6, window_bounds = array<i64: 1, 32>}, {pipeline_mode = #tpu.pipeline_mode<synchronous>, transform_indices = @transform_7, window_bounds = array<i64: 32, 32>}, {pipeline_mode = #tpu.pipeline_mode<synchronous>, transform_indices = @transform_8, window_bounds = array<i64: 1, 32>}, {pipeline_mode = #tpu.pipeline_mode<synchronous>, transform_indices = @transform_9, window_bounds = array<i64: 32, 32>}, {pipeline_mode = #tpu.pipeline_mode<synchronous>, transform_indices = @transform_10, window_bounds = array<i64: 1, 32>}, {pipeline_mode = #tpu.pipeline_mode<synchronous>, transform_indices = @transform_11, window_bounds = array<i64: 32, 32>}, {pipeline_mode = #tpu.pipeline_mode<synchronous>, transform_indices = @transform_12, window_bounds = array<i64: 1, 32>}, {pipeline_mode = #tpu.pipeline_mode<synchronous>, transform_indices = @transform_13, window_bounds = array<i64: 32, 32>}, {pipeline_mode = #tpu.pipeline_mode<synchronous>, transform_indices = @transform_14, window_bounds = array<i64: 1, 32>}, {pipeline_mode = #tpu.pipeline_mode<synchronous>, transform_indices = @transform_15, window_bounds = array<i64: 32, 32>}, {pipeline_mode = #tpu.pipeline_mode<synchronous>, transform_indices = @transform_16, window_bounds = array<i64: 1, 32>}, {pipeline_mode = #tpu.pipeline_mode<synchronous>, transform_indices = @transform_17, window_bounds = array<i64: 32, 32>}, {pipeline_mode = #tpu.pipeline_mode<synchronous>, transform_indices = @transform_18, window_bounds = array<i64: 1, 32>}, {pipeline_mode = #tpu.pipeline_mode<synchronous>, transform_indices = @transform_19, window_bounds = array<i64: 32, 32>}, {pipeline_mode = #tpu.pipeline_mode<synchronous>, transform_indices = @transform_20, window_bounds = array<i64: 1, 32>}, {transform_indices = @transform_21, window_bounds = array<i64: 64, 32>}]} {
    %c0 = arith.constant 0 : index
    %c0_0 = arith.constant 0 : index
    %0 = vector.load %arg1[%c0, %c0_0] : memref<64x16xbf16, #tpu.memory_space<vmem>>, vector<64x16xbf16>
    %c0_1 = arith.constant 0 : index
    %c0_2 = arith.constant 0 : index
    %1 = vector.load %arg2[%c0_1, %c0_2] : memref<16x32xbf16, #tpu.memory_space<vmem>>, vector<16x32xbf16>
    %cst = arith.constant dense<0.000000e+00> : vector<64x32xf32>
    %2 = tpu.matmul %0, %1, %cst {dimension_numbers = #tpu.dot_dimension_numbers<[1], [0], [0], [1], [0, 0, 1, 1], [], []>} : vector<64x16xbf16>, vector<16x32xbf16>, vector<64x32xf32> -> vector<64x32xf32>
    %c0_3 = arith.constant 0 : index
    %c0_4 = arith.constant 0 : index
    %3 = vector.load %arg3[%c0_3, %c0_4] : memref<1x32xf32, #tpu.memory_space<vmem>>, vector<1x32xf32>
    %4 = vector.broadcast %3 : vector<1x32xf32> to vector<64x32xf32>
    %5 = arith.addf %2, %4 : vector<64x32xf32>
    %cst_5 = arith.constant 2.000000e-01 : f32
    %6 = vector.broadcast %cst_5 : f32 to vector<64x32xf32>
    %7 = arith.mulf %6, %5 : vector<64x32xf32>
    %8 = arith.maximumf %5, %7 : vector<64x32xf32>
    %cst_6 = arith.constant 1.41421354 : f32
    %9 = vector.broadcast %cst_6 : f32 to vector<64x32xf32>
    %10 = arith.mulf %8, %9 : vector<64x32xf32>
    %c0_7 = arith.constant 0 : index
    %c0_8 = arith.constant 0 : index
    %11 = vector.load %arg4[%c0_7, %c0_8] : memref<32x32xbf16, #tpu.memory_space<vmem>>, vector<32x32xbf16>
    %12 = arith.truncf %10 : vector<64x32xf32> to vector<64x32xbf16>
    %cst_9 = arith.constant dense<0.000000e+00> : vector<64x32xf32>
    %13 = tpu.matmul %12, %11, %cst_9 {dimension_numbers = #tpu.dot_dimension_numbers<[1], [0], [0], [1], [0, 0, 1, 1], [], []>} : vector<64x32xbf16>, vector<32x32xbf16>, vector<64x32xf32> -> vector<64x32xf32>
    %c0_10 = arith.constant 0 : index
    %c0_11 = arith.constant 0 : index
    %14 = vector.load %arg5[%c0_10, %c0_11] : memref<1x32xf32, #tpu.memory_space<vmem>>, vector<1x32xf32>
    %15 = vector.broadcast %14 : vector<1x32xf32> to vector<64x32xf32>
    %16 = arith.addf %13, %15 : vector<64x32xf32>
    %cst_12 = arith.constant 2.000000e-01 : f32
    %17 = vector.broadcast %cst_12 : f32 to vector<64x32xf32>
    %18 = arith.mulf %17, %16 : vector<64x32xf32>
    %19 = arith.maximumf %16, %18 : vector<64x32xf32>
    %cst_13 = arith.constant 1.41421354 : f32
    %20 = vector.broadcast %cst_13 : f32 to vector<64x32xf32>
    %21 = arith.mulf %19, %20 : vector<64x32xf32>
    %c0_14 = arith.constant 0 : index
    %c0_15 = arith.constant 0 : index
    %22 = vector.load %arg6[%c0_14, %c0_15] : memref<32x32xbf16, #tpu.memory_space<vmem>>, vector<32x32xbf16>
    %23 = arith.truncf %21 : vector<64x32xf32> to vector<64x32xbf16>
    %cst_16 = arith.constant dense<0.000000e+00> : vector<64x32xf32>
    %24 = tpu.matmul %23, %22, %cst_16 {dimension_numbers = #tpu.dot_dimension_numbers<[1], [0], [0], [1], [0, 0, 1, 1], [], []>} : vector<64x32xbf16>, vector<32x32xbf16>, vector<64x32xf32> -> vector<64x32xf32>
    %c0_17 = arith.constant 0 : index
    %c0_18 = arith.constant 0 : index
    %25 = vector.load %arg7[%c0_17, %c0_18] : memref<1x32xf32, #tpu.memory_space<vmem>>, vector<1x32xf32>
    %26 = vector.broadcast %25 : vector<1x32xf32> to vector<64x32xf32>
    %27 = arith.addf %24, %26 : vector<64x32xf32>
    %cst_19 = arith.constant 2.000000e-01 : f32
    %28 = vector.broadcast %cst_19 : f32 to vector<64x32xf32>
    %29 = arith.mulf %28, %27 : vector<64x32xf32>
    %30 = arith.maximumf %27, %29 : vector<64x32xf32>
    %cst_20 = arith.constant 1.41421354 : f32
    %31 = vector.broadcast %cst_20 : f32 to vector<64x32xf32>
    %32 = arith.mulf %30, %31 : vector<64x32xf32>
    %c0_21 = arith.constant 0 : index
    %c0_22 = arith.constant 0 : index
    %33 = vector.load %arg16[%c0_21, %c0_22] : memref<32x32xbf16, #tpu.memory_space<vmem>>, vector<32x32xbf16>
    %34 = arith.truncf %10 : vector<64x32xf32> to vector<64x32xbf16>
    %cst_23 = arith.constant dense<0.000000e+00> : vector<64x32xf32>
    %35 = tpu.matmul %34, %33, %cst_23 {dimension_numbers = #tpu.dot_dimension_numbers<[1], [0], [0], [1], [0, 0, 1, 1], [], []>} : vector<64x32xbf16>, vector<32x32xbf16>, vector<64x32xf32> -> vector<64x32xf32>
    %c0_24 = arith.constant 0 : index
    %c0_25 = arith.constant 0 : index
    %36 = vector.load %arg17[%c0_24, %c0_25] : memref<1x32xf32, #tpu.memory_space<vmem>>, vector<1x32xf32>
    %37 = vector.broadcast %36 : vector<1x32xf32> to vector<64x32xf32>
    %38 = arith.addf %35, %37 : vector<64x32xf32>
    %39 = arith.addf %32, %38 : vector<64x32xf32>
    %cst_26 = arith.constant 0.707106769 : f32
    %40 = vector.broadcast %cst_26 : f32 to vector<64x32xf32>
    %41 = arith.mulf %39, %40 : vector<64x32xf32>
    %c0_27 = arith.constant 0 : index
    %c0_28 = arith.constant 0 : index
    %42 = vector.load %arg8[%c0_27, %c0_28] : memref<32x32xbf16, #tpu.memory_space<vmem>>, vector<32x32xbf16>
    %43 = arith.truncf %41 : vector<64x32xf32> to vector<64x32xbf16>
    %cst_29 = arith.constant dense<0.000000e+00> : vector<64x32xf32>
    %44 = tpu.matmul %43, %42, %cst_29 {dimension_numbers = #tpu.dot_dimension_numbers<[1], [0], [0], [1], [0, 0, 1, 1], [], []>} : vector<64x32xbf16>, vector<32x32xbf16>, vector<64x32xf32> -> vector<64x32xf32>
    %c0_30 = arith.constant 0 : index
    %c0_31 = arith.constant 0 : index
    %45 = vector.load %arg9[%c0_30, %c0_31] : memref<1x32xf32, #tpu.memory_space<vmem>>, vector<1x32xf32>
    %46 = vector.broadcast %45 : vector<1x32xf32> to vector<64x32xf32>
    %47 = arith.addf %44, %46 : vector<64x32xf32>
    %cst_32 = arith.constant 2.000000e-01 : f32
    %48 = vector.broadcast %cst_32 : f32 to vector<64x32xf32>
    %49 = arith.mulf %48, %47 : vector<64x32xf32>
    %50 = arith.maximumf %47, %49 : vector<64x32xf32>
    %cst_33 = arith.constant 1.41421354 : f32
    %51 = vector.broadcast %cst_33 : f32 to vector<64x32xf32>
    %52 = arith.mulf %50, %51 : vector<64x32xf32>
    %c0_34 = arith.constant 0 : index
    %c0_35 = arith.constant 0 : index
    %53 = vector.load %arg10[%c0_34, %c0_35] : memref<32x32xbf16, #tpu.memory_space<vmem>>, vector<32x32xbf16>
    %54 = arith.truncf %52 : vector<64x32xf32> to vector<64x32xbf16>
    %cst_36 = arith.constant dense<0.000000e+00> : vector<64x32xf32>
    %55 = tpu.matmul %54, %53, %cst_36 {dimension_numbers = #tpu.dot_dimension_numbers<[1], [0], [0], [1], [0, 0, 1, 1], [], []>} : vector<64x32xbf16>, vector<32x32xbf16>, vector<64x32xf32> -> vector<64x32xf32>
    %c0_37 = arith.constant 0 : index
    %c0_38 = arith.constant 0 : index
    %56 = vector.load %arg11[%c0_37, %c0_38] : memref<1x32xf32, #tpu.memory_space<vmem>>, vector<1x32xf32>
    %57 = vector.broadcast %56 : vector<1x32xf32> to vector<64x32xf32>
    %58 = arith.addf %55, %57 : vector<64x32xf32>
    %cst_39 = arith.constant 2.000000e-01 : f32
    %59 = vector.broadcast %cst_39 : f32 to vector<64x32xf32>
    %60 = arith.mulf %59, %58 : vector<64x32xf32>
    %61 = arith.maximumf %58, %60 : vector<64x32xf32>
    %cst_40 = arith.constant 1.41421354 : f32
    %62 = vector.broadcast %cst_40 : f32 to vector<64x32xf32>
    %63 = arith.mulf %61, %62 : vector<64x32xf32>
    %c0_41 = arith.constant 0 : index
    %c0_42 = arith.constant 0 : index
    %64 = vector.load %arg18[%c0_41, %c0_42] : memref<32x32xbf16, #tpu.memory_space<vmem>>, vector<32x32xbf16>
    %65 = arith.truncf %41 : vector<64x32xf32> to vector<64x32xbf16>
    %cst_43 = arith.constant dense<0.000000e+00> : vector<64x32xf32>
    %66 = tpu.matmul %65, %64, %cst_43 {dimension_numbers = #tpu.dot_dimension_numbers<[1], [0], [0], [1], [0, 0, 1, 1], [], []>} : vector<64x32xbf16>, vector<32x32xbf16>, vector<64x32xf32> -> vector<64x32xf32>
    %c0_44 = arith.constant 0 : index
    %c0_45 = arith.constant 0 : index
    %67 = vector.load %arg19[%c0_44, %c0_45] : memref<1x32xf32, #tpu.memory_space<vmem>>, vector<1x32xf32>
    %68 = vector.broadcast %67 : vector<1x32xf32> to vector<64x32xf32>
    %69 = arith.addf %66, %68 : vector<64x32xf32>
    %70 = arith.addf %63, %69 : vector<64x32xf32>
    %cst_46 = arith.constant 0.707106769 : f32
    %71 = vector.broadcast %cst_46 : f32 to vector<64x32xf32>
    %72 = arith.mulf %70, %71 : vector<64x32xf32>
    %c0_47 = arith.constant 0 : index
    %c0_48 = arith.constant 0 : index
    %73 = vector.load %arg12[%c0_47, %c0_48] : memref<32x32xbf16, #tpu.memory_space<vmem>>, vector<32x32xbf16>
    %74 = arith.truncf %72 : vector<64x32xf32> to vector<64x32xbf16>
    %cst_49 = arith.constant dense<0.000000e+00> : vector<64x32xf32>
    %75 = tpu.matmul %74, %73, %cst_49 {dimension_numbers = #tpu.dot_dimension_numbers<[1], [0], [0], [1], [0, 0, 1, 1], [], []>} : vector<64x32xbf16>, vector<32x32xbf16>, vector<64x32xf32> -> vector<64x32xf32>
    %c0_50 = arith.constant 0 : index
    %c0_51 = arith.constant 0 : index
    %76 = vector.load %arg13[%c0_50, %c0_51] : memref<1x32xf32, #tpu.memory_space<vmem>>, vector<1x32xf32>
    %77 = vector.broadcast %76 : vector<1x32xf32> to vector<64x32xf32>
    %78 = arith.addf %75, %77 : vector<64x32xf32>
    %cst_52 = arith.constant 2.000000e-01 : f32
    %79 = vector.broadcast %cst_52 : f32 to vector<64x32xf32>
    %80 = arith.mulf %79, %78 : vector<64x32xf32>
    %81 = arith.maximumf %78, %80 : vector<64x32xf32>
    %cst_53 = arith.constant 1.41421354 : f32
    %82 = vector.broadcast %cst_53 : f32 to vector<64x32xf32>
    %83 = arith.mulf %81, %82 : vector<64x32xf32>
    %c0_54 = arith.constant 0 : index
    %c0_55 = arith.constant 0 : index
    %84 = vector.load %arg14[%c0_54, %c0_55] : memref<32x32xbf16, #tpu.memory_space<vmem>>, vector<32x32xbf16>
    %85 = arith.truncf %83 : vector<64x32xf32> to vector<64x32xbf16>
    %cst_56 = arith.constant dense<0.000000e+00> : vector<64x32xf32>
    %86 = tpu.matmul %85, %84, %cst_56 {dimension_numbers = #tpu.dot_dimension_numbers<[1], [0], [0], [1], [0, 0, 1, 1], [], []>} : vector<64x32xbf16>, vector<32x32xbf16>, vector<64x32xf32> -> vector<64x32xf32>
    %c0_57 = arith.constant 0 : index
    %c0_58 = arith.constant 0 : index
    %87 = vector.load %arg15[%c0_57, %c0_58] : memref<1x32xf32, #tpu.memory_space<vmem>>, vector<1x32xf32>
    %88 = vector.broadcast %87 : vector<1x32xf32> to vector<64x32xf32>
    %89 = arith.addf %86, %88 : vector<64x32xf32>
    %cst_59 = arith.constant 2.000000e-01 : f32
    %90 = vector.broadcast %cst_59 : f32 to vector<64x32xf32>
    %91 = arith.mulf %90, %89 : vector<64x32xf32>
    %92 = arith.maximumf %89, %91 : vector<64x32xf32>
    %cst_60 = arith.constant 1.41421354 : f32
    %93 = vector.broadcast %cst_60 : f32 to vector<64x32xf32>
    %94 = arith.mulf %92, %93 : vector<64x32xf32>
    %c0_61 = arith.constant 0 : index
    %c0_62 = arith.constant 0 : index
    %95 = vector.load %arg20[%c0_61, %c0_62] : memref<32x32xbf16, #tpu.memory_space<vmem>>, vector<32x32xbf16>
    %96 = arith.truncf %72 : vector<64x32xf32> to vector<64x32xbf16>
    %cst_63 = arith.constant dense<0.000000e+00> : vector<64x32xf32>
    %97 = tpu.matmul %96, %95, %cst_63 {dimension_numbers = #tpu.dot_dimension_numbers<[1], [0], [0], [1], [0, 0, 1, 1], [], []>} : vector<64x32xbf16>, vector<32x32xbf16>, vector<64x32xf32> -> vector<64x32xf32>
    %c0_64 = arith.constant 0 : index
    %c0_65 = arith.constant 0 : index
    %98 = vector.load %arg21[%c0_64, %c0_65] : memref<1x32xf32, #tpu.memory_space<vmem>>, vector<1x32xf32>
    %99 = vector.broadcast %98 : vector<1x32xf32> to vector<64x32xf32>
    %100 = arith.addf %97, %99 : vector<64x32xf32>
    %101 = arith.addf %94, %100 : vector<64x32xf32>
    %cst_66 = arith.constant 0.707106769 : f32
    %102 = vector.broadcast %cst_66 : f32 to vector<64x32xf32>
    %103 = arith.mulf %101, %102 : vector<64x32xf32>
    %104 = arith.truncf %103 : vector<64x32xf32> to vector<64x32xbf16>
    %c0_67 = arith.constant 0 : index
    %c0_68 = arith.constant 0 : index
    %105 = vector.load %arg22[%c0_67, %c0_68] : memref<64x32xbf16, #tpu.memory_space<vmem>>, vector<64x32xbf16>
    tpu.vector_store %arg22[%c0_67, %c0_68], %104 {strides = array<i32>} : memref<64x32xbf16, #tpu.memory_space<vmem>>, vector<64x32xbf16>,
    return
  }
  func.func @transform_0(%arg0: i32) -> (i32, i32) {
    %c0_i32 = arith.constant 0 : i32
    %c0_i32_0 = arith.constant 0 : i32
    return %arg0, %c0_i32 : i32, i32
  }
  func.func @transform_1(%arg0: i32) -> (i32, i32) {
    %c0_i32 = arith.constant 0 : i32
    %c0_i32_0 = arith.constant 0 : i32
    %c0_i32_1 = arith.constant 0 : i32
    return %c0_i32, %c0_i32_0 : i32, i32
  }
  func.func @transform_2(%arg0: i32) -> (i32, i32) {
    %c0_i32 = arith.constant 0 : i32
    %c0_i32_0 = arith.constant 0 : i32
    %c0_i32_1 = arith.constant 0 : i32
    return %c0_i32, %c0_i32_0 : i32, i32
  }
  func.func @transform_3(%arg0: i32) -> (i32, i32) {
    %c0_i32 = arith.constant 0 : i32
    %c0_i32_0 = arith.constant 0 : i32
    %c0_i32_1 = arith.constant 0 : i32
    return %c0_i32, %c0_i32_0 : i32, i32
  }
  func.func @transform_4(%arg0: i32) -> (i32, i32) {
    %c0_i32 = arith.constant 0 : i32
    %c0_i32_0 = arith.constant 0 : i32
    %c0_i32_1 = arith.constant 0 : i32
    return %c0_i32, %c0_i32_0 : i32, i32
  }
  func.func @transform_5(%arg0: i32) -> (i32, i32) {
    %c0_i32 = arith.constant 0 : i32
    %c0_i32_0 = arith.constant 0 : i32
    %c0_i32_1 = arith.constant 0 : i32
    return %c0_i32, %c0_i32_0 : i32, i32
  }
  func.func @transform_6(%arg0: i32) -> (i32, i32) {
    %c0_i32 = arith.constant 0 : i32
    %c0_i32_0 = arith.constant 0 : i32
    %c0_i32_1 = arith.constant 0 : i32
    return %c0_i32, %c0_i32_0 : i32, i32
  }
  func.func @transform_7(%arg0: i32) -> (i32, i32) {
    %c0_i32 = arith.constant 0 : i32
    %c0_i32_0 = arith.constant 0 : i32
    %c0_i32_1 = arith.constant 0 : i32
    return %c0_i32, %c0_i32_0 : i32, i32
  }
  func.func @transform_8(%arg0: i32) -> (i32, i32) {
    %c0_i32 = arith.constant 0 : i32
    %c0_i32_0 = arith.constant 0 : i32
    %c0_i32_1 = arith.constant 0 : i32
    return %c0_i32, %c0_i32_0 : i32, i32
  }
  func.func @transform_9(%arg0: i32) -> (i32, i32) {
    %c0_i32 = arith.constant 0 : i32
    %c0_i32_0 = arith.constant 0 : i32
    %c0_i32_1 = arith.constant 0 : i32
    return %c0_i32, %c0_i32_0 : i32, i32
  }
  func.func @transform_10(%arg0: i32) -> (i32, i32) {
    %c0_i32 = arith.constant 0 : i32
    %c0_i32_0 = arith.constant 0 : i32
    %c0_i32_1 = arith.constant 0 : i32
    return %c0_i32, %c0_i32_0 : i32, i32
  }
  func.func @transform_11(%arg0: i32) -> (i32, i32) {
    %c0_i32 = arith.constant 0 : i32
    %c0_i32_0 = arith.constant 0 : i32
    %c0_i32_1 = arith.constant 0 : i32
    return %c0_i32, %c0_i32_0 : i32, i32
  }
  func.func @transform_12(%arg0: i32) -> (i32, i32) {
    %c0_i32 = arith.constant 0 : i32
    %c0_i32_0 = arith.constant 0 : i32
    %c0_i32_1 = arith.constant 0 : i32
    return %c0_i32, %c0_i32_0 : i32, i32
  }
  func.func @transform_13(%arg0: i32) -> (i32, i32) {
    %c0_i32 = arith.constant 0 : i32
    %c0_i32_0 = arith.constant 0 : i32
    %c0_i32_1 = arith.constant 0 : i32
    return %c0_i32, %c0_i32_0 : i32, i32
  }
  func.func @transform_14(%arg0: i32) -> (i32, i32) {
    %c0_i32 = arith.constant 0 : i32
    %c0_i32_0 = arith.constant 0 : i32
    %c0_i32_1 = arith.constant 0 : i32
    return %c0_i32, %c0_i32_0 : i32, i32
  }
  func.func @transform_15(%arg0: i32) -> (i32, i32) {
    %c0_i32 = arith.constant 0 : i32
    %c0_i32_0 = arith.constant 0 : i32
    %c0_i32_1 = arith.constant 0 : i32
    return %c0_i32, %c0_i32_0 : i32, i32
  }
  func.func @transform_16(%arg0: i32) -> (i32, i32) {
    %c0_i32 = arith.constant 0 : i32
    %c0_i32_0 = arith.constant 0 : i32
    %c0_i32_1 = arith.constant 0 : i32
    return %c0_i32, %c0_i32_0 : i32, i32
  }
  func.func @transform_17(%arg0: i32) -> (i32, i32) {
    %c0_i32 = arith.constant 0 : i32
    %c0_i32_0 = arith.constant 0 : i32
    %c0_i32_1 = arith.constant 0 : i32
    return %c0_i32, %c0_i32_0 : i32, i32
  }
  func.func @transform_18(%arg0: i32) -> (i32, i32) {
    %c0_i32 = arith.constant 0 : i32
    %c0_i32_0 = arith.constant 0 : i32
    %c0_i32_1 = arith.constant 0 : i32
    return %c0_i32, %c0_i32_0 : i32, i32
  }
  func.func @transform_19(%arg0: i32) -> (i32, i32) {
    %c0_i32 = arith.constant 0 : i32
    %c0_i32_0 = arith.constant 0 : i32
    %c0_i32_1 = arith.constant 0 : i32
    return %c0_i32, %c0_i32_0 : i32, i32
  }
  func.func @transform_20(%arg0: i32) -> (i32, i32) {
    %c0_i32 = arith.constant 0 : i32
    %c0_i32_0 = arith.constant 0 : i32
    %c0_i32_1 = arith.constant 0 : i32
    return %c0_i32, %c0_i32_0 : i32, i32
  }
  func.func @transform_21(%arg0: i32) -> (i32, i32) {
    %c0_i32 = arith.constant 0 : i32
    %c0_i32_0 = arith.constant 0 : i32
    return %arg0, %c0_i32 : i32, i32
  }
}

module attributes {stable_mosaic.version = 11 : i64} {
  func.func @kernel(%arg0: i32, %arg1: memref<256x1xi32, #tpu.memory_space<vmem>>, %arg2: memref<256x1xf32, #tpu.memory_space<vmem>>, %arg3: memref<64x32xbf16, #tpu.memory_space<vmem>>, %arg4: memref<32x32xbf16, #tpu.memory_space<vmem>>, %arg5: memref<1x32xf32, #tpu.memory_space<vmem>>, %arg6: memref<1x32xf32, #tpu.memory_space<vmem>>, %arg7: memref<32x16xbf16, #tpu.memory_space<vmem>>, %arg8: memref<1x16xf32, #tpu.memory_space<vmem>>, %arg9: memref<32x16xbf16, #tpu.memory_space<vmem>>, %arg10: memref<1x16xf32, #tpu.memory_space<vmem>>, %arg11: memref<256x32xbf16, #tpu.memory_space<vmem>>, %arg12: memref<256x16xf32, #tpu.memory_space<vmem>>, %arg13: memref<256x16xf32, #tpu.memory_space<vmem>>) attributes {dimension_semantics = [#tpu.dimension_semantics<parallel>], iteration_bounds = array<i64: 2>, scalar_prefetch = 0 : i64, scratch_operands = 0 : i64, tpu.core_type = #tpu.core_type<tc>, window_params = [{transform_indices = @transform_0, window_bounds = array<i64: 256, 1>}, {transform_indices = @transform_1, window_bounds = array<i64: 256, 1>}, {pipeline_mode = #tpu.pipeline_mode<synchronous>, transform_indices = @transform_2, window_bounds = array<i64: 64, 32>}, {pipeline_mode = #tpu.pipeline_mode<synchronous>, transform_indices = @transform_3, window_bounds = array<i64: 32, 32>}, {pipeline_mode = #tpu.pipeline_mode<synchronous>, transform_indices = @transform_4, window_bounds = array<i64: 1, 32>}, {pipeline_mode = #tpu.pipeline_mode<synchronous>, transform_indices = @transform_5, window_bounds = array<i64: 1, 32>}, {pipeline_mode = #tpu.pipeline_mode<synchronous>, transform_indices = @transform_6, window_bounds = array<i64: 32, 16>}, {pipeline_mode = #tpu.pipeline_mode<synchronous>, transform_indices = @transform_7, window_bounds = array<i64: 1, 16>}, {pipeline_mode = #tpu.pipeline_mode<synchronous>, transform_indices = @transform_8, window_bounds = array<i64: 32, 16>}, {pipeline_mode = #tpu.pipeline_mode<synchronous>, transform_indices = @transform_9, window_bounds = array<i64: 1, 16>}, {transform_indices = @transform_10, window_bounds = array<i64: 256, 32>}, {transform_indices = @transform_11, window_bounds = array<i64: 256, 16>}, {transform_indices = @transform_12, window_bounds = array<i64: 256, 16>}]} {
    %c0 = arith.constant 0 : index
    %c0_0 = arith.constant 0 : index
    %0 = vector.load %arg1[%c0, %c0_0] : memref<256x1xi32, #tpu.memory_space<vmem>>, vector<256x1xi32>
    %1 = tpu.iota {dimensions = array<i32: 1>} : vector<256x64xi32>
    %2 = vector.broadcast %0 : vector<256x1xi32> to vector<256x64xi32>
    %3 = arith.cmpi eq, %2, %1 : vector<256x64xi32>
    %cst = arith.constant 1.000000e+00 : f32
    %cst_1 = arith.constant 0.000000e+00 : f32
    %4 = vector.broadcast %cst : f32 to vector<256x64xf32>
    %5 = vector.broadcast %cst_1 : f32 to vector<256x64xf32>
    %6 = arith.select %3, %4, %5 : vector<256x64xi1>, vector<256x64xf32>
    %7 = arith.truncf %6 : vector<256x64xf32> to vector<256x64xbf16>
    %c0_2 = arith.constant 0 : index
    %c0_3 = arith.constant 0 : index
    %8 = vector.load %arg3[%c0_2, %c0_3] : memref<64x32xbf16, #tpu.memory_space<vmem>>, vector<64x32xbf16>
    %cst_4 = arith.constant dense<0.000000e+00> : vector<256x32xf32>
    %9 = tpu.matmul %7, %8, %cst_4 {dimension_numbers = #tpu.dot_dimension_numbers<[1], [0], [0], [1], [0, 0, 1, 1], [], []>} : vector<256x64xbf16>, vector<64x32xbf16>, vector<256x32xf32> -> vector<256x32xf32>
    %c0_5 = arith.constant 0 : index
    %c0_6 = arith.constant 0 : index
    %10 = vector.load %arg2[%c0_5, %c0_6] : memref<256x1xf32, #tpu.memory_space<vmem>>, vector<256x1xf32>
    %11 = vector.broadcast %10 : vector<256x1xf32> to vector<256x32xf32>
    %12 = arith.mulf %9, %11 : vector<256x32xf32>
    %c0_7 = arith.constant 0 : index
    %c0_8 = arith.constant 0 : index
    %13 = vector.load %arg4[%c0_7, %c0_8] : memref<32x32xbf16, #tpu.memory_space<vmem>>, vector<32x32xbf16>
    %14 = arith.truncf %12 : vector<256x32xf32> to vector<256x32xbf16>
    %cst_9 = arith.constant dense<0.000000e+00> : vector<256x32xf32>
    %15 = tpu.matmul %14, %13, %cst_9 {dimension_numbers = #tpu.dot_dimension_numbers<[1], [0], [0], [1], [0, 0, 1, 1], [], []>} : vector<256x32xbf16>, vector<32x32xbf16>, vector<256x32xf32> -> vector<256x32xf32>
    %c0_10 = arith.constant 0 : index
    %c0_11 = arith.constant 0 : index
    %16 = vector.load %arg5[%c0_10, %c0_11] : memref<1x32xf32, #tpu.memory_space<vmem>>, vector<1x32xf32>
    %17 = vector.broadcast %16 : vector<1x32xf32> to vector<256x32xf32>
    %18 = arith.addf %15, %17 : vector<256x32xf32>
    %c0_12 = arith.constant 0 : index
    %c0_13 = arith.constant 0 : index
    %19 = vector.load %arg6[%c0_12, %c0_13] : memref<1x32xf32, #tpu.memory_space<vmem>>, vector<1x32xf32>
    %20 = vector.broadcast %10 : vector<256x1xf32> to vector<256x32xf32>
    %21 = vector.broadcast %19 : vector<1x32xf32> to vector<256x32xf32>
    %22 = arith.mulf %20, %21 : vector<256x32xf32>
    %23 = arith.addf %18, %22 : vector<256x32xf32>
    %24 = arith.truncf %23 : vector<256x32xf32> to vector<256x32xbf16>
    %c0_14 = arith.constant 0 : index
    %c0_15 = arith.constant 0 : index
    %25 = vector.load %arg11[%c0_14, %c0_15] : memref<256x32xbf16, #tpu.memory_space<vmem>>, vector<256x32xbf16>
    tpu.vector_store %arg11[%c0_14, %c0_15], %24 {strides = array<i32>} : memref<256x32xbf16, #tpu.memory_space<vmem>>, vector<256x32xbf16>,
    %c0_16 = arith.constant 0 : index
    %c0_17 = arith.constant 0 : index
    %26 = vector.load %arg7[%c0_16, %c0_17] : memref<32x16xbf16, #tpu.memory_space<vmem>>, vector<32x16xbf16>
    %27 = arith.truncf %23 : vector<256x32xf32> to vector<256x32xbf16>
    %cst_18 = arith.constant dense<0.000000e+00> : vector<256x16xf32>
    %28 = tpu.matmul %27, %26, %cst_18 {dimension_numbers = #tpu.dot_dimension_numbers<[1], [0], [0], [1], [0, 0, 1, 1], [], []>} : vector<256x32xbf16>, vector<32x16xbf16>, vector<256x16xf32> -> vector<256x16xf32>
    %c0_19 = arith.constant 0 : index
    %c0_20 = arith.constant 0 : index
    %29 = vector.load %arg8[%c0_19, %c0_20] : memref<1x16xf32, #tpu.memory_space<vmem>>, vector<1x16xf32>
    %30 = vector.broadcast %29 : vector<1x16xf32> to vector<256x16xf32>
    %31 = arith.addf %28, %30 : vector<256x16xf32>
    %c0_21 = arith.constant 0 : index
    %c0_22 = arith.constant 0 : index
    %32 = vector.load %arg12[%c0_21, %c0_22] : memref<256x16xf32, #tpu.memory_space<vmem>>, vector<256x16xf32>
    tpu.vector_store %arg12[%c0_21, %c0_22], %31 {strides = array<i32>} : memref<256x16xf32, #tpu.memory_space<vmem>>, vector<256x16xf32>,
    %c0_23 = arith.constant 0 : index
    %c0_24 = arith.constant 0 : index
    %33 = vector.load %arg9[%c0_23, %c0_24] : memref<32x16xbf16, #tpu.memory_space<vmem>>, vector<32x16xbf16>
    %34 = arith.truncf %23 : vector<256x32xf32> to vector<256x32xbf16>
    %cst_25 = arith.constant dense<0.000000e+00> : vector<256x16xf32>
    %35 = tpu.matmul %34, %33, %cst_25 {dimension_numbers = #tpu.dot_dimension_numbers<[1], [0], [0], [1], [0, 0, 1, 1], [], []>} : vector<256x32xbf16>, vector<32x16xbf16>, vector<256x16xf32> -> vector<256x16xf32>
    %c0_26 = arith.constant 0 : index
    %c0_27 = arith.constant 0 : index
    %36 = vector.load %arg10[%c0_26, %c0_27] : memref<1x16xf32, #tpu.memory_space<vmem>>, vector<1x16xf32>
    %37 = vector.broadcast %36 : vector<1x16xf32> to vector<256x16xf32>
    %38 = arith.addf %35, %37 : vector<256x16xf32>
    %c0_28 = arith.constant 0 : index
    %c0_29 = arith.constant 0 : index
    %39 = vector.load %arg13[%c0_28, %c0_29] : memref<256x16xf32, #tpu.memory_space<vmem>>, vector<256x16xf32>
    tpu.vector_store %arg13[%c0_28, %c0_29], %38 {strides = array<i32>} : memref<256x16xf32, #tpu.memory_space<vmem>>, vector<256x16xf32>,
    return
  }
  func.func @transform_0(%arg0: i32) -> (i32, i32) {
    %c0_i32 = arith.constant 0 : i32
    %c0_i32_0 = arith.constant 0 : i32
    return %arg0, %c0_i32 : i32, i32
  }
  func.func @transform_1(%arg0: i32) -> (i32, i32) {
    %c0_i32 = arith.constant 0 : i32
    %c0_i32_0 = arith.constant 0 : i32
    return %arg0, %c0_i32 : i32, i32
  }
  func.func @transform_2(%arg0: i32) -> (i32, i32) {
    %c0_i32 = arith.constant 0 : i32
    %c0_i32_0 = arith.constant 0 : i32
    %c0_i32_1 = arith.constant 0 : i32
    return %c0_i32, %c0_i32_0 : i32, i32
  }
  func.func @transform_3(%arg0: i32) -> (i32, i32) {
    %c0_i32 = arith.constant 0 : i32
    %c0_i32_0 = arith.constant 0 : i32
    %c0_i32_1 = arith.constant 0 : i32
    return %c0_i32, %c0_i32_0 : i32, i32
  }
  func.func @transform_4(%arg0: i32) -> (i32, i32) {
    %c0_i32 = arith.constant 0 : i32
    %c0_i32_0 = arith.constant 0 : i32
    %c0_i32_1 = arith.constant 0 : i32
    return %c0_i32, %c0_i32_0 : i32, i32
  }
  func.func @transform_5(%arg0: i32) -> (i32, i32) {
    %c0_i32 = arith.constant 0 : i32
    %c0_i32_0 = arith.constant 0 : i32
    %c0_i32_1 = arith.constant 0 : i32
    return %c0_i32, %c0_i32_0 : i32, i32
  }
  func.func @transform_6(%arg0: i32) -> (i32, i32) {
    %c0_i32 = arith.constant 0 : i32
    %c0_i32_0 = arith.constant 0 : i32
    %c0_i32_1 = arith.constant 0 : i32
    return %c0_i32, %c0_i32_0 : i32, i32
  }
  func.func @transform_7(%arg0: i32) -> (i32, i32) {
    %c0_i32 = arith.constant 0 : i32
    %c0_i32_0 = arith.constant 0 : i32
    %c0_i32_1 = arith.constant 0 : i32
    return %c0_i32, %c0_i32_0 : i32, i32
  }
  func.func @transform_8(%arg0: i32) -> (i32, i32) {
    %c0_i32 = arith.constant 0 : i32
    %c0_i32_0 = arith.constant 0 : i32
    %c0_i32_1 = arith.constant 0 : i32
    return %c0_i32, %c0_i32_0 : i32, i32
  }
  func.func @transform_9(%arg0: i32) -> (i32, i32) {
    %c0_i32 = arith.constant 0 : i32
    %c0_i32_0 = arith.constant 0 : i32
    %c0_i32_1 = arith.constant 0 : i32
    return %c0_i32, %c0_i32_0 : i32, i32
  }
  func.func @transform_10(%arg0: i32) -> (i32, i32) {
    %c0_i32 = arith.constant 0 : i32
    %c0_i32_0 = arith.constant 0 : i32
    return %arg0, %c0_i32 : i32, i32
  }
  func.func @transform_11(%arg0: i32) -> (i32, i32) {
    %c0_i32 = arith.constant 0 : i32
    %c0_i32_0 = arith.constant 0 : i32
    return %arg0, %c0_i32 : i32, i32
  }
  func.func @transform_12(%arg0: i32) -> (i32, i32) {
    %c0_i32 = arith.constant 0 : i32
    %c0_i32_0 = arith.constant 0 : i32
    return %arg0, %c0_i32 : i32, i32
  }
}

module attributes {stable_mosaic.version = 11 : i64} {
  func.func @_dec_linear_kernel(%arg0: i32, %arg1: memref<32x32xbf16, #tpu.memory_space<vmem>>, %arg2: memref<32x4xbf16, #tpu.memory_space<vmem>>, %arg3: memref<1x4xf32, #tpu.memory_space<vmem>>, %arg4: memref<32x4xbf16, #tpu.memory_space<vmem>>, %arg5: memref<1x4xf32, #tpu.memory_space<vmem>>, %arg6: memref<32x4xf32, #tpu.memory_space<vmem>>, %arg7: memref<32x4xf32, #tpu.memory_space<vmem>>) attributes {dimension_semantics = [#tpu.dimension_semantics<parallel>], iteration_bounds = array<i64: 1>, scalar_prefetch = 0 : i64, scratch_operands = 0 : i64, tpu.core_type = #tpu.core_type<tc>, window_params = [{transform_indices = @transform_0, window_bounds = array<i64: 32, 32>}, {pipeline_mode = #tpu.pipeline_mode<synchronous>, transform_indices = @transform_1, window_bounds = array<i64: 32, 4>}, {pipeline_mode = #tpu.pipeline_mode<synchronous>, transform_indices = @transform_2, window_bounds = array<i64: 1, 4>}, {pipeline_mode = #tpu.pipeline_mode<synchronous>, transform_indices = @transform_3, window_bounds = array<i64: 32, 4>}, {pipeline_mode = #tpu.pipeline_mode<synchronous>, transform_indices = @transform_4, window_bounds = array<i64: 1, 4>}, {transform_indices = @transform_5, window_bounds = array<i64: 32, 4>}, {transform_indices = @transform_6, window_bounds = array<i64: 32, 4>}]} {
    %c0 = arith.constant 0 : index
    %c0_0 = arith.constant 0 : index
    %0 = vector.load %arg1[%c0, %c0_0] : memref<32x32xbf16, #tpu.memory_space<vmem>>, vector<32x32xbf16>
    %c0_1 = arith.constant 0 : index
    %c0_2 = arith.constant 0 : index
    %1 = vector.load %arg2[%c0_1, %c0_2] : memref<32x4xbf16, #tpu.memory_space<vmem>>, vector<32x4xbf16>
    %cst = arith.constant dense<0.000000e+00> : vector<32x4xf32>
    %2 = tpu.matmul %0, %1, %cst {dimension_numbers = #tpu.dot_dimension_numbers<[1], [0], [0], [1], [0, 0, 1, 1], [], []>} : vector<32x32xbf16>, vector<32x4xbf16>, vector<32x4xf32> -> vector<32x4xf32>
    %c0_3 = arith.constant 0 : index
    %c0_4 = arith.constant 0 : index
    %3 = vector.load %arg3[%c0_3, %c0_4] : memref<1x4xf32, #tpu.memory_space<vmem>>, vector<1x4xf32>
    %4 = vector.broadcast %3 : vector<1x4xf32> to vector<32x4xf32>
    %5 = arith.addf %2, %4 : vector<32x4xf32>
    %c0_5 = arith.constant 0 : index
    %c0_6 = arith.constant 0 : index
    %6 = vector.load %arg6[%c0_5, %c0_6] : memref<32x4xf32, #tpu.memory_space<vmem>>, vector<32x4xf32>
    tpu.vector_store %arg6[%c0_5, %c0_6], %5 {strides = array<i32>} : memref<32x4xf32, #tpu.memory_space<vmem>>, vector<32x4xf32>,
    %c0_7 = arith.constant 0 : index
    %c0_8 = arith.constant 0 : index
    %7 = vector.load %arg4[%c0_7, %c0_8] : memref<32x4xbf16, #tpu.memory_space<vmem>>, vector<32x4xbf16>
    %cst_9 = arith.constant dense<0.000000e+00> : vector<32x4xf32>
    %8 = tpu.matmul %0, %7, %cst_9 {dimension_numbers = #tpu.dot_dimension_numbers<[1], [0], [0], [1], [0, 0, 1, 1], [], []>} : vector<32x32xbf16>, vector<32x4xbf16>, vector<32x4xf32> -> vector<32x4xf32>
    %c0_10 = arith.constant 0 : index
    %c0_11 = arith.constant 0 : index
    %9 = vector.load %arg5[%c0_10, %c0_11] : memref<1x4xf32, #tpu.memory_space<vmem>>, vector<1x4xf32>
    %10 = vector.broadcast %9 : vector<1x4xf32> to vector<32x4xf32>
    %11 = arith.addf %8, %10 : vector<32x4xf32>
    %c0_12 = arith.constant 0 : index
    %c0_13 = arith.constant 0 : index
    %12 = vector.load %arg7[%c0_12, %c0_13] : memref<32x4xf32, #tpu.memory_space<vmem>>, vector<32x4xf32>
    tpu.vector_store %arg7[%c0_12, %c0_13], %11 {strides = array<i32>} : memref<32x4xf32, #tpu.memory_space<vmem>>, vector<32x4xf32>,
    return
  }
  func.func @transform_0(%arg0: i32) -> (i32, i32) {
    %c0_i32 = arith.constant 0 : i32
    %c0_i32_0 = arith.constant 0 : i32
    return %arg0, %c0_i32 : i32, i32
  }
  func.func @transform_1(%arg0: i32) -> (i32, i32) {
    %c0_i32 = arith.constant 0 : i32
    %c0_i32_0 = arith.constant 0 : i32
    %c0_i32_1 = arith.constant 0 : i32
    return %c0_i32, %c0_i32_0 : i32, i32
  }
  func.func @transform_2(%arg0: i32) -> (i32, i32) {
    %c0_i32 = arith.constant 0 : i32
    %c0_i32_0 = arith.constant 0 : i32
    %c0_i32_1 = arith.constant 0 : i32
    return %c0_i32, %c0_i32_0 : i32, i32
  }
  func.func @transform_3(%arg0: i32) -> (i32, i32) {
    %c0_i32 = arith.constant 0 : i32
    %c0_i32_0 = arith.constant 0 : i32
    %c0_i32_1 = arith.constant 0 : i32
    return %c0_i32, %c0_i32_0 : i32, i32
  }
  func.func @transform_4(%arg0: i32) -> (i32, i32) {
    %c0_i32 = arith.constant 0 : i32
    %c0_i32_0 = arith.constant 0 : i32
    %c0_i32_1 = arith.constant 0 : i32
    return %c0_i32, %c0_i32_0 : i32, i32
  }
  func.func @transform_5(%arg0: i32) -> (i32, i32) {
    %c0_i32 = arith.constant 0 : i32
    %c0_i32_0 = arith.constant 0 : i32
    return %arg0, %c0_i32 : i32, i32
  }
  func.func @transform_6(%arg0: i32) -> (i32, i32) {
    %c0_i32 = arith.constant 0 : i32
    %c0_i32_0 = arith.constant 0 : i32
    return %arg0, %c0_i32 : i32, i32
  }
}

module attributes {stable_mosaic.version = 11 : i64} {
  func.func @_dec_linear_kernel(%arg0: i32, %arg1: memref<64x32xbf16, #tpu.memory_space<vmem>>, %arg2: memref<32x8xbf16, #tpu.memory_space<vmem>>, %arg3: memref<1x8xf32, #tpu.memory_space<vmem>>, %arg4: memref<32x8xbf16, #tpu.memory_space<vmem>>, %arg5: memref<1x8xf32, #tpu.memory_space<vmem>>, %arg6: memref<64x8xf32, #tpu.memory_space<vmem>>, %arg7: memref<64x8xf32, #tpu.memory_space<vmem>>) attributes {dimension_semantics = [#tpu.dimension_semantics<parallel>], iteration_bounds = array<i64: 2>, scalar_prefetch = 0 : i64, scratch_operands = 0 : i64, tpu.core_type = #tpu.core_type<tc>, window_params = [{transform_indices = @transform_0, window_bounds = array<i64: 64, 32>}, {pipeline_mode = #tpu.pipeline_mode<synchronous>, transform_indices = @transform_1, window_bounds = array<i64: 32, 8>}, {pipeline_mode = #tpu.pipeline_mode<synchronous>, transform_indices = @transform_2, window_bounds = array<i64: 1, 8>}, {pipeline_mode = #tpu.pipeline_mode<synchronous>, transform_indices = @transform_3, window_bounds = array<i64: 32, 8>}, {pipeline_mode = #tpu.pipeline_mode<synchronous>, transform_indices = @transform_4, window_bounds = array<i64: 1, 8>}, {transform_indices = @transform_5, window_bounds = array<i64: 64, 8>}, {transform_indices = @transform_6, window_bounds = array<i64: 64, 8>}]} {
    %c0 = arith.constant 0 : index
    %c0_0 = arith.constant 0 : index
    %0 = vector.load %arg1[%c0, %c0_0] : memref<64x32xbf16, #tpu.memory_space<vmem>>, vector<64x32xbf16>
    %c0_1 = arith.constant 0 : index
    %c0_2 = arith.constant 0 : index
    %1 = vector.load %arg2[%c0_1, %c0_2] : memref<32x8xbf16, #tpu.memory_space<vmem>>, vector<32x8xbf16>
    %cst = arith.constant dense<0.000000e+00> : vector<64x8xf32>
    %2 = tpu.matmul %0, %1, %cst {dimension_numbers = #tpu.dot_dimension_numbers<[1], [0], [0], [1], [0, 0, 1, 1], [], []>} : vector<64x32xbf16>, vector<32x8xbf16>, vector<64x8xf32> -> vector<64x8xf32>
    %c0_3 = arith.constant 0 : index
    %c0_4 = arith.constant 0 : index
    %3 = vector.load %arg3[%c0_3, %c0_4] : memref<1x8xf32, #tpu.memory_space<vmem>>, vector<1x8xf32>
    %4 = vector.broadcast %3 : vector<1x8xf32> to vector<64x8xf32>
    %5 = arith.addf %2, %4 : vector<64x8xf32>
    %c0_5 = arith.constant 0 : index
    %c0_6 = arith.constant 0 : index
    %6 = vector.load %arg6[%c0_5, %c0_6] : memref<64x8xf32, #tpu.memory_space<vmem>>, vector<64x8xf32>
    tpu.vector_store %arg6[%c0_5, %c0_6], %5 {strides = array<i32>} : memref<64x8xf32, #tpu.memory_space<vmem>>, vector<64x8xf32>,
    %c0_7 = arith.constant 0 : index
    %c0_8 = arith.constant 0 : index
    %7 = vector.load %arg4[%c0_7, %c0_8] : memref<32x8xbf16, #tpu.memory_space<vmem>>, vector<32x8xbf16>
    %cst_9 = arith.constant dense<0.000000e+00> : vector<64x8xf32>
    %8 = tpu.matmul %0, %7, %cst_9 {dimension_numbers = #tpu.dot_dimension_numbers<[1], [0], [0], [1], [0, 0, 1, 1], [], []>} : vector<64x32xbf16>, vector<32x8xbf16>, vector<64x8xf32> -> vector<64x8xf32>
    %c0_10 = arith.constant 0 : index
    %c0_11 = arith.constant 0 : index
    %9 = vector.load %arg5[%c0_10, %c0_11] : memref<1x8xf32, #tpu.memory_space<vmem>>, vector<1x8xf32>
    %10 = vector.broadcast %9 : vector<1x8xf32> to vector<64x8xf32>
    %11 = arith.addf %8, %10 : vector<64x8xf32>
    %c0_12 = arith.constant 0 : index
    %c0_13 = arith.constant 0 : index
    %12 = vector.load %arg7[%c0_12, %c0_13] : memref<64x8xf32, #tpu.memory_space<vmem>>, vector<64x8xf32>
    tpu.vector_store %arg7[%c0_12, %c0_13], %11 {strides = array<i32>} : memref<64x8xf32, #tpu.memory_space<vmem>>, vector<64x8xf32>,
    return
  }
  func.func @transform_0(%arg0: i32) -> (i32, i32) {
    %c0_i32 = arith.constant 0 : i32
    %c0_i32_0 = arith.constant 0 : i32
    return %arg0, %c0_i32 : i32, i32
  }
  func.func @transform_1(%arg0: i32) -> (i32, i32) {
    %c0_i32 = arith.constant 0 : i32
    %c0_i32_0 = arith.constant 0 : i32
    %c0_i32_1 = arith.constant 0 : i32
    return %c0_i32, %c0_i32_0 : i32, i32
  }
  func.func @transform_2(%arg0: i32) -> (i32, i32) {
    %c0_i32 = arith.constant 0 : i32
    %c0_i32_0 = arith.constant 0 : i32
    %c0_i32_1 = arith.constant 0 : i32
    return %c0_i32, %c0_i32_0 : i32, i32
  }
  func.func @transform_3(%arg0: i32) -> (i32, i32) {
    %c0_i32 = arith.constant 0 : i32
    %c0_i32_0 = arith.constant 0 : i32
    %c0_i32_1 = arith.constant 0 : i32
    return %c0_i32, %c0_i32_0 : i32, i32
  }
  func.func @transform_4(%arg0: i32) -> (i32, i32) {
    %c0_i32 = arith.constant 0 : i32
    %c0_i32_0 = arith.constant 0 : i32
    %c0_i32_1 = arith.constant 0 : i32
    return %c0_i32, %c0_i32_0 : i32, i32
  }
  func.func @transform_5(%arg0: i32) -> (i32, i32) {
    %c0_i32 = arith.constant 0 : i32
    %c0_i32_0 = arith.constant 0 : i32
    return %arg0, %c0_i32 : i32, i32
  }
  func.func @transform_6(%arg0: i32) -> (i32, i32) {
    %c0_i32 = arith.constant 0 : i32
    %c0_i32_0 = arith.constant 0 : i32
    return %arg0, %c0_i32 : i32, i32
  }
}

</mosaic_0001>

<llo_original>
// kernel: unconditional_cse_style_mapper_forward.7
$region0: #{unconditional_cse_style_mapper_forward.7}
  #allocation0 [shape = 'u32[]', space=smem, size = 0x4, offset = 0x4, fixed_abs, tag = 'smem constant byte address 0x4 - core index']
  #allocation1 [shape = 'u32[144,128]{1,0:T(1,128)}', space=vmem, size = 0x12000, scoped, tag = 'internal scratch']
  %s0 = inlined_call_operand.hbm [shape: bf16[32,32], index: 0, kind: input, shape index: {}]
  %s1 = inlined_call_operand.hbm [shape: bf16[32,4], index: 1, kind: input, shape index: {}]
  %s2 = inlined_call_operand.hbm [shape: f32[1,4], index: 2, kind: input, shape index: {}]
  %s3 = inlined_call_operand.hbm [shape: bf16[32,4], index: 3, kind: input, shape index: {}]
  %s4 = inlined_call_operand.hbm [shape: f32[1,4], index: 4, kind: input, shape index: {}]
  %s5 = inlined_call_operand.hbm [shape: f32[32,4], index: 5, kind: output, shape index: {0}]
  %s6 = inlined_call_operand.hbm [shape: f32[32,4], index: 6, kind: output, shape index: {1}]
  %7 = xla_tuple %s5, %s6
  %s8 = sld [smem:[#allocation0]]
  $region58: #{unconditional_cse_style_mapper_forward.7} parent=0
    _
  %s10 = ssub.s32 1, %s8
  %s11 = scalar_select 0, %s10, %s8
  $region1: #{unconditional_cse_style_mapper_forward.7} parent=0
    #allocation2 [shape = 'u8[8192]{0}', space=vmem, size = 0x2000, scoped, tag = 'input window, operand 0, single buffered']
    #allocation3 [shape = 's32[1]{0}', space=sflag, size = 0x4, scoped, tag = 'scoped memory for unconditional_cse_style_mapper_forward.7']
    #allocation4 [shape = 's32[1]{0}', space=sflag, size = 0x4, scoped, tag = 'scoped memory for unconditional_cse_style_mapper_forward.7']
    #allocation5 [shape = 'u8[8192]{0}', space=vmem, size = 0x2000, scoped, tag = 'input window, operand 1, single buffered']
    #allocation6 [shape = 's32[1]{0}', space=sflag, size = 0x4, scoped, tag = 'scoped memory for unconditional_cse_style_mapper_forward.7']
    #allocation7 [shape = 'u8[512]{0}', space=vmem, size = 0x400, scoped, tag = 'input window, operand 2, single buffered']
    #allocation8 [shape = 'u8[8192]{0}', space=vmem, size = 0x2000, scoped, tag = 'input window, operand 3, single buffered']
    #allocation9 [shape = 's32[1]{0}', space=sflag, size = 0x4, scoped, tag = 'scoped memory for unconditional_cse_style_mapper_forward.7']
    #allocation10 [shape = 'u8[512]{0}', space=vmem, size = 0x400, scoped, tag = 'input window, operand 4, single buffered']
    #allocation11 [shape = 'u8[16384]{0}', space=vmem, size = 0x4000, scoped, tag = 'output window, operand 0, single buffered']
    #allocation12 [shape = 'u8[16384]{0}', space=vmem, size = 0x4000, scoped, tag = 'output window, operand 1, single buffered']
    #allocation13 [shape = 's32[1]{0}', space=sflag, size = 0x4, scoped, tag = 'scoped memory for unconditional_cse_style_mapper_forward.7']
    %12 = vsyncpa [#allocation3], 0
    %13 = vsyncpa [#allocation6], 0
    %14 = vsyncpa [#allocation9], 0
    %15 = vsyncpa [#allocation4], 0
    %16 = vsyncpa [#allocation13], 0
    // Predicated region
    $region2: #{unconditional_cse_style_mapper_forward.7} parent=1 // pred_check
      _
    $region3: #{unconditional_cse_style_mapper_forward.7} parent=1 // pred_check_branch
      %18 = sbr.rel (0) target = $region5
    $region4: #{unconditional_cse_style_mapper_forward.7} parent=1 // pred_region
      %s20 = ssub.s32 256, 256
      %21 = vsyncadd [#allocation3], %s20
      %s22 = sshll.u32 [#allocation2], 4
      %s23 = int_to_ptr.vmem [resolvable:$true] %s22
      %28 = dma.hbm_to_vmem [thread:$0]  %s0, 256, %s23, [#allocation3], 64, 64, 4
    $region5: #{unconditional_cse_style_mapper_forward.7} parent=1 // pred_fallthru
      _
    // Predicated region
    $region6: #{unconditional_cse_style_mapper_forward.7} parent=1 // pred_check
      _
    $region7: #{unconditional_cse_style_mapper_forward.7} parent=1 // pred_check_branch
      %30 = sbr.rel (0) target = $region9
    $region8: #{unconditional_cse_style_mapper_forward.7} parent=1 // pred_region
      %s32 = ssub.s32 256, 256
      %33 = vsyncadd [#allocation6], %s32
      %s34 = sshll.u32 [#allocation5], 4
      %s35 = int_to_ptr.vmem [resolvable:$true] %s34
      %40 = dma.hbm_to_vmem [thread:$0]  %s1, 256, %s35, [#allocation6], 64, 64, 4
    $region9: #{unconditional_cse_style_mapper_forward.7} parent=1 // pred_fallthru
      _
    // Predicated region
    $region10: #{unconditional_cse_style_mapper_forward.7} parent=1 // pred_check
      _
    $region11: #{unconditional_cse_style_mapper_forward.7} parent=1 // pred_check_branch
      %42 = sbr.rel (0) target = $region13
    $region12: #{unconditional_cse_style_mapper_forward.7} parent=1 // pred_region
      %s44 = ssub.s32 16, 16
      %45 = vsyncadd [#allocation6], %s44
      %s47 = sshll.u32 [#allocation7], 4
      %s48 = int_to_ptr.vmem [resolvable:$true] %s47
      %50 = dma.hbm_to_vmem [thread:$0]  %s2, 16, %s48, [#allocation6]
    $region13: #{unconditional_cse_style_mapper_forward.7} parent=1 // pred_fallthru
      _
    // Predicated region
    $region14: #{unconditional_cse_style_mapper_forward.7} parent=1 // pred_check
      _
    $region15: #{unconditional_cse_style_mapper_forward.7} parent=1 // pred_check_branch
      %52 = sbr.rel (0) target = $region17
    $region16: #{unconditional_cse_style_mapper_forward.7} parent=1 // pred_region
      %s54 = ssub.s32 256, 256
      %55 = vsyncadd [#allocation9], %s54
      %s56 = sshll.u32 [#allocation8], 4
      %s57 = int_to_ptr.vmem [resolvable:$true] %s56
      %62 = dma.hbm_to_vmem [thread:$0]  %s3, 256, %s57, [#allocation9], 64, 64, 4
    $region17: #{unconditional_cse_style_mapper_forward.7} parent=1 // pred_fallthru
      _
    // Predicated region
    $region18: #{unconditional_cse_style_mapper_forward.7} parent=1 // pred_check
      _
    $region19: #{unconditional_cse_style_mapper_forward.7} parent=1 // pred_check_branch
      %64 = sbr.rel (0) target = $region21
    $region20: #{unconditional_cse_style_mapper_forward.7} parent=1 // pred_region
      %s66 = ssub.s32 16, 16
      %67 = vsyncadd [#allocation9], %s66
      %s69 = sshll.u32 [#allocation10], 4
      %s70 = int_to_ptr.vmem [resolvable:$true] %s69
      %72 = dma.hbm_to_vmem [thread:$0]  %s4, 16, %s70, [#allocation9]
    $region21: #{unconditional_cse_style_mapper_forward.7} parent=1 // pred_fallthru
      _
    // Predicated region
    $region22: #{unconditional_cse_style_mapper_forward.7} parent=1 // pred_check
      _
    $region23: #{unconditional_cse_style_mapper_forward.7} parent=1 // pred_check_branch
      %74 = sbr.rel (0) target = $region25
    $region24: #{unconditional_cse_style_mapper_forward.7} parent=1 // pred_region
      %75 = dma.done [#allocation3], 256
    $region25: #{unconditional_cse_style_mapper_forward.7} parent=1 // pred_fallthru
      _
    // Predicated region
    $region26: #{unconditional_cse_style_mapper_forward.7} parent=1 // pred_check
      _
    $region27: #{unconditional_cse_style_mapper_forward.7} parent=1 // pred_check_branch
      %77 = sbr.rel (0) target = $region29
    $region28: #{unconditional_cse_style_mapper_forward.7} parent=1 // pred_region
      %78 = dma.done [#allocation6], 256
    $region29: #{unconditional_cse_style_mapper_forward.7} parent=1 // pred_fallthru
      _
    // Predicated region
    $region30: #{unconditional_cse_style_mapper_forward.7} parent=1 // pred_check
      _
    $region31: #{unconditional_cse_style_mapper_forward.7} parent=1 // pred_check_branch
      %80 = sbr.rel (0) target = $region33
    $region32: #{unconditional_cse_style_mapper_forward.7} parent=1 // pred_region
      %81 = dma.done [#allocation6], 16
    $region33: #{unconditional_cse_style_mapper_forward.7} parent=1 // pred_fallthru
      _
    // Predicated region
    $region34: #{unconditional_cse_style_mapper_forward.7} parent=1 // pred_check
      _
    $region35: #{unconditional_cse_style_mapper_forward.7} parent=1 // pred_check_branch
      %83 = sbr.rel (0) target = $region37
    $region36: #{unconditional_cse_style_mapper_forward.7} parent=1 // pred_region
      %84 = dma.done [#allocation9], 256
    $region37: #{unconditional_cse_style_mapper_forward.7} parent=1 // pred_fallthru
      _
    // Predicated region
    $region38: #{unconditional_cse_style_mapper_forward.7} parent=1 // pred_check
      _
    $region39: #{unconditional_cse_style_mapper_forward.7} parent=1 // pred_check_branch
      %86 = sbr.rel (0) target = $region41
    $region40: #{unconditional_cse_style_mapper_forward.7} parent=1 // pred_region
      %87 = dma.done [#allocation9], 16
    $region41: #{unconditional_cse_style_mapper_forward.7} parent=1 // pred_fallthru
      _
    %v89 = vld [vmem:[#allocation2] sm:$0xf]
    %v90 = vld [vmem:[#allocation2 + $0x4] sm:$0xf]
    %v91 = vld [vmem:[#allocation2 + $0x8] sm:$0xf]
    %v92 = vld [vmem:[#allocation2 + $0xc] sm:$0xf]
    %v93 = vld [vmem:[#allocation5] sm:$0xf]
    %v94 = vld [vmem:[#allocation5 + $0x4] sm:$0xf]
    %v95 = vld [vmem:[#allocation5 + $0x8] sm:$0xf]
    %v96 = vld [vmem:[#allocation5 + $0xc] sm:$0xf]
    %v97 = vld [vmem:[#allocation7] sm:$0x1]
    %v99 = vlaneseq
    %v100 = vshrl.u32 %v99, 7
    %v101 = vsub.s32 0, %v100
    %v102 = vrot.slane %v97, %v101
    %v108 = vunpack.c.l.b16 %v89
    %v109 = vunpack.c.l.b16 %v90
    %v110 = vunpack.c.l.b16 %v91
    %v111 = vunpack.c.l.b16 %v92
    %v112 = vpack.c.b16 %v109, %v108
    %v113 = vpack.c.b16 %v111, %v110
    %v118 = vunpack.c.l.b16 %v93
    %v119 = vunpack.c.l.b16 %v94
    %v120 = vunpack.c.l.b16 %v95
    %v121 = vunpack.c.l.b16 %v96
    %v122 = vpack.c.b16 %v119, %v118
    %v123 = vpack.c.b16 %v121, %v120
    %vm126 = vcmask 261120
    %v128 = vsel %vm126, %v112, 0
    %v131 = vsel %vm126, %v113, 0
    %133 = vmatprep.subr.bf16.mxu0 0
    %134 = vmatpush1.bf16.msra.mxu0 %v122
    %135 = vmatprep.subr.bf16.mxu0 0
    %136 = vmatpush1.bf16.msra.mxu0 %v123
    %137 = vmatprep.subr.bf16.mxu0 0
    %138 = vmatpush1.bf16.msra.mxu0 0
    %139 = vmatprep.subr.bf16.mxu0 0
    %140 = vmatpush1.bf16.msra.mxu0 0
    %141 = vmatprep.subr.bf16.mxu0 0
    %142 = vmatpush1.bf16.msra.mxu0 0
    %143 = vmatprep.subr.bf16.mxu0 0
    %144 = vmatpush1.bf16.msra.mxu0 0
    %145 = vmatprep.subr.bf16.mxu0 0
    %146 = vmatpush1.bf16.msra.mxu0 0
    %147 = vmatprep.subr.bf16.mxu0 0
    %148 = vmatpush1.bf16.msra.mxu0 0
    %149 = vmatprep.subr.bf16.mxu0 0
    %150 = vmatpush1.bf16.msra.mxu0 0
    %151 = vmatprep.subr.bf16.mxu0 0
    %152 = vmatpush1.bf16.msra.mxu0 0
    %153 = vmatprep.subr.bf16.mxu0 0
    %154 = vmatpush1.bf16.msra.mxu0 0
    %155 = vmatprep.subr.bf16.mxu0 0
    %156 = vmatpush1.bf16.msra.mxu0 0
    %157 = vmatprep.subr.bf16.mxu0 0
    %158 = vmatpush1.bf16.msra.mxu0 0
    %159 = vmatprep.subr.bf16.mxu0 0
    %160 = vmatpush1.bf16.msra.mxu0 0
    %161 = vmatprep.subr.bf16.mxu0 0
    %162 = vmatpush1.bf16.msra.mxu0 0
    %163 = vmatprep.subr.bf16.mxu0 0
    %164 = vmatpush1.bf16.msra.mxu0 0
    %165 = vmatprep.mubr.bf16.mxu0 0
    %166 = vmatmul.mubr.bf16.gmra.mrb[0].mxu0 %v128
    %v167 = vpop.f32.mrb[0].mxu0
    %v168 = vadd.f32 %v102, %v167
    %v169 = vpop.f32.mrb[0].mxu0
    %v170 = vpop.f32.mrb[0].mxu0
    %v171 = vadd.f32 %v102, %v170
    %v172 = vpop.f32.mrb[0].mxu0
    %173 = vmatprep.mubr.bf16.mxu0 0
    %174 = vmatmul.mubr.bf16.gmra.mrb[0].mxu0 %v131
    %v175 = vpop.f32.mrb[0].mxu0
    %v176 = vadd.f32 %v102, %v175
    %v177 = vpop.f32.mrb[0].mxu0
    %v178 = vpop.f32.mrb[0].mxu0
    %v179 = vadd.f32 %v102, %v178
    %v180 = vpop.f32.mrb[0].mxu0
    %181 = vdwg.mxu0
    %vm182 = vcmask 31744
    %183 = vst.msk [vmem:[#allocation11] sm:$0xff] %vm182, %v168
    %184 = vst.msk [vmem:[#allocation11 + $0x8] sm:$0xff] %vm182, %v171
    %185 = vst.msk [vmem:[#allocation11 + $0x10] sm:$0xff] %vm182, %v176
    %186 = vst.msk [vmem:[#allocation11 + $0x18] sm:$0xff] %vm182, %v179
    %v187 = vld [vmem:[#allocation8] sm:$0xf]
    %v188 = vld [vmem:[#allocation8 + $0x4] sm:$0xf]
    %v189 = vld [vmem:[#allocation8 + $0x8] sm:$0xf]
    %v190 = vld [vmem:[#allocation8 + $0xc] sm:$0xf]
    %v191 = vld [vmem:[#allocation10] sm:$0x1]
    %v193 = vlaneseq
    %v194 = vshrl.u32 %v193, 7
    %v195 = vsub.s32 0, %v194
    %v196 = vrot.slane %v191, %v195
    %v202 = vunpack.c.l.b16 %v187
    %v203 = vunpack.c.l.b16 %v188
    %v204 = vunpack.c.l.b16 %v189
    %v205 = vunpack.c.l.b16 %v190
    %v206 = vpack.c.b16 %v203, %v202
    %v207 = vpack.c.b16 %v205, %v204
    %210 = vmatprep.subr.bf16.mxu0 0
    %211 = vmatpush1.bf16.msra.mxu0 %v206
    %212 = vmatprep.subr.bf16.mxu0 0
    %213 = vmatpush1.bf16.msra.mxu0 %v207
    %214 = vmatprep.subr.bf16.mxu0 0
    %215 = vmatpush1.bf16.msra.mxu0 0
    %216 = vmatprep.subr.bf16.mxu0 0
    %217 = vmatpush1.bf16.msra.mxu0 0
    %218 = vmatprep.subr.bf16.mxu0 0
    %219 = vmatpush1.bf16.msra.mxu0 0
    %220 = vmatprep.subr.bf16.mxu0 0
    %221 = vmatpush1.bf16.msra.mxu0 0
    %222 = vmatprep.subr.bf16.mxu0 0
    %223 = vmatpush1.bf16.msra.mxu0 0
    %224 = vmatprep.subr.bf16.mxu0 0
    %225 = vmatpush1.bf16.msra.mxu0 0
    %226 = vmatprep.subr.bf16.mxu0 0
    %227 = vmatpush1.bf16.msra.mxu0 0
    %228 = vmatprep.subr.bf16.mxu0 0
    %229 = vmatpush1.bf16.msra.mxu0 0
    %230 = vmatprep.subr.bf16.mxu0 0
    %231 = vmatpush1.bf16.msra.mxu0 0
    %232 = vmatprep.subr.bf16.mxu0 0
    %233 = vmatpush1.bf16.msra.mxu0 0
    %234 = vmatprep.subr.bf16.mxu0 0
    %235 = vmatpush1.bf16.msra.mxu0 0
    %236 = vmatprep.subr.bf16.mxu0 0
    %237 = vmatpush1.bf16.msra.mxu0 0
    %238 = vmatprep.subr.bf16.mxu0 0
    %239 = vmatpush1.bf16.msra.mxu0 0
    %240 = vmatprep.subr.bf16.mxu0 0
    %241 = vmatpush1.bf16.msra.mxu0 0
    %242 = vmatprep.mubr.bf16.mxu0 0
    %243 = vmatmul.mubr.bf16.gmra.mrb[0].mxu0 %v128
    %v244 = vpop.f32.mrb[0].mxu0
    %v245 = vadd.f32 %v196, %v244
    %v246 = vpop.f32.mrb[0].mxu0
    %v247 = vpop.f32.mrb[0].mxu0
    %v248 = vadd.f32 %v196, %v247
    %v249 = vpop.f32.mrb[0].mxu0
    %250 = vmatprep.mubr.bf16.mxu0 0
    %251 = vmatmul.mubr.bf16.gmra.mrb[0].mxu0 %v131
    %v252 = vpop.f32.mrb[0].mxu0
    %v253 = vadd.f32 %v196, %v252
    %v254 = vpop.f32.mrb[0].mxu0
    %v255 = vpop.f32.mrb[0].mxu0
    %v256 = vadd.f32 %v196, %v255
    %v257 = vpop.f32.mrb[0].mxu0
    %258 = vdwg.mxu0
    %259 = vst.msk [vmem:[#allocation12] sm:$0xff] %vm182, %v245
    %260 = vst.msk [vmem:[#allocation12 + $0x8] sm:$0xff] %vm182, %v248
    %261 = vst.msk [vmem:[#allocation12 + $0x10] sm:$0xff] %vm182, %v253
    %262 = vst.msk [vmem:[#allocation12 + $0x18] sm:$0xff] %vm182, %v256
    // Predicated region
    $region42: #{unconditional_cse_style_mapper_forward.7} parent=1 // pred_check
      _
    $region43: #{unconditional_cse_style_mapper_forward.7} parent=1 // pred_check_branch
      %264 = sbr.rel (0) target = $region45
    $region44: #{unconditional_cse_style_mapper_forward.7} parent=1 // pred_region
      %s266 = ssub.s32 512, 512
      %267 = vsyncadd [#allocation4], %s266
      %s268 = sshll.u32 [#allocation11], 4
      %s269 = int_to_ptr.vmem [resolvable:$true] %s268
      %274 = dma.vmem_to_hbm [thread:$0]  %s269, 512, %s5, [#allocation4], 128, 128, 8
    $region45: #{unconditional_cse_style_mapper_forward.7} parent=1 // pred_fallthru
      _
    // Predicated region
    $region46: #{unconditional_cse_style_mapper_forward.7} parent=1 // pred_check
      _
    $region47: #{unconditional_cse_style_mapper_forward.7} parent=1 // pred_check_branch
      %276 = sbr.rel (0) target = $region49
    $region48: #{unconditional_cse_style_mapper_forward.7} parent=1 // pred_region
      %s278 = ssub.s32 512, 512
      %279 = vsyncadd [#allocation13], %s278
      %s280 = sshll.u32 [#allocation12], 4
      %s281 = int_to_ptr.vmem [resolvable:$true] %s280
      %286 = dma.vmem_to_hbm [thread:$0]  %s281, 512, %s6, [#allocation13], 128, 128, 8
    $region49: #{unconditional_cse_style_mapper_forward.7} parent=1 // pred_fallthru
      _
    // Predicated region
    $region50: #{unconditional_cse_style_mapper_forward.7} parent=1 // pred_check
      _
    $region51: #{unconditional_cse_style_mapper_forward.7} parent=1 // pred_check_branch
      %288 = sbr.rel (0) target = $region53
    $region52: #{unconditional_cse_style_mapper_forward.7} parent=1 // pred_region
      %289 = dma.done [#allocation4], 512
    $region53: #{unconditional_cse_style_mapper_forward.7} parent=1 // pred_fallthru
      _
    // Predicated region
    $region54: #{unconditional_cse_style_mapper_forward.7} parent=1 // pred_check
      _
    $region55: #{unconditional_cse_style_mapper_forward.7} parent=1 // pred_check_branch
      %291 = sbr.rel (0) target = $region57
    $region56: #{unconditional_cse_style_mapper_forward.7} parent=1 // pred_region
      %292 = dma.done [#allocation13], 512
    $region57: #{unconditional_cse_style_mapper_forward.7} parent=1 // pred_fallthru
      _
    %293 = vsyncpa [#allocation3], 1
    %294 = vsyncpa [#allocation6], 1
    %295 = vsyncpa [#allocation9], 1
    %296 = vsyncpa [#allocation4], 1
    %297 = vsyncpa [#allocation13], 1

// kernel: unconditional_cse_style_mapper_forward.4
$region0: #{unconditional_cse_style_mapper_forward.4}
  #allocation0 [shape = 'u32[]', space=smem, size = 0x4, offset = 0x4, fixed_abs, tag = 'smem constant byte address 0x4 - core index']
  #allocation1 [shape = 'u32[144,128]{1,0:T(1,128)}', space=vmem, size = 0x12000, scoped, tag = 'internal scratch']
  %s0 = inlined_call_operand.hbm [shape: bf16[64,16], index: 0, kind: input, shape index: {}]
  %s1 = inlined_call_operand.hbm [shape: bf16[16,32], index: 1, kind: input, shape index: {}]
  %s2 = inlined_call_operand.hbm [shape: f32[1,32], index: 2, kind: input, shape index: {}]
  %s3 = inlined_call_operand.hbm [shape: bf16[32,32], index: 3, kind: input, shape index: {}]
  %s4 = inlined_call_operand.hbm [shape: f32[1,32], index: 4, kind: input, shape index: {}]
  %s5 = inlined_call_operand.hbm [shape: bf16[32,32], index: 5, kind: input, shape index: {}]
  %s6 = inlined_call_operand.hbm [shape: f32[1,32], index: 6, kind: input, shape index: {}]
  %s7 = inlined_call_operand.hbm [shape: bf16[32,32], index: 7, kind: input, shape index: {}]
  %s8 = inlined_call_operand.hbm [shape: f32[1,32], index: 8, kind: input, shape index: {}]
  %s9 = inlined_call_operand.hbm [shape: bf16[32,32], index: 9, kind: input, shape index: {}]
  %s10 = inlined_call_operand.hbm [shape: f32[1,32], index: 10, kind: input, shape index: {}]
  %s11 = inlined_call_operand.hbm [shape: bf16[32,32], index: 11, kind: input, shape index: {}]
  %s12 = inlined_call_operand.hbm [shape: f32[1,32], index: 12, kind: input, shape index: {}]
  %s13 = inlined_call_operand.hbm [shape: bf16[32,32], index: 13, kind: input, shape index: {}]
  %s14 = inlined_call_operand.hbm [shape: f32[1,32], index: 14, kind: input, shape index: {}]
  %s15 = inlined_call_operand.hbm [shape: bf16[32,32], index: 15, kind: input, shape index: {}]
  %s16 = inlined_call_operand.hbm [shape: f32[1,32], index: 16, kind: input, shape index: {}]
  %s17 = inlined_call_operand.hbm [shape: bf16[32,32], index: 17, kind: input, shape index: {}]
  %s18 = inlined_call_operand.hbm [shape: f32[1,32], index: 18, kind: input, shape index: {}]
  %s19 = inlined_call_operand.hbm [shape: bf16[32,32], index: 19, kind: input, shape index: {}]
  %s20 = inlined_call_operand.hbm [shape: f32[1,32], index: 20, kind: input, shape index: {}]
  %s21 = inlined_call_operand.hbm [shape: bf16[64,32], index: 21, kind: output, shape index: {}]
  %s22 = sld [smem:[#allocation0]]
  $region178: #{unconditional_cse_style_mapper_forward.4} parent=0
    _
  %s24 = ssub.s32 1, %s22
  %s25 = scalar_select 0, %s24, %s22
  $region1: #{unconditional_cse_style_mapper_forward.4} parent=0
    #allocation2 [shape = 'u8[16384]{0}', space=vmem, size = 0x4000, scoped, tag = 'input window, operand 0, single buffered']
    #allocation3 [shape = 's32[1]{0}', space=sflag, size = 0x4, scoped, tag = 'scoped memory for unconditional_cse_style_mapper_forward.4']
    #allocation4 [shape = 's32[1]{0}', space=sflag, size = 0x4, scoped, tag = 'scoped memory for unconditional_cse_style_mapper_forward.4']
    #allocation5 [shape = 'u8[4096]{0}', space=vmem, size = 0x1000, scoped, tag = 'input window, operand 1, single buffered']
    #allocation6 [shape = 's32[1]{0}', space=sflag, size = 0x4, scoped, tag = 'scoped memory for unconditional_cse_style_mapper_forward.4']
    #allocation7 [shape = 'u8[512]{0}', space=vmem, size = 0x400, scoped, tag = 'input window, operand 2, single buffered']
    #allocation8 [shape = 'u8[8192]{0}', space=vmem, size = 0x2000, scoped, tag = 'input window, operand 3, single buffered']
    #allocation9 [shape = 's32[1]{0}', space=sflag, size = 0x4, scoped, tag = 'scoped memory for unconditional_cse_style_mapper_forward.4']
    #allocation10 [shape = 'u8[512]{0}', space=vmem, size = 0x400, scoped, tag = 'input window, operand 4, single buffered']
    #allocation11 [shape = 'u8[8192]{0}', space=vmem, size = 0x2000, scoped, tag = 'input window, operand 5, single buffered']
    #allocation12 [shape = 's32[1]{0}', space=sflag, size = 0x4, scoped, tag = 'scoped memory for unconditional_cse_style_mapper_forward.4']
    #allocation13 [shape = 'u8[512]{0}', space=vmem, size = 0x400, scoped, tag = 'input window, operand 6, single buffered']
    #allocation14 [shape = 'u8[8192]{0}', space=vmem, size = 0x2000, scoped, tag = 'input window, operand 7, single buffered']
    #allocation15 [shape = 's32[1]{0}', space=sflag, size = 0x4, scoped, tag = 'scoped memory for unconditional_cse_style_mapper_forward.4']
    #allocation16 [shape = 'u8[512]{0}', space=vmem, size = 0x400, scoped, tag = 'input window, operand 8, single buffered']
    #allocation17 [shape = 'u8[8192]{0}', space=vmem, size = 0x2000, scoped, tag = 'input window, operand 9, single buffered']
    #allocation18 [shape = 's32[1]{0}', space=sflag, size = 0x4, scoped, tag = 'scoped memory for unconditional_cse_style_mapper_forward.4']
    #allocation19 [shape = 'u8[512]{0}', space=vmem, size = 0x400, scoped, tag = 'input window, operand 10, single buffered']
    #allocation20 [shape = 'u8[8192]{0}', space=vmem, size = 0x2000, scoped, tag = 'input window, operand 11, single buffered']
    #allocation21 [shape = 's32[1]{0}', space=sflag, size = 0x4, scoped, tag = 'scoped memory for unconditional_cse_style_mapper_forward.4']
    #allocation22 [shape = 'u8[512]{0}', space=vmem, size = 0x400, scoped, tag = 'input window, operand 12, single buffered']
    #allocation23 [shape = 'u8[8192]{0}', space=vmem, size = 0x2000, scoped, tag = 'input window, operand 13, single buffered']
    #allocation24 [shape = 's32[1]{0}', space=sflag, size = 0x4, scoped, tag = 'scoped memory for unconditional_cse_style_mapper_forward.4']
    #allocation25 [shape = 'u8[512]{0}', space=vmem, size = 0x400, scoped, tag = 'input window, operand 14, single buffered']
    #allocation26 [shape = 'u8[8192]{0}', space=vmem, size = 0x2000, scoped, tag = 'input window, operand 15, single buffered']
    #allocation27 [shape = 's32[1]{0}', space=sflag, size = 0x4, scoped, tag = 'scoped memory for unconditional_cse_style_mapper_forward.4']
    #allocation28 [shape = 'u8[512]{0}', space=vmem, size = 0x400, scoped, tag = 'input window, operand 16, single buffered']
    #allocation29 [shape = 'u8[8192]{0}', space=vmem, size = 0x2000, scoped, tag = 'input window, operand 17, single buffered']
    #allocation30 [shape = 's32[1]{0}', space=sflag, size = 0x4, scoped, tag = 'scoped memory for unconditional_cse_style_mapper_forward.4']
    #allocation31 [shape = 'u8[512]{0}', space=vmem, size = 0x400, scoped, tag = 'input window, operand 18, single buffered']
    #allocation32 [shape = 'u8[8192]{0}', space=vmem, size = 0x2000, scoped, tag = 'input window, operand 19, single buffered']
    #allocation33 [shape = 's32[1]{0}', space=sflag, size = 0x4, scoped, tag = 'scoped memory for unconditional_cse_style_mapper_forward.4']
    #allocation34 [shape = 'u8[512]{0}', space=vmem, size = 0x400, scoped, tag = 'input window, operand 20, single buffered']
    #allocation35 [shape = 'u8[16384]{0}', space=vmem, size = 0x4000, scoped, tag = 'output window, operand 0, single buffered']
    %26 = vsyncpa [#allocation3], 0
    %27 = vsyncpa [#allocation6], 0
    %28 = vsyncpa [#allocation9], 0
    %29 = vsyncpa [#allocation12], 0
    %30 = vsyncpa [#allocation15], 0
    %31 = vsyncpa [#allocation18], 0
    %32 = vsyncpa [#allocation21], 0
    %33 = vsyncpa [#allocation24], 0
    %34 = vsyncpa [#allocation27], 0
    %35 = vsyncpa [#allocation30], 0
    %36 = vsyncpa [#allocation33], 0
    %37 = vsyncpa [#allocation4], 0
    // Predicated region
    $region2: #{unconditional_cse_style_mapper_forward.4} parent=1 // pred_check
      _
    $region3: #{unconditional_cse_style_mapper_forward.4} parent=1 // pred_check_branch
      %39 = sbr.rel (0) target = $region5
    $region4: #{unconditional_cse_style_mapper_forward.4} parent=1 // pred_region
      %s41 = ssub.s32 512, 512
      %42 = vsyncadd [#allocation3], %s41
      %s43 = sshll.u32 [#allocation2], 4
      %s44 = int_to_ptr.vmem [resolvable:$true] %s43
      %49 = dma.hbm_to_vmem [thread:$0]  %s0, 512, %s44, [#allocation3], 64, 64, 4
    $region5: #{unconditional_cse_style_mapper_forward.4} parent=1 // pred_fallthru
      _
    // Predicated region
    $region6: #{unconditional_cse_style_mapper_forward.4} parent=1 // pred_check
      _
    $region7: #{unconditional_cse_style_mapper_forward.4} parent=1 // pred_check_branch
      %51 = sbr.rel (0) target = $region9
    $region8: #{unconditional_cse_style_mapper_forward.4} parent=1 // pred_region
      %s53 = ssub.s32 128, 128
      %54 = vsyncadd [#allocation6], %s53
      %s55 = sshll.u32 [#allocation5], 4
      %s56 = int_to_ptr.vmem [resolvable:$true] %s55
      %61 = dma.hbm_to_vmem [thread:$0]  %s1, 128, %s56, [#allocation6], 64, 64, 4
    $region9: #{unconditional_cse_style_mapper_forward.4} parent=1 // pred_fallthru
      _
    // Predicated region
    $region10: #{unconditional_cse_style_mapper_forward.4} parent=1 // pred_check
      _
    $region11: #{unconditional_cse_style_mapper_forward.4} parent=1 // pred_check_branch
      %63 = sbr.rel (0) target = $region13
    $region12: #{unconditional_cse_style_mapper_forward.4} parent=1 // pred_region
      %s65 = ssub.s32 16, 16
      %66 = vsyncadd [#allocation6], %s65
      %s68 = sshll.u32 [#allocation7], 4
      %s69 = int_to_ptr.vmem [resolvable:$true] %s68
      %71 = dma.hbm_to_vmem [thread:$0]  %s2, 16, %s69, [#allocation6]
    $region13: #{unconditional_cse_style_mapper_forward.4} parent=1 // pred_fallthru
      _
    // Predicated region
    $region14: #{unconditional_cse_style_mapper_forward.4} parent=1 // pred_check
      _
    $region15: #{unconditional_cse_style_mapper_forward.4} parent=1 // pred_check_branch
      %73 = sbr.rel (0) target = $region17
    $region16: #{unconditional_cse_style_mapper_forward.4} parent=1 // pred_region
      %s75 = ssub.s32 256, 256
      %76 = vsyncadd [#allocation9], %s75
      %s77 = sshll.u32 [#allocation8], 4
      %s78 = int_to_ptr.vmem [resolvable:$true] %s77
      %83 = dma.hbm_to_vmem [thread:$0]  %s3, 256, %s78, [#allocation9], 64, 64, 4
    $region17: #{unconditional_cse_style_mapper_forward.4} parent=1 // pred_fallthru
      _
    // Predicated region
    $region18: #{unconditional_cse_style_mapper_forward.4} parent=1 // pred_check
      _
    $region19: #{unconditional_cse_style_mapper_forward.4} parent=1 // pred_check_branch
      %85 = sbr.rel (0) target = $region21
    $region20: #{unconditional_cse_style_mapper_forward.4} parent=1 // pred_region
      %s87 = ssub.s32 16, 16
      %88 = vsyncadd [#allocation9], %s87
      %s90 = sshll.u32 [#allocation10], 4
      %s91 = int_to_ptr.vmem [resolvable:$true] %s90
      %93 = dma.hbm_to_vmem [thread:$0]  %s4, 16, %s91, [#allocation9]
    $region21: #{unconditional_cse_style_mapper_forward.4} parent=1 // pred_fallthru
      _
    // Predicated region
    $region22: #{unconditional_cse_style_mapper_forward.4} parent=1 // pred_check
      _
    $region23: #{unconditional_cse_style_mapper_forward.4} parent=1 // pred_check_branch
      %95 = sbr.rel (0) target = $region25
    $region24: #{unconditional_cse_style_mapper_forward.4} parent=1 // pred_region
      %s97 = ssub.s32 256, 256
      %98 = vsyncadd [#allocation12], %s97
      %s99 = sshll.u32 [#allocation11], 4
      %s100 = int_to_ptr.vmem [resolvable:$true] %s99
      %105 = dma.hbm_to_vmem [thread:$0]  %s5, 256, %s100, [#allocation12], 64, 64, 4
    $region25: #{unconditional_cse_style_mapper_forward.4} parent=1 // pred_fallthru
      _
    // Predicated region
    $region26: #{unconditional_cse_style_mapper_forward.4} parent=1 // pred_check
      _
    $region27: #{unconditional_cse_style_mapper_forward.4} parent=1 // pred_check_branch
      %107 = sbr.rel (0) target = $region29
    $region28: #{unconditional_cse_style_mapper_forward.4} parent=1 // pred_region
      %s109 = ssub.s32 16, 16
      %110 = vsyncadd [#allocation12], %s109
      %s112 = sshll.u32 [#allocation13], 4
      %s113 = int_to_ptr.vmem [resolvable:$true] %s112
      %115 = dma.hbm_to_vmem [thread:$0]  %s6, 16, %s113, [#allocation12]
    $region29: #{unconditional_cse_style_mapper_forward.4} parent=1 // pred_fallthru
      _
    // Predicated region
    $region30: #{unconditional_cse_style_mapper_forward.4} parent=1 // pred_check
      _
    $region31: #{unconditional_cse_style_mapper_forward.4} parent=1 // pred_check_branch
      %117 = sbr.rel (0) target = $region33
    $region32: #{unconditional_cse_style_mapper_forward.4} parent=1 // pred_region
      %s119 = ssub.s32 256, 256
      %120 = vsyncadd [#allocation15], %s119
      %s121 = sshll.u32 [#allocation14], 4
      %s122 = int_to_ptr.vmem [resolvable:$true] %s121
      %127 = dma.hbm_to_vmem [thread:$0]  %s7, 256, %s122, [#allocation15], 64, 64, 4
    $region33: #{unconditional_cse_style_mapper_forward.4} parent=1 // pred_fallthru
      _
    // Predicated region
    $region34: #{unconditional_cse_style_mapper_forward.4} parent=1 // pred_check
      _
    $region35: #{unconditional_cse_style_mapper_forward.4} parent=1 // pred_check_branch
      %129 = sbr.rel (0) target = $region37
    $region36: #{unconditional_cse_style_mapper_forward.4} parent=1 // pred_region
      %s131 = ssub.s32 16, 16
      %132 = vsyncadd [#allocation15], %s131
      %s134 = sshll.u32 [#allocation16], 4
      %s135 = int_to_ptr.vmem [resolvable:$true] %s134
      %137 = dma.hbm_to_vmem [thread:$0]  %s8, 16, %s135, [#allocation15]
    $region37: #{unconditional_cse_style_mapper_forward.4} parent=1 // pred_fallthru
      _
    // Predicated region
    $region38: #{unconditional_cse_style_mapper_forward.4} parent=1 // pred_check
      _
    $region39: #{unconditional_cse_style_mapper_forward.4} parent=1 // pred_check_branch
      %139 = sbr.rel (0) target = $region41
    $region40: #{unconditional_cse_style_mapper_forward.4} parent=1 // pred_region
      %s141 = ssub.s32 256, 256
      %142 = vsyncadd [#allocation18], %s141
      %s143 = sshll.u32 [#allocation17], 4
      %s144 = int_to_ptr.vmem [resolvable:$true] %s143
      %149 = dma.hbm_to_vmem [thread:$0]  %s9, 256, %s144, [#allocation18], 64, 64, 4
    $region41: #{unconditional_cse_style_mapper_forward.4} parent=1 // pred_fallthru
      _
    // Predicated region
    $region42: #{unconditional_cse_style_mapper_forward.4} parent=1 // pred_check
      _
    $region43: #{unconditional_cse_style_mapper_forward.4} parent=1 // pred_check_branch
      %151 = sbr.rel (0) target = $region45
    $region44: #{unconditional_cse_style_mapper_forward.4} parent=1 // pred_region
      %s153 = ssub.s32 16, 16
      %154 = vsyncadd [#allocation18], %s153
      %s156 = sshll.u32 [#allocation19], 4
      %s157 = int_to_ptr.vmem [resolvable:$true] %s156
      %159 = dma.hbm_to_vmem [thread:$0]  %s10, 16, %s157, [#allocation18]
    $region45: #{unconditional_cse_style_mapper_forward.4} parent=1 // pred_fallthru
      _
    // Predicated region
    $region46: #{unconditional_cse_style_mapper_forward.4} parent=1 // pred_check
      _
    $region47: #{unconditional_cse_style_mapper_forward.4} parent=1 // pred_check_branch
      %161 = sbr.rel (0) target = $region49
    $region48: #{unconditional_cse_style_mapper_forward.4} parent=1 // pred_region
      %s163 = ssub.s32 256, 256
      %164 = vsyncadd [#allocation21], %s163
      %s165 = sshll.u32 [#allocation20], 4
      %s166 = int_to_ptr.vmem [resolvable:$true] %s165
      %171 = dma.hbm_to_vmem [thread:$0]  %s11, 256, %s166, [#allocation21], 64, 64, 4
    $region49: #{unconditional_cse_style_mapper_forward.4} parent=1 // pred_fallthru
      _
    // Predicated region
    $region50: #{unconditional_cse_style_mapper_forward.4} parent=1 // pred_check
      _
    $region51: #{unconditional_cse_style_mapper_forward.4} parent=1 // pred_check_branch
      %173 = sbr.rel (0) target = $region53
    $region52: #{unconditional_cse_style_mapper_forward.4} parent=1 // pred_region
      %s175 = ssub.s32 16, 16
      %176 = vsyncadd [#allocation21], %s175
      %s178 = sshll.u32 [#allocation22], 4
      %s179 = int_to_ptr.vmem [resolvable:$true] %s178
      %181 = dma.hbm_to_vmem [thread:$0]  %s12, 16, %s179, [#allocation21]
    $region53: #{unconditional_cse_style_mapper_forward.4} parent=1 // pred_fallthru
      _
    // Predicated region
    $region54: #{unconditional_cse_style_mapper_forward.4} parent=1 // pred_check
      _
    $region55: #{unconditional_cse_style_mapper_forward.4} parent=1 // pred_check_branch
      %183 = sbr.rel (0) target = $region57
    $region56: #{unconditional_cse_style_mapper_forward.4} parent=1 // pred_region
      %s185 = ssub.s32 256, 256
      %186 = vsyncadd [#allocation24], %s185
      %s187 = sshll.u32 [#allocation23], 4
      %s188 = int_to_ptr.vmem [resolvable:$true] %s187
      %193 = dma.hbm_to_vmem [thread:$0]  %s13, 256, %s188, [#allocation24], 64, 64, 4
    $region57: #{unconditional_cse_style_mapper_forward.4} parent=1 // pred_fallthru
      _
    // Predicated region
    $region58: #{unconditional_cse_style_mapper_forward.4} parent=1 // pred_check
      _
    $region59: #{unconditional_cse_style_mapper_forward.4} parent=1 // pred_check_branch
      %195 = sbr.rel (0) target = $region61
    $region60: #{unconditional_cse_style_mapper_forward.4} parent=1 // pred_region
      %s197 = ssub.s32 16, 16
      %198 = vsyncadd [#allocation24], %s197
      %s200 = sshll.u32 [#allocation25], 4
      %s201 = int_to_ptr.vmem [resolvable:$true] %s200
      %203 = dma.hbm_to_vmem [thread:$0]  %s14, 16, %s201, [#allocation24]
    $region61: #{unconditional_cse_style_mapper_forward.4} parent=1 // pred_fallthru
      _
    // Predicated region
    $region62: #{unconditional_cse_style_mapper_forward.4} parent=1 // pred_check
      _
    $region63: #{unconditional_cse_style_mapper_forward.4} parent=1 // pred_check_branch
      %205 = sbr.rel (0) target = $region65
    $region64: #{unconditional_cse_style_mapper_forward.4} parent=1 // pred_region
      %s207 = ssub.s32 256, 256
      %208 = vsyncadd [#allocation27], %s207
      %s209 = sshll.u32 [#allocation26], 4
      %s210 = int_to_ptr.vmem [resolvable:$true] %s209
      %215 = dma.hbm_to_vmem [thread:$0]  %s15, 256, %s210, [#allocation27], 64, 64, 4
    $region65: #{unconditional_cse_style_mapper_forward.4} parent=1 // pred_fallthru
      _
    // Predicated region
    $region66: #{unconditional_cse_style_mapper_forward.4} parent=1 // pred_check
      _
    $region67: #{unconditional_cse_style_mapper_forward.4} parent=1 // pred_check_branch
      %217 = sbr.rel (0) target = $region69
    $region68: #{unconditional_cse_style_mapper_forward.4} parent=1 // pred_region
      %s219 = ssub.s32 16, 16
      %220 = vsyncadd [#allocation27], %s219
      %s222 = sshll.u32 [#allocation28], 4
      %s223 = int_to_ptr.vmem [resolvable:$true] %s222
      %225 = dma.hbm_to_vmem [thread:$0]  %s16, 16, %s223, [#allocation27]
    $region69: #{unconditional_cse_style_mapper_forward.4} parent=1 // pred_fallthru
      _
    // Predicated region
    $region70: #{unconditional_cse_style_mapper_forward.4} parent=1 // pred_check
      _
    $region71: #{unconditional_cse_style_mapper_forward.4} parent=1 // pred_check_branch
      %227 = sbr.rel (0) target = $region73
    $region72: #{unconditional_cse_style_mapper_forward.4} parent=1 // pred_region
      %s229 = ssub.s32 256, 256
      %230 = vsyncadd [#allocation30], %s229
      %s231 = sshll.u32 [#allocation29], 4
      %s232 = int_to_ptr.vmem [resolvable:$true] %s231
      %237 = dma.hbm_to_vmem [thread:$0]  %s17, 256, %s232, [#allocation30], 64, 64, 4
    $region73: #{unconditional_cse_style_mapper_forward.4} parent=1 // pred_fallthru
      _
    // Predicated region
    $region74: #{unconditional_cse_style_mapper_forward.4} parent=1 // pred_check
      _
    $region75: #{unconditional_cse_style_mapper_forward.4} parent=1 // pred_check_branch
      %239 = sbr.rel (0) target = $region77
    $region76: #{unconditional_cse_style_mapper_forward.4} parent=1 // pred_region
      %s241 = ssub.s32 16, 16
      %242 = vsyncadd [#allocation30], %s241
      %s244 = sshll.u32 [#allocation31], 4
      %s245 = int_to_ptr.vmem [resolvable:$true] %s244
      %247 = dma.hbm_to_vmem [thread:$0]  %s18, 16, %s245, [#allocation30]
    $region77: #{unconditional_cse_style_mapper_forward.4} parent=1 // pred_fallthru
      _
    // Predicated region
    $region78: #{unconditional_cse_style_mapper_forward.4} parent=1 // pred_check
      _
    $region79: #{unconditional_cse_style_mapper_forward.4} parent=1 // pred_check_branch
      %249 = sbr.rel (0) target = $region81
    $region80: #{unconditional_cse_style_mapper_forward.4} parent=1 // pred_region
      %s251 = ssub.s32 256, 256
      %252 = vsyncadd [#allocation33], %s251
      %s253 = sshll.u32 [#allocation32], 4
      %s254 = int_to_ptr.vmem [resolvable:$true] %s253
      %259 = dma.hbm_to_vmem [thread:$0]  %s19, 256, %s254, [#allocation33], 64, 64, 4
    $region81: #{unconditional_cse_style_mapper_forward.4} parent=1 // pred_fallthru
      _
    // Predicated region
    $region82: #{unconditional_cse_style_mapper_forward.4} parent=1 // pred_check
      _
    $region83: #{unconditional_cse_style_mapper_forward.4} parent=1 // pred_check_branch
      %261 = sbr.rel (0) target = $region85
    $region84: #{unconditional_cse_style_mapper_forward.4} parent=1 // pred_region
      %s263 = ssub.s32 16, 16
      %264 = vsyncadd [#allocation33], %s263
      %s266 = sshll.u32 [#allocation34], 4
      %s267 = int_to_ptr.vmem [resolvable:$true] %s266
      %269 = dma.hbm_to_vmem [thread:$0]  %s20, 16, %s267, [#allocation33]
    $region85: #{unconditional_cse_style_mapper_forward.4} parent=1 // pred_fallthru
      _
    // Predicated region
    $region86: #{unconditional_cse_style_mapper_forward.4} parent=1 // pred_check
      _
    $region87: #{unconditional_cse_style_mapper_forward.4} parent=1 // pred_check_branch
      %271 = sbr.rel (0) target = $region89
    $region88: #{unconditional_cse_style_mapper_forward.4} parent=1 // pred_region
      %272 = dma.done [#allocation3], 512
    $region89: #{unconditional_cse_style_mapper_forward.4} parent=1 // pred_fallthru
      _
    // Predicated region
    $region90: #{unconditional_cse_style_mapper_forward.4} parent=1 // pred_check
      _
    $region91: #{unconditional_cse_style_mapper_forward.4} parent=1 // pred_check_branch
      %274 = sbr.rel (0) target = $region93
    $region92: #{unconditional_cse_style_mapper_forward.4} parent=1 // pred_region
      %275 = dma.done [#allocation6], 128
    $region93: #{unconditional_cse_style_mapper_forward.4} parent=1 // pred_fallthru
      _
    // Predicated region
    $region94: #{unconditional_cse_style_mapper_forward.4} parent=1 // pred_check
      _
    $region95: #{unconditional_cse_style_mapper_forward.4} parent=1 // pred_check_branch
      %277 = sbr.rel (0) target = $region97
    $region96: #{unconditional_cse_style_mapper_forward.4} parent=1 // pred_region
      %278 = dma.done [#allocation6], 16
    $region97: #{unconditional_cse_style_mapper_forward.4} parent=1 // pred_fallthru
      _
    // Predicated region
    $region98: #{unconditional_cse_style_mapper_forward.4} parent=1 // pred_check
      _
    $region99: #{unconditional_cse_style_mapper_forward.4} parent=1 // pred_check_branch
      %280 = sbr.rel (0) target = $region101
    $region100: #{unconditional_cse_style_mapper_forward.4} parent=1 // pred_region
      %281 = dma.done [#allocation9], 256
    $region101: #{unconditional_cse_style_mapper_forward.4} parent=1 // pred_fallthru
      _
    // Predicated region
    $region102: #{unconditional_cse_style_mapper_forward.4} parent=1 // pred_check
      _
    $region103: #{unconditional_cse_style_mapper_forward.4} parent=1 // pred_check_branch
      %283 = sbr.rel (0) target = $region105
    $region104: #{unconditional_cse_style_mapper_forward.4} parent=1 // pred_region
      %284 = dma.done [#allocation9], 16
    $region105: #{unconditional_cse_style_mapper_forward.4} parent=1 // pred_fallthru
      _
    // Predicated region
    $region106: #{unconditional_cse_style_mapper_forward.4} parent=1 // pred_check
      _
    $region107: #{unconditional_cse_style_mapper_forward.4} parent=1 // pred_check_branch
      %286 = sbr.rel (0) target = $region109
    $region108: #{unconditional_cse_style_mapper_forward.4} parent=1 // pred_region
      %287 = dma.done [#allocation12], 256
    $region109: #{unconditional_cse_style_mapper_forward.4} parent=1 // pred_fallthru
      _
    // Predicated region
    $region110: #{unconditional_cse_style_mapper_forward.4} parent=1 // pred_check
      _
    $region111: #{unconditional_cse_style_mapper_forward.4} parent=1 // pred_check_branch
      %289 = sbr.rel (0) target = $region113
    $region112: #{unconditional_cse_style_mapper_forward.4} parent=1 // pred_region
      %290 = dma.done [#allocation12], 16
    $region113: #{unconditional_cse_style_mapper_forward.4} parent=1 // pred_fallthru
      _
    // Predicated region
    $region114: #{unconditional_cse_style_mapper_forward.4} parent=1 // pred_check
      _
    $region115: #{unconditional_cse_style_mapper_forward.4} parent=1 // pred_check_branch
      %292 = sbr.rel (0) target = $region117
    $region116: #{unconditional_cse_style_mapper_forward.4} parent=1 // pred_region
      %293 = dma.done [#allocation15], 256
    $region117: #{unconditional_cse_style_mapper_forward.4} parent=1 // pred_fallthru
      _
    // Predicated region
    $region118: #{unconditional_cse_style_mapper_forward.4} parent=1 // pred_check
      _
    $region119: #{unconditional_cse_style_mapper_forward.4} parent=1 // pred_check_branch
      %295 = sbr.rel (0) target = $region121
    $region120: #{unconditional_cse_style_mapper_forward.4} parent=1 // pred_region
      %296 = dma.done [#allocation15], 16
    $region121: #{unconditional_cse_style_mapper_forward.4} parent=1 // pred_fallthru
      _
    // Predicated region
    $region122: #{unconditional_cse_style_mapper_forward.4} parent=1 // pred_check
      _
    $region123: #{unconditional_cse_style_mapper_forward.4} parent=1 // pred_check_branch
      %298 = sbr.rel (0) target = $region125
    $region124: #{unconditional_cse_style_mapper_forward.4} parent=1 // pred_region
      %299 = dma.done [#allocation18], 256
    $region125: #{unconditional_cse_style_mapper_forward.4} parent=1 // pred_fallthru
      _
    // Predicated region
    $region126: #{unconditional_cse_style_mapper_forward.4} parent=1 // pred_check
      _
    $region127: #{unconditional_cse_style_mapper_forward.4} parent=1 // pred_check_branch
      %301 = sbr.rel (0) target = $region129
    $region128: #{unconditional_cse_style_mapper_forward.4} parent=1 // pred_region
      %302 = dma.done [#allocation18], 16
    $region129: #{unconditional_cse_style_mapper_forward.4} parent=1 // pred_fallthru
      _
    // Predicated region
    $region130: #{unconditional_cse_style_mapper_forward.4} parent=1 // pred_check
      _
    $region131: #{unconditional_cse_style_mapper_forward.4} parent=1 // pred_check_branch
      %304 = sbr.rel (0) target = $region133
    $region132: #{unconditional_cse_style_mapper_forward.4} parent=1 // pred_region
      %305 = dma.done [#allocation21], 256
    $region133: #{unconditional_cse_style_mapper_forward.4} parent=1 // pred_fallthru
      _
    // Predicated region
    $region134: #{unconditional_cse_style_mapper_forward.4} parent=1 // pred_check
      _
    $region135: #{unconditional_cse_style_mapper_forward.4} parent=1 // pred_check_branch
      %307 = sbr.rel (0) target = $region137
    $region136: #{unconditional_cse_style_mapper_forward.4} parent=1 // pred_region
      %308 = dma.done [#allocation21], 16
    $region137: #{unconditional_cse_style_mapper_forward.4} parent=1 // pred_fallthru
      _
    // Predicated region
    $region138: #{unconditional_cse_style_mapper_forward.4} parent=1 // pred_check
      _
    $region139: #{unconditional_cse_style_mapper_forward.4} parent=1 // pred_check_branch
      %310 = sbr.rel (0) target = $region141
    $region140: #{unconditional_cse_style_mapper_forward.4} parent=1 // pred_region
      %311 = dma.done [#allocation24], 256
    $region141: #{unconditional_cse_style_mapper_forward.4} parent=1 // pred_fallthru
      _
    // Predicated region
    $region142: #{unconditional_cse_style_mapper_forward.4} parent=1 // pred_check
      _
    $region143: #{unconditional_cse_style_mapper_forward.4} parent=1 // pred_check_branch
      %313 = sbr.rel (0) target = $region145
    $region144: #{unconditional_cse_style_mapper_forward.4} parent=1 // pred_region
      %314 = dma.done [#allocation24], 16
    $region145: #{unconditional_cse_style_mapper_forward.4} parent=1 // pred_fallthru
      _
    // Predicated region
    $region146: #{unconditional_cse_style_mapper_forward.4} parent=1 // pred_check
      _
    $region147: #{unconditional_cse_style_mapper_forward.4} parent=1 // pred_check_branch
      %316 = sbr.rel (0) target = $region149
    $region148: #{unconditional_cse_style_mapper_forward.4} parent=1 // pred_region
      %317 = dma.done [#allocation27], 256
    $region149: #{unconditional_cse_style_mapper_forward.4} parent=1 // pred_fallthru
      _
    // Predicated region
    $region150: #{unconditional_cse_style_mapper_forward.4} parent=1 // pred_check
      _
    $region151: #{unconditional_cse_style_mapper_forward.4} parent=1 // pred_check_branch
      %319 = sbr.rel (0) target = $region153
    $region152: #{unconditional_cse_style_mapper_forward.4} parent=1 // pred_region
      %320 = dma.done [#allocation27], 16
    $region153: #{unconditional_cse_style_mapper_forward.4} parent=1 // pred_fallthru
      _
    // Predicated region
    $region154: #{unconditional_cse_style_mapper_forward.4} parent=1 // pred_check
      _
    $region155: #{unconditional_cse_style_mapper_forward.4} parent=1 // pred_check_branch
      %322 = sbr.rel (0) target = $region157
    $region156: #{unconditional_cse_style_mapper_forward.4} parent=1 // pred_region
      %323 = dma.done [#allocation30], 256
    $region157: #{unconditional_cse_style_mapper_forward.4} parent=1 // pred_fallthru
      _
    // Predicated region
    $region158: #{unconditional_cse_style_mapper_forward.4} parent=1 // pred_check
      _
    $region159: #{unconditional_cse_style_mapper_forward.4} parent=1 // pred_check_branch
      %325 = sbr.rel (0) target = $region161
    $region160: #{unconditional_cse_style_mapper_forward.4} parent=1 // pred_region
      %326 = dma.done [#allocation30], 16
    $region161: #{unconditional_cse_style_mapper_forward.4} parent=1 // pred_fallthru
      _
    // Predicated region
    $region162: #{unconditional_cse_style_mapper_forward.4} parent=1 // pred_check
      _
    $region163: #{unconditional_cse_style_mapper_forward.4} parent=1 // pred_check_branch
      %328 = sbr.rel (0) target = $region165
    $region164: #{unconditional_cse_style_mapper_forward.4} parent=1 // pred_region
      %329 = dma.done [#allocation33], 256
    $region165: #{unconditional_cse_style_mapper_forward.4} parent=1 // pred_fallthru
      _
    // Predicated region
    $region166: #{unconditional_cse_style_mapper_forward.4} parent=1 // pred_check
      _
    $region167: #{unconditional_cse_style_mapper_forward.4} parent=1 // pred_check_branch
      %331 = sbr.rel (0) target = $region169
    $region168: #{unconditional_cse_style_mapper_forward.4} parent=1 // pred_region
      %332 = dma.done [#allocation33], 16
    $region169: #{unconditional_cse_style_mapper_forward.4} parent=1 // pred_fallthru
      _
    %v334 = vld [vmem:[#allocation2] sm:$0xf]
    %v335 = vld [vmem:[#allocation2 + $0x4] sm:$0xf]
    %v336 = vld [vmem:[#allocation2 + $0x8] sm:$0xf]
    %v337 = vld [vmem:[#allocation2 + $0xc] sm:$0xf]
    %v338 = vld [vmem:[#allocation2 + $0x10] sm:$0xf]
    %v339 = vld [vmem:[#allocation2 + $0x14] sm:$0xf]
    %v340 = vld [vmem:[#allocation2 + $0x18] sm:$0xf]
    %v341 = vld [vmem:[#allocation2 + $0x1c] sm:$0xf]
    %v342 = vld [vmem:[#allocation5] sm:$0xf]
    %v343 = vld [vmem:[#allocation5 + $0x4] sm:$0xf]
    %v344 = vld [vmem:[#allocation7] sm:$0x1]
    %v346 = vlaneseq
    %v347 = vshrl.u32 %v346, 7
    %v348 = vsub.s32 0, %v347
    %v349 = vrot.slane %v344, %v348
    %v359 = vunpack.c.l.b16 %v334
    %v360 = vunpack.c.l.b16 %v335
    %v361 = vunpack.c.l.b16 %v336
    %v362 = vunpack.c.l.b16 %v337
    %v363 = vunpack.c.l.b16 %v338
    %v364 = vunpack.c.l.b16 %v339
    %v365 = vunpack.c.l.b16 %v340
    %v366 = vunpack.c.l.b16 %v341
    %v367 = vpack.c.b16 %v360, %v359
    %v368 = vpack.c.b16 %v362, %v361
    %v369 = vpack.c.b16 %v364, %v363
    %v370 = vpack.c.b16 %v366, %v365
    %v373 = vunpack.c.l.b16 %v342
    %v374 = vunpack.c.l.b16 %v343
    %v375 = vpack.c.b16 %v374, %v373
    %vm377 = vcmask 130048
    %v379 = vsel %vm377, %v367, 0
    %v382 = vsel %vm377, %v368, 0
    %v385 = vsel %vm377, %v369, 0
    %v388 = vsel %vm377, %v370, 0
    %390 = vmatprep.subr.bf16.mxu0 0
    %391 = vmatpush1.bf16.msra.mxu0 %v375
    %392 = vmatprep.subr.bf16.mxu0 0
    %393 = vmatpush1.bf16.msra.mxu0 0
    %394 = vmatprep.subr.bf16.mxu0 0
    %395 = vmatpush1.bf16.msra.mxu0 0
    %396 = vmatprep.subr.bf16.mxu0 0
    %397 = vmatpush1.bf16.msra.mxu0 0
    %398 = vmatprep.subr.bf16.mxu0 0
    %399 = vmatpush1.bf16.msra.mxu0 0
    %400 = vmatprep.subr.bf16.mxu0 0
    %401 = vmatpush1.bf16.msra.mxu0 0
    %402 = vmatprep.subr.bf16.mxu0 0
    %403 = vmatpush1.bf16.msra.mxu0 0
    %404 = vmatprep.subr.bf16.mxu0 0
    %405 = vmatpush1.bf16.msra.mxu0 0
    %406 = vmatprep.subr.bf16.mxu0 0
    %407 = vmatpush1.bf16.msra.mxu0 0
    %408 = vmatprep.subr.bf16.mxu0 0
    %409 = vmatpush1.bf16.msra.mxu0 0
    %410 = vmatprep.subr.bf16.mxu0 0
    %411 = vmatpush1.bf16.msra.mxu0 0
    %412 = vmatprep.subr.bf16.mxu0 0
    %413 = vmatpush1.bf16.msra.mxu0 0
    %414 = vmatprep.subr.bf16.mxu0 0
    %415 = vmatpush1.bf16.msra.mxu0 0
    %416 = vmatprep.subr.bf16.mxu0 0
    %417 = vmatpush1.bf16.msra.mxu0 0
    %418 = vmatprep.subr.bf16.mxu0 0
    %419 = vmatpush1.bf16.msra.mxu0 0
    %420 = vmatprep.subr.bf16.mxu0 0
    %421 = vmatpush1.bf16.msra.mxu0 0
    %422 = vmatprep.mubr.bf16.mxu0 0
    %423 = vmatmul.mubr.bf16.gmra.mrb[0].mxu0 %v379
    %v424 = vpop.f32.mrb[0].mxu0
    %v425 = vadd.f32 %v349, %v424
    %v426 = vpop.f32.mrb[0].mxu0
    %v427 = vpop.f32.mrb[0].mxu0
    %v428 = vadd.f32 %v349, %v427
    %v429 = vpop.f32.mrb[0].mxu0
    %430 = vmatprep.mubr.bf16.mxu0 0
    %431 = vmatmul.mubr.bf16.gmra.mrb[0].mxu0 %v382
    %v432 = vpop.f32.mrb[0].mxu0
    %v433 = vadd.f32 %v349, %v432
    %v434 = vpop.f32.mrb[0].mxu0
    %v435 = vpop.f32.mrb[0].mxu0
    %v436 = vadd.f32 %v349, %v435
    %v437 = vpop.f32.mrb[0].mxu0
    %438 = vmatprep.mubr.bf16.mxu0 0
    %439 = vmatmul.mubr.bf16.gmra.mrb[0].mxu0 %v385
    %v440 = vpop.f32.mrb[0].mxu0
    %v441 = vadd.f32 %v349, %v440
    %v442 = vpop.f32.mrb[0].mxu0
    %v443 = vpop.f32.mrb[0].mxu0
    %v444 = vadd.f32 %v349, %v443
    %v445 = vpop.f32.mrb[0].mxu0
    %446 = vmatprep.mubr.bf16.mxu0 0
    %447 = vmatmul.mubr.bf16.gmra.mrb[0].mxu0 %v388
    %v448 = vpop.f32.mrb[0].mxu0
    %v449 = vadd.f32 %v349, %v448
    %v450 = vpop.f32.mrb[0].mxu0
    %v451 = vpop.f32.mrb[0].mxu0
    %v452 = vadd.f32 %v349, %v451
    %v453 = vpop.f32.mrb[0].mxu0
    %454 = vdwg.mxu0
    %v455 = vmul.f32 %v425, 0.2
    %v456 = vmul.f32 %v428, 0.2
    %v457 = vmul.f32 %v433, 0.2
    %v458 = vmul.f32 %v436, 0.2
    %v459 = vmul.f32 %v441, 0.2
    %v460 = vmul.f32 %v444, 0.2
    %v461 = vmul.f32 %v449, 0.2
    %v462 = vmul.f32 %v452, 0.2
    %v463 = vmax.f32 %v425, %v455
    %v464 = vmax.f32 %v428, %v456
    %v465 = vmax.f32 %v433, %v457
    %v466 = vmax.f32 %v436, %v458
    %v467 = vmax.f32 %v441, %v459
    %v468 = vmax.f32 %v444, %v460
    %v469 = vmax.f32 %v449, %v461
    %v470 = vmax.f32 %v452, %v462
    %v471 = vmul.f32 %v463, 1.4142135
    %v472 = vmul.f32 %v464, 1.4142135
    %v473 = vmul.f32 %v465, 1.4142135
    %v474 = vmul.f32 %v466, 1.4142135
    %v475 = vmul.f32 %v467, 1.4142135
    %v476 = vmul.f32 %v468, 1.4142135
    %v477 = vmul.f32 %v469, 1.4142135
    %v478 = vmul.f32 %v470, 1.4142135
    %v479 = vld [vmem:[#allocation8] sm:$0xf]
    %v480 = vld [vmem:[#allocation8 + $0x4] sm:$0xf]
    %v481 = vld [vmem:[#allocation8 + $0x8] sm:$0xf]
    %v482 = vld [vmem:[#allocation8 + $0xc] sm:$0xf]
    %v483 = vpack.c.bf16 %v472, %v471
    %v484 = vpack.c.bf16 %v474, %v473
    %v485 = vpack.c.bf16 %v476, %v475
    %v486 = vpack.c.bf16 %v478, %v477
    %v487 = vld [vmem:[#allocation10] sm:$0x1]
    %v489 = vlaneseq
    %v490 = vshrl.u32 %v489, 7
    %v491 = vsub.s32 0, %v490
    %v492 = vrot.slane %v487, %v491
    %v498 = vunpack.c.l.b16 %v479
    %v499 = vunpack.c.l.b16 %v480
    %v500 = vunpack.c.l.b16 %v481
    %v501 = vunpack.c.l.b16 %v482
    %v502 = vpack.c.b16 %v499, %v498
    %v503 = vpack.c.b16 %v501, %v500
    %vm506 = vcmask 261120
    %v508 = vsel %vm506, %v483, 0
    %v511 = vsel %vm506, %v484, 0
    %v514 = vsel %vm506, %v485, 0
    %v517 = vsel %vm506, %v486, 0
    %519 = vmatprep.subr.bf16.mxu0 0
    %520 = vmatpush1.bf16.msra.mxu0 %v502
    %521 = vmatprep.subr.bf16.mxu0 0
    %522 = vmatpush1.bf16.msra.mxu0 %v503
    %523 = vmatprep.subr.bf16.mxu0 0
    %524 = vmatpush1.bf16.msra.mxu0 0
    %525 = vmatprep.subr.bf16.mxu0 0
    %526 = vmatpush1.bf16.msra.mxu0 0
    %527 = vmatprep.subr.bf16.mxu0 0
    %528 = vmatpush1.bf16.msra.mxu0 0
    %529 = vmatprep.subr.bf16.mxu0 0
    %530 = vmatpush1.bf16.msra.mxu0 0
    %531 = vmatprep.subr.bf16.mxu0 0
    %532 = vmatpush1.bf16.msra.mxu0 0
    %533 = vmatprep.subr.bf16.mxu0 0
    %534 = vmatpush1.bf16.msra.mxu0 0
    %535 = vmatprep.subr.bf16.mxu0 0
    %536 = vmatpush1.bf16.msra.mxu0 0
    %537 = vmatprep.subr.bf16.mxu0 0
    %538 = vmatpush1.bf16.msra.mxu0 0
    %539 = vmatprep.subr.bf16.mxu0 0
    %540 = vmatpush1.bf16.msra.mxu0 0
    %541 = vmatprep.subr.bf16.mxu0 0
    %542 = vmatpush1.bf16.msra.mxu0 0
    %543 = vmatprep.subr.bf16.mxu0 0
    %544 = vmatpush1.bf16.msra.mxu0 0
    %545 = vmatprep.subr.bf16.mxu0 0
    %546 = vmatpush1.bf16.msra.mxu0 0
    %547 = vmatprep.subr.bf16.mxu0 0
    %548 = vmatpush1.bf16.msra.mxu0 0
    %549 = vmatprep.subr.bf16.mxu0 0
    %550 = vmatpush1.bf16.msra.mxu0 0
    %551 = vmatprep.mubr.bf16.mxu0 0
    %552 = vmatmul.mubr.bf16.gmra.mrb[0].mxu0 %v508
    %v553 = vpop.f32.mrb[0].mxu0
    %v554 = vadd.f32 %v492, %v553
    %v555 = vpop.f32.mrb[0].mxu0
    %v556 = vpop.f32.mrb[0].mxu0
    %v557 = vadd.f32 %v492, %v556
    %v558 = vpop.f32.mrb[0].mxu0
    %559 = vmatprep.mubr.bf16.mxu0 0
    %560 = vmatmul.mubr.bf16.gmra.mrb[0].mxu0 %v511
    %v561 = vpop.f32.mrb[0].mxu0
    %v562 = vadd.f32 %v492, %v561
    %v563 = vpop.f32.mrb[0].mxu0
    %v564 = vpop.f32.mrb[0].mxu0
    %v565 = vadd.f32 %v492, %v564
    %v566 = vpop.f32.mrb[0].mxu0
    %567 = vmatprep.mubr.bf16.mxu0 0
    %568 = vmatmul.mubr.bf16.gmra.mrb[0].mxu0 %v514
    %v569 = vpop.f32.mrb[0].mxu0
    %v570 = vadd.f32 %v492, %v569
    %v571 = vpop.f32.mrb[0].mxu0
    %v572 = vpop.f32.mrb[0].mxu0
    %v573 = vadd.f32 %v492, %v572
    %v574 = vpop.f32.mrb[0].mxu0
    %575 = vmatprep.mubr.bf16.mxu0 0
    %576 = vmatmul.mubr.bf16.gmra.mrb[0].mxu0 %v517
    %v577 = vpop.f32.mrb[0].mxu0
    %v578 = vadd.f32 %v492, %v577
    %v579 = vpop.f32.mrb[0].mxu0
    %v580 = vpop.f32.mrb[0].mxu0
    %v581 = vadd.f32 %v492, %v580
    %v582 = vpop.f32.mrb[0].mxu0
    %583 = vdwg.mxu0
    %v584 = vmul.f32 %v554, 0.2
    %v585 = vmul.f32 %v557, 0.2
    %v586 = vmul.f32 %v562, 0.2
    %v587 = vmul.f32 %v565, 0.2
    %v588 = vmul.f32 %v570, 0.2
    %v589 = vmul.f32 %v573, 0.2
    %v590 = vmul.f32 %v578, 0.2
    %v591 = vmul.f32 %v581, 0.2
    %v592 = vmax.f32 %v554, %v584
    %v593 = vmax.f32 %v557, %v585
    %v594 = vmax.f32 %v562, %v586
    %v595 = vmax.f32 %v565, %v587
    %v596 = vmax.f32 %v570, %v588
    %v597 = vmax.f32 %v573, %v589
    %v598 = vmax.f32 %v578, %v590
    %v599 = vmax.f32 %v581, %v591
    %v600 = vmul.f32 %v592, 1.4142135
    %v601 = vmul.f32 %v593, 1.4142135
    %v602 = vmul.f32 %v594, 1.4142135
    %v603 = vmul.f32 %v595, 1.4142135
    %v604 = vmul.f32 %v596, 1.4142135
    %v605 = vmul.f32 %v597, 1.4142135
    %v606 = vmul.f32 %v598, 1.4142135
    %v607 = vmul.f32 %v599, 1.4142135
    %v608 = vld [vmem:[#allocation11] sm:$0xf]
    %v609 = vld [vmem:[#allocation11 + $0x4] sm:$0xf]
    %v610 = vld [vmem:[#allocation11 + $0x8] sm:$0xf]
    %v611 = vld [vmem:[#allocation11 + $0xc] sm:$0xf]
    %v612 = vpack.c.bf16 %v601, %v600
    %v613 = vpack.c.bf16 %v603, %v602
    %v614 = vpack.c.bf16 %v605, %v604
    %v615 = vpack.c.bf16 %v607, %v606
    %v616 = vld [vmem:[#allocation13] sm:$0x1]
    %v618 = vlaneseq
    %v619 = vshrl.u32 %v618, 7
    %v620 = vsub.s32 0, %v619
    %v621 = vrot.slane %v616, %v620
    %v627 = vunpack.c.l.b16 %v608
    %v628 = vunpack.c.l.b16 %v609
    %v629 = vunpack.c.l.b16 %v610
    %v630 = vunpack.c.l.b16 %v611
    %v631 = vpack.c.b16 %v628, %v627
    %v632 = vpack.c.b16 %v630, %v629
    %v636 = vsel %vm506, %v612, 0
    %v639 = vsel %vm506, %v613, 0
    %v642 = vsel %vm506, %v614, 0
    %v645 = vsel %vm506, %v615, 0
    %647 = vmatprep.subr.bf16.mxu0 0
    %648 = vmatpush1.bf16.msra.mxu0 %v631
    %649 = vmatprep.subr.bf16.mxu0 0
    %650 = vmatpush1.bf16.msra.mxu0 %v632
    %651 = vmatprep.subr.bf16.mxu0 0
    %652 = vmatpush1.bf16.msra.mxu0 0
    %653 = vmatprep.subr.bf16.mxu0 0
    %654 = vmatpush1.bf16.msra.mxu0 0
    %655 = vmatprep.subr.bf16.mxu0 0
    %656 = vmatpush1.bf16.msra.mxu0 0
    %657 = vmatprep.subr.bf16.mxu0 0
    %658 = vmatpush1.bf16.msra.mxu0 0
    %659 = vmatprep.subr.bf16.mxu0 0
    %660 = vmatpush1.bf16.msra.mxu0 0
    %661 = vmatprep.subr.bf16.mxu0 0
    %662 = vmatpush1.bf16.msra.mxu0 0
    %663 = vmatprep.subr.bf16.mxu0 0
    %664 = vmatpush1.bf16.msra.mxu0 0
    %665 = vmatprep.subr.bf16.mxu0 0
    %666 = vmatpush1.bf16.msra.mxu0 0
    %667 = vmatprep.subr.bf16.mxu0 0
    %668 = vmatpush1.bf16.msra.mxu0 0
    %669 = vmatprep.subr.bf16.mxu0 0
    %670 = vmatpush1.bf16.msra.mxu0 0
    %671 = vmatprep.subr.bf16.mxu0 0
    %672 = vmatpush1.bf16.msra.mxu0 0
    %673 = vmatprep.subr.bf16.mxu0 0
    %674 = vmatpush1.bf16.msra.mxu0 0
    %675 = vmatprep.subr.bf16.mxu0 0
    %676 = vmatpush1.bf16.msra.mxu0 0
    %677 = vmatprep.subr.bf16.mxu0 0
    %678 = vmatpush1.bf16.msra.mxu0 0
    %679 = vmatprep.mubr.bf16.mxu0 0
    %680 = vmatmul.mubr.bf16.gmra.mrb[0].mxu0 %v636
    %v681 = vpop.f32.mrb[0].mxu0
    %v682 = vadd.f32 %v621, %v681
    %v683 = vpop.f32.mrb[0].mxu0
    %v684 = vpop.f32.mrb[0].mxu0
    %v685 = vadd.f32 %v621, %v684
    %v686 = vpop.f32.mrb[0].mxu0
    %687 = vmatprep.mubr.bf16.mxu0 0
    %688 = vmatmul.mubr.bf16.gmra.mrb[0].mxu0 %v639
    %v689 = vpop.f32.mrb[0].mxu0
    %v690 = vadd.f32 %v621, %v689
    %v691 = vpop.f32.mrb[0].mxu0
    %v692 = vpop.f32.mrb[0].mxu0
    %v693 = vadd.f32 %v621, %v692
    %v694 = vpop.f32.mrb[0].mxu0
    %695 = vmatprep.mubr.bf16.mxu0 0
    %696 = vmatmul.mubr.bf16.gmra.mrb[0].mxu0 %v642
    %v697 = vpop.f32.mrb[0].mxu0
    %v698 = vadd.f32 %v621, %v697
    %v699 = vpop.f32.mrb[0].mxu0
    %v700 = vpop.f32.mrb[0].mxu0
    %v701 = vadd.f32 %v621, %v700
    %v702 = vpop.f32.mrb[0].mxu0
    %703 = vmatprep.mubr.bf16.mxu0 0
    %704 = vmatmul.mubr.bf16.gmra.mrb[0].mxu0 %v645
    %v705 = vpop.f32.mrb[0].mxu0
    %v706 = vadd.f32 %v621, %v705
    %v707 = vpop.f32.mrb[0].mxu0
    %v708 = vpop.f32.mrb[0].mxu0
    %v709 = vadd.f32 %v621, %v708
    %v710 = vpop.f32.mrb[0].mxu0
    %711 = vdwg.mxu0
    %v712 = vmul.f32 %v682, 0.2
    %v713 = vmul.f32 %v685, 0.2
    %v714 = vmul.f32 %v690, 0.2
    %v715 = vmul.f32 %v693, 0.2
    %v716 = vmul.f32 %v698, 0.2
    %v717 = vmul.f32 %v701, 0.2
    %v718 = vmul.f32 %v706, 0.2
    %v719 = vmul.f32 %v709, 0.2
    %v720 = vmax.f32 %v682, %v712
    %v721 = vmax.f32 %v685, %v713
    %v722 = vmax.f32 %v690, %v714
    %v723 = vmax.f32 %v693, %v715
    %v724 = vmax.f32 %v698, %v716
    %v725 = vmax.f32 %v701, %v717
    %v726 = vmax.f32 %v706, %v718
    %v727 = vmax.f32 %v709, %v719
    %v728 = vmul.f32 %v720, 1.4142135
    %v729 = vmul.f32 %v721, 1.4142135
    %v730 = vmul.f32 %v722, 1.4142135
    %v731 = vmul.f32 %v723, 1.4142135
    %v732 = vmul.f32 %v724, 1.4142135
    %v733 = vmul.f32 %v725, 1.4142135
    %v734 = vmul.f32 %v726, 1.4142135
    %v735 = vmul.f32 %v727, 1.4142135
    %v736 = vld [vmem:[#allocation26] sm:$0xf]
    %v737 = vld [vmem:[#allocation26 + $0x4] sm:$0xf]
    %v738 = vld [vmem:[#allocation26 + $0x8] sm:$0xf]
    %v739 = vld [vmem:[#allocation26 + $0xc] sm:$0xf]
    %v740 = vld [vmem:[#allocation28] sm:$0x1]
    %v742 = vlaneseq
    %v743 = vshrl.u32 %v742, 7
    %v744 = vsub.s32 0, %v743
    %v745 = vrot.slane %v740, %v744
    %v751 = vunpack.c.l.b16 %v736
    %v752 = vunpack.c.l.b16 %v737
    %v753 = vunpack.c.l.b16 %v738
    %v754 = vunpack.c.l.b16 %v739
    %v755 = vpack.c.b16 %v752, %v751
    %v756 = vpack.c.b16 %v754, %v753
    %759 = vmatprep.subr.bf16.mxu0 0
    %760 = vmatpush1.bf16.msra.mxu0 %v755
    %761 = vmatprep.subr.bf16.mxu0 0
    %762 = vmatpush1.bf16.msra.mxu0 %v756
    %763 = vmatprep.subr.bf16.mxu0 0
    %764 = vmatpush1.bf16.msra.mxu0 0
    %765 = vmatprep.subr.bf16.mxu0 0
    %766 = vmatpush1.bf16.msra.mxu0 0
    %767 = vmatprep.subr.bf16.mxu0 0
    %768 = vmatpush1.bf16.msra.mxu0 0
    %769 = vmatprep.subr.bf16.mxu0 0
    %770 = vmatpush1.bf16.msra.mxu0 0
    %771 = vmatprep.subr.bf16.mxu0 0
    %772 = vmatpush1.bf16.msra.mxu0 0
    %773 = vmatprep.subr.bf16.mxu0 0
    %774 = vmatpush1.bf16.msra.mxu0 0
    %775 = vmatprep.subr.bf16.mxu0 0
    %776 = vmatpush1.bf16.msra.mxu0 0
    %777 = vmatprep.subr.bf16.mxu0 0
    %778 = vmatpush1.bf16.msra.mxu0 0
    %779 = vmatprep.subr.bf16.mxu0 0
    %780 = vmatpush1.bf16.msra.mxu0 0
    %781 = vmatprep.subr.bf16.mxu0 0
    %782 = vmatpush1.bf16.msra.mxu0 0
    %783 = vmatprep.subr.bf16.mxu0 0
    %784 = vmatpush1.bf16.msra.mxu0 0
    %785 = vmatprep.subr.bf16.mxu0 0
    %786 = vmatpush1.bf16.msra.mxu0 0
    %787 = vmatprep.subr.bf16.mxu0 0
    %788 = vmatpush1.bf16.msra.mxu0 0
    %789 = vmatprep.subr.bf16.mxu0 0
    %790 = vmatpush1.bf16.msra.mxu0 0
    %791 = vmatprep.mubr.bf16.mxu0 0
    %792 = vmatmul.mubr.bf16.gmra.mrb[0].mxu0 %v508
    %v793 = vpop.f32.mrb[0].mxu0
    %v794 = vadd.f32 %v745, %v793
    %v795 = vpop.f32.mrb[0].mxu0
    %v796 = vpop.f32.mrb[0].mxu0
    %v797 = vadd.f32 %v745, %v796
    %v798 = vpop.f32.mrb[0].mxu0
    %799 = vmatprep.mubr.bf16.mxu0 0
    %800 = vmatmul.mubr.bf16.gmra.mrb[0].mxu0 %v511
    %v801 = vpop.f32.mrb[0].mxu0
    %v802 = vadd.f32 %v745, %v801
    %v803 = vpop.f32.mrb[0].mxu0
    %v804 = vpop.f32.mrb[0].mxu0
    %v805 = vadd.f32 %v745, %v804
    %v806 = vpop.f32.mrb[0].mxu0
    %807 = vmatprep.mubr.bf16.mxu0 0
    %808 = vmatmul.mubr.bf16.gmra.mrb[0].mxu0 %v514
    %v809 = vpop.f32.mrb[0].mxu0
    %v810 = vadd.f32 %v745, %v809
    %v811 = vpop.f32.mrb[0].mxu0
    %v812 = vpop.f32.mrb[0].mxu0
    %v813 = vadd.f32 %v745, %v812
    %v814 = vpop.f32.mrb[0].mxu0
    %815 = vmatprep.mubr.bf16.mxu0 0
    %816 = vmatmul.mubr.bf16.gmra.mrb[0].mxu0 %v517
    %v817 = vpop.f32.mrb[0].mxu0
    %v818 = vadd.f32 %v745, %v817
    %v819 = vpop.f32.mrb[0].mxu0
    %v820 = vpop.f32.mrb[0].mxu0
    %v821 = vadd.f32 %v745, %v820
    %v822 = vpop.f32.mrb[0].mxu0
    %823 = vdwg.mxu0
    %v824 = vadd.f32 %v728, %v794
    %v825 = vadd.f32 %v729, %v797
    %v826 = vadd.f32 %v730, %v802
    %v827 = vadd.f32 %v731, %v805
    %v828 = vadd.f32 %v732, %v810
    %v829 = vadd.f32 %v733, %v813
    %v830 = vadd.f32 %v734, %v818
    %v831 = vadd.f32 %v735, %v821
    %v832 = vmul.f32 %v824, 0.70710677
    %v833 = vmul.f32 %v825, 0.70710677
    %v834 = vmul.f32 %v826, 0.70710677
    %v835 = vmul.f32 %v827, 0.70710677
    %v836 = vmul.f32 %v828, 0.70710677
    %v837 = vmul.f32 %v829, 0.70710677
    %v838 = vmul.f32 %v830, 0.70710677
    %v839 = vmul.f32 %v831, 0.70710677
    %v840 = vld [vmem:[#allocation14] sm:$0xf]
    %v841 = vld [vmem:[#allocation14 + $0x4] sm:$0xf]
    %v842 = vld [vmem:[#allocation14 + $0x8] sm:$0xf]
    %v843 = vld [vmem:[#allocation14 + $0xc] sm:$0xf]
    %v844 = vpack.c.bf16 %v833, %v832
    %v845 = vpack.c.bf16 %v835, %v834
    %v846 = vpack.c.bf16 %v837, %v836
    %v847 = vpack.c.bf16 %v839, %v838
    %v848 = vld [vmem:[#allocation16] sm:$0x1]
    %v850 = vlaneseq
    %v851 = vshrl.u32 %v850, 7
    %v852 = vsub.s32 0, %v851
    %v853 = vrot.slane %v848, %v852
    %v859 = vunpack.c.l.b16 %v840
    %v860 = vunpack.c.l.b16 %v841
    %v861 = vunpack.c.l.b16 %v842
    %v862 = vunpack.c.l.b16 %v843
    %v863 = vpack.c.b16 %v860, %v859
    %v864 = vpack.c.b16 %v862, %v861
    %v868 = vsel %vm506, %v844, 0
    %v871 = vsel %vm506, %v845, 0
    %v874 = vsel %vm506, %v846, 0
    %v877 = vsel %vm506, %v847, 0
    %879 = vmatprep.subr.bf16.mxu0 0
    %880 = vmatpush1.bf16.msra.mxu0 %v863
    %881 = vmatprep.subr.bf16.mxu0 0
    %882 = vmatpush1.bf16.msra.mxu0 %v864
    %883 = vmatprep.subr.bf16.mxu0 0
    %884 = vmatpush1.bf16.msra.mxu0 0
    %885 = vmatprep.subr.bf16.mxu0 0
    %886 = vmatpush1.bf16.msra.mxu0 0
    %887 = vmatprep.subr.bf16.mxu0 0
    %888 = vmatpush1.bf16.msra.mxu0 0
    %889 = vmatprep.subr.bf16.mxu0 0
    %890 = vmatpush1.bf16.msra.mxu0 0
    %891 = vmatprep.subr.bf16.mxu0 0
    %892 = vmatpush1.bf16.msra.mxu0 0
    %893 = vmatprep.subr.bf16.mxu0 0
    %894 = vmatpush1.bf16.msra.mxu0 0
    %895 = vmatprep.subr.bf16.mxu0 0
    %896 = vmatpush1.bf16.msra.mxu0 0
    %897 = vmatprep.subr.bf16.mxu0 0
    %898 = vmatpush1.bf16.msra.mxu0 0
    %899 = vmatprep.subr.bf16.mxu0 0
    %900 = vmatpush1.bf16.msra.mxu0 0
    %901 = vmatprep.subr.bf16.mxu0 0
    %902 = vmatpush1.bf16.msra.mxu0 0
    %903 = vmatprep.subr.bf16.mxu0 0
    %904 = vmatpush1.bf16.msra.mxu0 0
    %905 = vmatprep.subr.bf16.mxu0 0
    %906 = vmatpush1.bf16.msra.mxu0 0
    %907 = vmatprep.subr.bf16.mxu0 0
    %908 = vmatpush1.bf16.msra.mxu0 0
    %909 = vmatprep.subr.bf16.mxu0 0
    %910 = vmatpush1.bf16.msra.mxu0 0
    %911 = vmatprep.mubr.bf16.mxu0 0
    %912 = vmatmul.mubr.bf16.gmra.mrb[0].mxu0 %v868
    %v913 = vpop.f32.mrb[0].mxu0
    %v914 = vadd.f32 %v853, %v913
    %v915 = vpop.f32.mrb[0].mxu0
    %v916 = vpop.f32.mrb[0].mxu0
    %v917 = vadd.f32 %v853, %v916
    %v918 = vpop.f32.mrb[0].mxu0
    %919 = vmatprep.mubr.bf16.mxu0 0
    %920 = vmatmul.mubr.bf16.gmra.mrb[0].mxu0 %v871
    %v921 = vpop.f32.mrb[0].mxu0
    %v922 = vadd.f32 %v853, %v921
    %v923 = vpop.f32.mrb[0].mxu0
    %v924 = vpop.f32.mrb[0].mxu0
    %v925 = vadd.f32 %v853, %v924
    %v926 = vpop.f32.mrb[0].mxu0
    %927 = vmatprep.mubr.bf16.mxu0 0
    %928 = vmatmul.mubr.bf16.gmra.mrb[0].mxu0 %v874
    %v929 = vpop.f32.mrb[0].mxu0
    %v930 = vadd.f32 %v853, %v929
    %v931 = vpop.f32.mrb[0].mxu0
    %v932 = vpop.f32.mrb[0].mxu0
    %v933 = vadd.f32 %v853, %v932
    %v934 = vpop.f32.mrb[0].mxu0
    %935 = vmatprep.mubr.bf16.mxu0 0
    %936 = vmatmul.mubr.bf16.gmra.mrb[0].mxu0 %v877
    %v937 = vpop.f32.mrb[0].mxu0
    %v938 = vadd.f32 %v853, %v937
    %v939 = vpop.f32.mrb[0].mxu0
    %v940 = vpop.f32.mrb[0].mxu0
    %v941 = vadd.f32 %v853, %v940
    %v942 = vpop.f32.mrb[0].mxu0
    %943 = vdwg.mxu0
    %v944 = vmul.f32 %v914, 0.2
    %v945 = vmul.f32 %v917, 0.2
    %v946 = vmul.f32 %v922, 0.2
    %v947 = vmul.f32 %v925, 0.2
    %v948 = vmul.f32 %v930, 0.2
    %v949 = vmul.f32 %v933, 0.2
    %v950 = vmul.f32 %v938, 0.2
    %v951 = vmul.f32 %v941, 0.2
    %v952 = vmax.f32 %v914, %v944
    %v953 = vmax.f32 %v917, %v945
    %v954 = vmax.f32 %v922, %v946
    %v955 = vmax.f32 %v925, %v947
    %v956 = vmax.f32 %v930, %v948
    %v957 = vmax.f32 %v933, %v949
    %v958 = vmax.f32 %v938, %v950
    %v959 = vmax.f32 %v941, %v951
    %v960 = vmul.f32 %v952, 1.4142135
    %v961 = vmul.f32 %v953, 1.4142135
    %v962 = vmul.f32 %v954, 1.4142135
    %v963 = vmul.f32 %v955, 1.4142135
    %v964 = vmul.f32 %v956, 1.4142135
    %v965 = vmul.f32 %v957, 1.4142135
    %v966 = vmul.f32 %v958, 1.4142135
    %v967 = vmul.f32 %v959, 1.4142135
    %v968 = vld [vmem:[#allocation17] sm:$0xf]
    %v969 = vld [vmem:[#allocation17 + $0x4] sm:$0xf]
    %v970 = vld [vmem:[#allocation17 + $0x8] sm:$0xf]
    %v971 = vld [vmem:[#allocation17 + $0xc] sm:$0xf]
    %v972 = vpack.c.bf16 %v961, %v960
    %v973 = vpack.c.bf16 %v963, %v962
    %v974 = vpack.c.bf16 %v965, %v964
    %v975 = vpack.c.bf16 %v967, %v966
    %v976 = vld [vmem:[#allocation19] sm:$0x1]
    %v978 = vlaneseq
    %v979 = vshrl.u32 %v978, 7
    %v980 = vsub.s32 0, %v979
    %v981 = vrot.slane %v976, %v980
    %v987 = vunpack.c.l.b16 %v968
    %v988 = vunpack.c.l.b16 %v969
    %v989 = vunpack.c.l.b16 %v970
    %v990 = vunpack.c.l.b16 %v971
    %v991 = vpack.c.b16 %v988, %v987
    %v992 = vpack.c.b16 %v990, %v989
    %v996 = vsel %vm506, %v972, 0
    %v999 = vsel %vm506, %v973, 0
    %v1002 = vsel %vm506, %v974, 0
    %v1005 = vsel %vm506, %v975, 0
    %1007 = vmatprep.subr.bf16.mxu0 0
    %1008 = vmatpush1.bf16.msra.mxu0 %v991
    %1009 = vmatprep.subr.bf16.mxu0 0
    %1010 = vmatpush1.bf16.msra.mxu0 %v992
    %1011 = vmatprep.subr.bf16.mxu0 0
    %1012 = vmatpush1.bf16.msra.mxu0 0
    %1013 = vmatprep.subr.bf16.mxu0 0
    %1014 = vmatpush1.bf16.msra.mxu0 0
    %1015 = vmatprep.subr.bf16.mxu0 0
    %1016 = vmatpush1.bf16.msra.mxu0 0
    %1017 = vmatprep.subr.bf16.mxu0 0
    %1018 = vmatpush1.bf16.msra.mxu0 0
    %1019 = vmatprep.subr.bf16.mxu0 0
    %1020 = vmatpush1.bf16.msra.mxu0 0
    %1021 = vmatprep.subr.bf16.mxu0 0
    %1022 = vmatpush1.bf16.msra.mxu0 0
    %1023 = vmatprep.subr.bf16.mxu0 0
    %1024 = vmatpush1.bf16.msra.mxu0 0
    %1025 = vmatprep.subr.bf16.mxu0 0
    %1026 = vmatpush1.bf16.msra.mxu0 0
    %1027 = vmatprep.subr.bf16.mxu0 0
    %1028 = vmatpush1.bf16.msra.mxu0 0
    %1029 = vmatprep.subr.bf16.mxu0 0
    %1030 = vmatpush1.bf16.msra.mxu0 0
    %1031 = vmatprep.subr.bf16.mxu0 0
    %1032 = vmatpush1.bf16.msra.mxu0 0
    %1033 = vmatprep.subr.bf16.mxu0 0
    %1034 = vmatpush1.bf16.msra.mxu0 0
    %1035 = vmatprep.subr.bf16.mxu0 0
    %1036 = vmatpush1.bf16.msra.mxu0 0
    %1037 = vmatprep.subr.bf16.mxu0 0
    %1038 = vmatpush1.bf16.msra.mxu0 0
    %1039 = vmatprep.mubr.bf16.mxu0 0
    %1040 = vmatmul.mubr.bf16.gmra.mrb[0].mxu0 %v996
    %v1041 = vpop.f32.mrb[0].mxu0
    %v1042 = vadd.f32 %v981, %v1041
    %v1043 = vpop.f32.mrb[0].mxu0
    %v1044 = vpop.f32.mrb[0].mxu0
    %v1045 = vadd.f32 %v981, %v1044
    %v1046 = vpop.f32.mrb[0].mxu0
    %1047 = vmatprep.mubr.bf16.mxu0 0
    %1048 = vmatmul.mubr.bf16.gmra.mrb[0].mxu0 %v999
    %v1049 = vpop.f32.mrb[0].mxu0
    %v1050 = vadd.f32 %v981, %v1049
    %v1051 = vpop.f32.mrb[0].mxu0
    %v1052 = vpop.f32.mrb[0].mxu0
    %v1053 = vadd.f32 %v981, %v1052
    %v1054 = vpop.f32.mrb[0].mxu0
    %1055 = vmatprep.mubr.bf16.mxu0 0
    %1056 = vmatmul.mubr.bf16.gmra.mrb[0].mxu0 %v1002
    %v1057 = vpop.f32.mrb[0].mxu0
    %v1058 = vadd.f32 %v981, %v1057
    %v1059 = vpop.f32.mrb[0].mxu0
    %v1060 = vpop.f32.mrb[0].mxu0
    %v1061 = vadd.f32 %v981, %v1060
    %v1062 = vpop.f32.mrb[0].mxu0
    %1063 = vmatprep.mubr.bf16.mxu0 0
    %1064 = vmatmul.mubr.bf16.gmra.mrb[0].mxu0 %v1005
    %v1065 = vpop.f32.mrb[0].mxu0
    %v1066 = vadd.f32 %v981, %v1065
    %v1067 = vpop.f32.mrb[0].mxu0
    %v1068 = vpop.f32.mrb[0].mxu0
    %v1069 = vadd.f32 %v981, %v1068
    %v1070 = vpop.f32.mrb[0].mxu0
    %1071 = vdwg.mxu0
    %v1072 = vmul.f32 %v1042, 0.2
    %v1073 = vmul.f32 %v1045, 0.2
    %v1074 = vmul.f32 %v1050, 0.2
    %v1075 = vmul.f32 %v1053, 0.2
    %v1076 = vmul.f32 %v1058, 0.2
    %v1077 = vmul.f32 %v1061, 0.2
    %v1078 = vmul.f32 %v1066, 0.2
    %v1079 = vmul.f32 %v1069, 0.2
    %v1080 = vmax.f32 %v1042, %v1072
    %v1081 = vmax.f32 %v1045, %v1073
    %v1082 = vmax.f32 %v1050, %v1074
    %v1083 = vmax.f32 %v1053, %v1075
    %v1084 = vmax.f32 %v1058, %v1076
    %v1085 = vmax.f32 %v1061, %v1077
    %v1086 = vmax.f32 %v1066, %v1078
    %v1087 = vmax.f32 %v1069, %v1079
    %v1088 = vmul.f32 %v1080, 1.4142135
    %v1089 = vmul.f32 %v1081, 1.4142135
    %v1090 = vmul.f32 %v1082, 1.4142135
    %v1091 = vmul.f32 %v1083, 1.4142135
    %v1092 = vmul.f32 %v1084, 1.4142135
    %v1093 = vmul.f32 %v1085, 1.4142135
    %v1094 = vmul.f32 %v1086, 1.4142135
    %v1095 = vmul.f32 %v1087, 1.4142135
    %v1096 = vld [vmem:[#allocation29] sm:$0xf]
    %v1097 = vld [vmem:[#allocation29 + $0x4] sm:$0xf]
    %v1098 = vld [vmem:[#allocation29 + $0x8] sm:$0xf]
    %v1099 = vld [vmem:[#allocation29 + $0xc] sm:$0xf]
    %v1100 = vld [vmem:[#allocation31] sm:$0x1]
    %v1102 = vlaneseq
    %v1103 = vshrl.u32 %v1102, 7
    %v1104 = vsub.s32 0, %v1103
    %v1105 = vrot.slane %v1100, %v1104
    %v1111 = vunpack.c.l.b16 %v1096
    %v1112 = vunpack.c.l.b16 %v1097
    %v1113 = vunpack.c.l.b16 %v1098
    %v1114 = vunpack.c.l.b16 %v1099
    %v1115 = vpack.c.b16 %v1112, %v1111
    %v1116 = vpack.c.b16 %v1114, %v1113
    %1119 = vmatprep.subr.bf16.mxu0 0
    %1120 = vmatpush1.bf16.msra.mxu0 %v1115
    %1121 = vmatprep.subr.bf16.mxu0 0
    %1122 = vmatpush1.bf16.msra.mxu0 %v1116
    %1123 = vmatprep.subr.bf16.mxu0 0
    %1124 = vmatpush1.bf16.msra.mxu0 0
    %1125 = vmatprep.subr.bf16.mxu0 0
    %1126 = vmatpush1.bf16.msra.mxu0 0
    %1127 = vmatprep.subr.bf16.mxu0 0
    %1128 = vmatpush1.bf16.msra.mxu0 0
    %1129 = vmatprep.subr.bf16.mxu0 0
    %1130 = vmatpush1.bf16.msra.mxu0 0
    %1131 = vmatprep.subr.bf16.mxu0 0
    %1132 = vmatpush1.bf16.msra.mxu0 0
    %1133 = vmatprep.subr.bf16.mxu0 0
    %1134 = vmatpush1.bf16.msra.mxu0 0
    %1135 = vmatprep.subr.bf16.mxu0 0
    %1136 = vmatpush1.bf16.msra.mxu0 0
    %1137 = vmatprep.subr.bf16.mxu0 0
    %1138 = vmatpush1.bf16.msra.mxu0 0
    %1139 = vmatprep.subr.bf16.mxu0 0
    %1140 = vmatpush1.bf16.msra.mxu0 0
    %1141 = vmatprep.subr.bf16.mxu0 0
    %1142 = vmatpush1.bf16.msra.mxu0 0
    %1143 = vmatprep.subr.bf16.mxu0 0
    %1144 = vmatpush1.bf16.msra.mxu0 0
    %1145 = vmatprep.subr.bf16.mxu0 0
    %1146 = vmatpush1.bf16.msra.mxu0 0
    %1147 = vmatprep.subr.bf16.mxu0 0
    %1148 = vmatpush1.bf16.msra.mxu0 0
    %1149 = vmatprep.subr.bf16.mxu0 0
    %1150 = vmatpush1.bf16.msra.mxu0 0
    %1151 = vmatprep.mubr.bf16.mxu0 0
    %1152 = vmatmul.mubr.bf16.gmra.mrb[0].mxu0 %v868
    %v1153 = vpop.f32.mrb[0].mxu0
    %v1154 = vadd.f32 %v1105, %v1153
    %v1155 = vpop.f32.mrb[0].mxu0
    %v1156 = vpop.f32.mrb[0].mxu0
    %v1157 = vadd.f32 %v1105, %v1156
    %v1158 = vpop.f32.mrb[0].mxu0
    %1159 = vmatprep.mubr.bf16.mxu0 0
    %1160 = vmatmul.mubr.bf16.gmra.mrb[0].mxu0 %v871
    %v1161 = vpop.f32.mrb[0].mxu0
    %v1162 = vadd.f32 %v1105, %v1161
    %v1163 = vpop.f32.mrb[0].mxu0
    %v1164 = vpop.f32.mrb[0].mxu0
    %v1165 = vadd.f32 %v1105, %v1164
    %v1166 = vpop.f32.mrb[0].mxu0
    %1167 = vmatprep.mubr.bf16.mxu0 0
    %1168 = vmatmul.mubr.bf16.gmra.mrb[0].mxu0 %v874
    %v1169 = vpop.f32.mrb[0].mxu0
    %v1170 = vadd.f32 %v1105, %v1169
    %v1171 = vpop.f32.mrb[0].mxu0
    %v1172 = vpop.f32.mrb[0].mxu0
    %v1173 = vadd.f32 %v1105, %v1172
    %v1174 = vpop.f32.mrb[0].mxu0
    %1175 = vmatprep.mubr.bf16.mxu0 0
    %1176 = vmatmul.mubr.bf16.gmra.mrb[0].mxu0 %v877
    %v1177 = vpop.f32.mrb[0].mxu0
    %v1178 = vadd.f32 %v1105, %v1177
    %v1179 = vpop.f32.mrb[0].mxu0
    %v1180 = vpop.f32.mrb[0].mxu0
    %v1181 = vadd.f32 %v1105, %v1180
    %v1182 = vpop.f32.mrb[0].mxu0
    %1183 = vdwg.mxu0
    %v1184 = vadd.f32 %v1088, %v1154
    %v1185 = vadd.f32 %v1089, %v1157
    %v1186 = vadd.f32 %v1090, %v1162
    %v1187 = vadd.f32 %v1091, %v1165
    %v1188 = vadd.f32 %v1092, %v1170
    %v1189 = vadd.f32 %v1093, %v1173
    %v1190 = vadd.f32 %v1094, %v1178
    %v1191 = vadd.f32 %v1095, %v1181
    %v1192 = vmul.f32 %v1184, 0.70710677
    %v1193 = vmul.f32 %v1185, 0.70710677
    %v1194 = vmul.f32 %v1186, 0.70710677
    %v1195 = vmul.f32 %v1187, 0.70710677
    %v1196 = vmul.f32 %v1188, 0.70710677
    %v1197 = vmul.f32 %v1189, 0.70710677
    %v1198 = vmul.f32 %v1190, 0.70710677
    %v1199 = vmul.f32 %v1191, 0.70710677
    %v1200 = vld [vmem:[#allocation20] sm:$0xf]
    %v1201 = vld [vmem:[#allocation20 + $0x4] sm:$0xf]
    %v1202 = vld [vmem:[#allocation20 + $0x8] sm:$0xf]
    %v1203 = vld [vmem:[#allocation20 + $0xc] sm:$0xf]
    %v1204 = vpack.c.bf16 %v1193, %v1192
    %v1205 = vpack.c.bf16 %v1195, %v1194
    %v1206 = vpack.c.bf16 %v1197, %v1196
    %v1207 = vpack.c.bf16 %v1199, %v1198
    %v1208 = vld [vmem:[#allocation22] sm:$0x1]
    %v1210 = vlaneseq
    %v1211 = vshrl.u32 %v1210, 7
    %v1212 = vsub.s32 0, %v1211
    %v1213 = vrot.slane %v1208, %v1212
    %v1219 = vunpack.c.l.b16 %v1200
    %v1220 = vunpack.c.l.b16 %v1201
    %v1221 = vunpack.c.l.b16 %v1202
    %v1222 = vunpack.c.l.b16 %v1203
    %v1223 = vpack.c.b16 %v1220, %v1219
    %v1224 = vpack.c.b16 %v1222, %v1221
    %v1228 = vsel %vm506, %v1204, 0
    %v1231 = vsel %vm506, %v1205, 0
    %v1234 = vsel %vm506, %v1206, 0
    %v1237 = vsel %vm506, %v1207, 0
    %1239 = vmatprep.subr.bf16.mxu0 0
    %1240 = vmatpush1.bf16.msra.mxu0 %v1223
    %1241 = vmatprep.subr.bf16.mxu0 0
    %1242 = vmatpush1.bf16.msra.mxu0 %v1224
    %1243 = vmatprep.subr.bf16.mxu0 0
    %1244 = vmatpush1.bf16.msra.mxu0 0
    %1245 = vmatprep.subr.bf16.mxu0 0
    %1246 = vmatpush1.bf16.msra.mxu0 0
    %1247 = vmatprep.subr.bf16.mxu0 0
    %1248 = vmatpush1.bf16.msra.mxu0 0
    %1249 = vmatprep.subr.bf16.mxu0 0
    %1250 = vmatpush1.bf16.msra.mxu0 0
    %1251 = vmatprep.subr.bf16.mxu0 0
    %1252 = vmatpush1.bf16.msra.mxu0 0
    %1253 = vmatprep.subr.bf16.mxu0 0
    %1254 = vmatpush1.bf16.msra.mxu0 0
    %1255 = vmatprep.subr.bf16.mxu0 0
    %1256 = vmatpush1.bf16.msra.mxu0 0
    %1257 = vmatprep.subr.bf16.mxu0 0
    %1258 = vmatpush1.bf16.msra.mxu0 0
    %1259 = vmatprep.subr.bf16.mxu0 0
    %1260 = vmatpush1.bf16.msra.mxu0 0
    %1261 = vmatprep.subr.bf16.mxu0 0
    %1262 = vmatpush1.bf16.msra.mxu0 0
    %1263 = vmatprep.subr.bf16.mxu0 0
    %1264 = vmatpush1.bf16.msra.mxu0 0
    %1265 = vmatprep.subr.bf16.mxu0 0
    %1266 = vmatpush1.bf16.msra.mxu0 0
    %1267 = vmatprep.subr.bf16.mxu0 0
    %1268 = vmatpush1.bf16.msra.mxu0 0
    %1269 = vmatprep.subr.bf16.mxu0 0
    %1270 = vmatpush1.bf16.msra.mxu0 0
    %1271 = vmatprep.mubr.bf16.mxu0 0
    %1272 = vmatmul.mubr.bf16.gmra.mrb[0].mxu0 %v1228
    %v1273 = vpop.f32.mrb[0].mxu0
    %v1274 = vadd.f32 %v1213, %v1273
    %v1275 = vpop.f32.mrb[0].mxu0
    %v1276 = vpop.f32.mrb[0].mxu0
    %v1277 = vadd.f32 %v1213, %v1276
    %v1278 = vpop.f32.mrb[0].mxu0
    %1279 = vmatprep.mubr.bf16.mxu0 0
    %1280 = vmatmul.mubr.bf16.gmra.mrb[0].mxu0 %v1231
    %v1281 = vpop.f32.mrb[0].mxu0
    %v1282 = vadd.f32 %v1213, %v1281
    %v1283 = vpop.f32.mrb[0].mxu0
    %v1284 = vpop.f32.mrb[0].mxu0
    %v1285 = vadd.f32 %v1213, %v1284
    %v1286 = vpop.f32.mrb[0].mxu0
    %1287 = vmatprep.mubr.bf16.mxu0 0
    %1288 = vmatmul.mubr.bf16.gmra.mrb[0].mxu0 %v1234
    %v1289 = vpop.f32.mrb[0].mxu0
    %v1290 = vadd.f32 %v1213, %v1289
    %v1291 = vpop.f32.mrb[0].mxu0
    %v1292 = vpop.f32.mrb[0].mxu0
    %v1293 = vadd.f32 %v1213, %v1292
    %v1294 = vpop.f32.mrb[0].mxu0
    %1295 = vmatprep.mubr.bf16.mxu0 0
    %1296 = vmatmul.mubr.bf16.gmra.mrb[0].mxu0 %v1237
    %v1297 = vpop.f32.mrb[0].mxu0
    %v1298 = vadd.f32 %v1213, %v1297
    %v1299 = vpop.f32.mrb[0].mxu0
    %v1300 = vpop.f32.mrb[0].mxu0
    %v1301 = vadd.f32 %v1213, %v1300
    %v1302 = vpop.f32.mrb[0].mxu0
    %1303 = vdwg.mxu0
    %v1304 = vmul.f32 %v1274, 0.2
    %v1305 = vmul.f32 %v1277, 0.2
    %v1306 = vmul.f32 %v1282, 0.2
    %v1307 = vmul.f32 %v1285, 0.2
    %v1308 = vmul.f32 %v1290, 0.2
    %v1309 = vmul.f32 %v1293, 0.2
    %v1310 = vmul.f32 %v1298, 0.2
    %v1311 = vmul.f32 %v1301, 0.2
    %v1312 = vmax.f32 %v1274, %v1304
    %v1313 = vmax.f32 %v1277, %v1305
    %v1314 = vmax.f32 %v1282, %v1306
    %v1315 = vmax.f32 %v1285, %v1307
    %v1316 = vmax.f32 %v1290, %v1308
    %v1317 = vmax.f32 %v1293, %v1309
    %v1318 = vmax.f32 %v1298, %v1310
    %v1319 = vmax.f32 %v1301, %v1311
    %v1320 = vmul.f32 %v1312, 1.4142135
    %v1321 = vmul.f32 %v1313, 1.4142135
    %v1322 = vmul.f32 %v1314, 1.4142135
    %v1323 = vmul.f32 %v1315, 1.4142135
    %v1324 = vmul.f32 %v1316, 1.4142135
    %v1325 = vmul.f32 %v1317, 1.4142135
    %v1326 = vmul.f32 %v1318, 1.4142135
    %v1327 = vmul.f32 %v1319, 1.4142135
    %v1328 = vld [vmem:[#allocation23] sm:$0xf]
    %v1329 = vld [vmem:[#allocation23 + $0x4] sm:$0xf]
    %v1330 = vld [vmem:[#allocation23 + $0x8] sm:$0xf]
    %v1331 = vld [vmem:[#allocation23 + $0xc] sm:$0xf]
    %v1332 = vpack.c.bf16 %v1321, %v1320
    %v1333 = vpack.c.bf16 %v1323, %v1322
    %v1334 = vpack.c.bf16 %v1325, %v1324
    %v1335 = vpack.c.bf16 %v1327, %v1326
    %v1336 = vld [vmem:[#allocation25] sm:$0x1]
    %v1338 = vlaneseq
    %v1339 = vshrl.u32 %v1338, 7
    %v1340 = vsub.s32 0, %v1339
    %v1341 = vrot.slane %v1336, %v1340
    %v1347 = vunpack.c.l.b16 %v1328
    %v1348 = vunpack.c.l.b16 %v1329
    %v1349 = vunpack.c.l.b16 %v1330
    %v1350 = vunpack.c.l.b16 %v1331
    %v1351 = vpack.c.b16 %v1348, %v1347
    %v1352 = vpack.c.b16 %v1350, %v1349
    %v1356 = vsel %vm506, %v1332, 0
    %v1359 = vsel %vm506, %v1333, 0
    %v1362 = vsel %vm506, %v1334, 0
    %v1365 = vsel %vm506, %v1335, 0
    %1367 = vmatprep.subr.bf16.mxu0 0
    %1368 = vmatpush1.bf16.msra.mxu0 %v1351
    %1369 = vmatprep.subr.bf16.mxu0 0
    %1370 = vmatpush1.bf16.msra.mxu0 %v1352
    %1371 = vmatprep.subr.bf16.mxu0 0
    %1372 = vmatpush1.bf16.msra.mxu0 0
    %1373 = vmatprep.subr.bf16.mxu0 0
    %1374 = vmatpush1.bf16.msra.mxu0 0
    %1375 = vmatprep.subr.bf16.mxu0 0
    %1376 = vmatpush1.bf16.msra.mxu0 0
    %1377 = vmatprep.subr.bf16.mxu0 0
    %1378 = vmatpush1.bf16.msra.mxu0 0
    %1379 = vmatprep.subr.bf16.mxu0 0
    %1380 = vmatpush1.bf16.msra.mxu0 0
    %1381 = vmatprep.subr.bf16.mxu0 0
    %1382 = vmatpush1.bf16.msra.mxu0 0
    %1383 = vmatprep.subr.bf16.mxu0 0
    %1384 = vmatpush1.bf16.msra.mxu0 0
    %1385 = vmatprep.subr.bf16.mxu0 0
    %1386 = vmatpush1.bf16.msra.mxu0 0
    %1387 = vmatprep.subr.bf16.mxu0 0
    %1388 = vmatpush1.bf16.msra.mxu0 0
    %1389 = vmatprep.subr.bf16.mxu0 0
    %1390 = vmatpush1.bf16.msra.mxu0 0
    %1391 = vmatprep.subr.bf16.mxu0 0
    %1392 = vmatpush1.bf16.msra.mxu0 0
    %1393 = vmatprep.subr.bf16.mxu0 0
    %1394 = vmatpush1.bf16.msra.mxu0 0
    %1395 = vmatprep.subr.bf16.mxu0 0
    %1396 = vmatpush1.bf16.msra.mxu0 0
    %1397 = vmatprep.subr.bf16.mxu0 0
    %1398 = vmatpush1.bf16.msra.mxu0 0
    %1399 = vmatprep.mubr.bf16.mxu0 0
    %1400 = vmatmul.mubr.bf16.gmra.mrb[0].mxu0 %v1356
    %v1401 = vpop.f32.mrb[0].mxu0
    %v1402 = vadd.f32 %v1341, %v1401
    %v1403 = vpop.f32.mrb[0].mxu0
    %v1404 = vpop.f32.mrb[0].mxu0
    %v1405 = vadd.f32 %v1341, %v1404
    %v1406 = vpop.f32.mrb[0].mxu0
    %1407 = vmatprep.mubr.bf16.mxu0 0
    %1408 = vmatmul.mubr.bf16.gmra.mrb[0].mxu0 %v1359
    %v1409 = vpop.f32.mrb[0].mxu0
    %v1410 = vadd.f32 %v1341, %v1409
    %v1411 = vpop.f32.mrb[0].mxu0
    %v1412 = vpop.f32.mrb[0].mxu0
    %v1413 = vadd.f32 %v1341, %v1412
    %v1414 = vpop.f32.mrb[0].mxu0
    %1415 = vmatprep.mubr.bf16.mxu0 0
    %1416 = vmatmul.mubr.bf16.gmra.mrb[0].mxu0 %v1362
    %v1417 = vpop.f32.mrb[0].mxu0
    %v1418 = vadd.f32 %v1341, %v1417
    %v1419 = vpop.f32.mrb[0].mxu0
    %v1420 = vpop.f32.mrb[0].mxu0
    %v1421 = vadd.f32 %v1341, %v1420
    %v1422 = vpop.f32.mrb[0].mxu0
    %1423 = vmatprep.mubr.bf16.mxu0 0
    %1424 = vmatmul.mubr.bf16.gmra.mrb[0].mxu0 %v1365
    %v1425 = vpop.f32.mrb[0].mxu0
    %v1426 = vadd.f32 %v1341, %v1425
    %v1427 = vpop.f32.mrb[0].mxu0
    %v1428 = vpop.f32.mrb[0].mxu0
    %v1429 = vadd.f32 %v1341, %v1428
    %v1430 = vpop.f32.mrb[0].mxu0
    %1431 = vdwg.mxu0
    %v1432 = vmul.f32 %v1402, 0.2
    %v1433 = vmul.f32 %v1405, 0.2
    %v1434 = vmul.f32 %v1410, 0.2
    %v1435 = vmul.f32 %v1413, 0.2
    %v1436 = vmul.f32 %v1418, 0.2
    %v1437 = vmul.f32 %v1421, 0.2
    %v1438 = vmul.f32 %v1426, 0.2
    %v1439 = vmul.f32 %v1429, 0.2
    %v1440 = vmax.f32 %v1402, %v1432
    %v1441 = vmax.f32 %v1405, %v1433
    %v1442 = vmax.f32 %v1410, %v1434
    %v1443 = vmax.f32 %v1413, %v1435
    %v1444 = vmax.f32 %v1418, %v1436
    %v1445 = vmax.f32 %v1421, %v1437
    %v1446 = vmax.f32 %v1426, %v1438
    %v1447 = vmax.f32 %v1429, %v1439
    %v1448 = vmul.f32 %v1440, 1.4142135
    %v1449 = vmul.f32 %v1441, 1.4142135
    %v1450 = vmul.f32 %v1442, 1.4142135
    %v1451 = vmul.f32 %v1443, 1.4142135
    %v1452 = vmul.f32 %v1444, 1.4142135
    %v1453 = vmul.f32 %v1445, 1.4142135
    %v1454 = vmul.f32 %v1446, 1.4142135
    %v1455 = vmul.f32 %v1447, 1.4142135
    %v1456 = vld [vmem:[#allocation32] sm:$0xf]
    %v1457 = vld [vmem:[#allocation32 + $0x4] sm:$0xf]
    %v1458 = vld [vmem:[#allocation32 + $0x8] sm:$0xf]
    %v1459 = vld [vmem:[#allocation32 + $0xc] sm:$0xf]
    %v1460 = vld [vmem:[#allocation34] sm:$0x1]
    %v1462 = vlaneseq
    %v1463 = vshrl.u32 %v1462, 7
    %v1464 = vsub.s32 0, %v1463
    %v1465 = vrot.slane %v1460, %v1464
    %v1471 = vunpack.c.l.b16 %v1456
    %v1472 = vunpack.c.l.b16 %v1457
    %v1473 = vunpack.c.l.b16 %v1458
    %v1474 = vunpack.c.l.b16 %v1459
    %v1475 = vpack.c.b16 %v1472, %v1471
    %v1476 = vpack.c.b16 %v1474, %v1473
    %1479 = vmatprep.subr.bf16.mxu0 0
    %1480 = vmatpush1.bf16.msra.mxu0 %v1475
    %1481 = vmatprep.subr.bf16.mxu0 0
    %1482 = vmatpush1.bf16.msra.mxu0 %v1476
    %1483 = vmatprep.subr.bf16.mxu0 0
    %1484 = vmatpush1.bf16.msra.mxu0 0
    %1485 = vmatprep.subr.bf16.mxu0 0
    %1486 = vmatpush1.bf16.msra.mxu0 0
    %1487 = vmatprep.subr.bf16.mxu0 0
    %1488 = vmatpush1.bf16.msra.mxu0 0
    %1489 = vmatprep.subr.bf16.mxu0 0
    %1490 = vmatpush1.bf16.msra.mxu0 0
    %1491 = vmatprep.subr.bf16.mxu0 0
    %1492 = vmatpush1.bf16.msra.mxu0 0
    %1493 = vmatprep.subr.bf16.mxu0 0
    %1494 = vmatpush1.bf16.msra.mxu0 0
    %1495 = vmatprep.subr.bf16.mxu0 0
    %1496 = vmatpush1.bf16.msra.mxu0 0
    %1497 = vmatprep.subr.bf16.mxu0 0
    %1498 = vmatpush1.bf16.msra.mxu0 0
    %1499 = vmatprep.subr.bf16.mxu0 0
    %1500 = vmatpush1.bf16.msra.mxu0 0
    %1501 = vmatprep.subr.bf16.mxu0 0
    %1502 = vmatpush1.bf16.msra.mxu0 0
    %1503 = vmatprep.subr.bf16.mxu0 0
    %1504 = vmatpush1.bf16.msra.mxu0 0
    %1505 = vmatprep.subr.bf16.mxu0 0
    %1506 = vmatpush1.bf16.msra.mxu0 0
    %1507 = vmatprep.subr.bf16.mxu0 0
    %1508 = vmatpush1.bf16.msra.mxu0 0
    %1509 = vmatprep.subr.bf16.mxu0 0
    %1510 = vmatpush1.bf16.msra.mxu0 0
    %1511 = vmatprep.mubr.bf16.mxu0 0
    %1512 = vmatmul.mubr.bf16.gmra.mrb[0].mxu0 %v1228
    %v1513 = vpop.f32.mrb[0].mxu0
    %v1514 = vadd.f32 %v1465, %v1513
    %v1515 = vpop.f32.mrb[0].mxu0
    %v1516 = vpop.f32.mrb[0].mxu0
    %v1517 = vadd.f32 %v1465, %v1516
    %v1518 = vpop.f32.mrb[0].mxu0
    %1519 = vmatprep.mubr.bf16.mxu0 0
    %1520 = vmatmul.mubr.bf16.gmra.mrb[0].mxu0 %v1231
    %v1521 = vpop.f32.mrb[0].mxu0
    %v1522 = vadd.f32 %v1465, %v1521
    %v1523 = vpop.f32.mrb[0].mxu0
    %v1524 = vpop.f32.mrb[0].mxu0
    %v1525 = vadd.f32 %v1465, %v1524
    %v1526 = vpop.f32.mrb[0].mxu0
    %1527 = vmatprep.mubr.bf16.mxu0 0
    %1528 = vmatmul.mubr.bf16.gmra.mrb[0].mxu0 %v1234
    %v1529 = vpop.f32.mrb[0].mxu0
    %v1530 = vadd.f32 %v1465, %v1529
    %v1531 = vpop.f32.mrb[0].mxu0
    %v1532 = vpop.f32.mrb[0].mxu0
    %v1533 = vadd.f32 %v1465, %v1532
    %v1534 = vpop.f32.mrb[0].mxu0
    %1535 = vmatprep.mubr.bf16.mxu0 0
    %1536 = vmatmul.mubr.bf16.gmra.mrb[0].mxu0 %v1237
    %v1537 = vpop.f32.mrb[0].mxu0
    %v1538 = vadd.f32 %v1465, %v1537
    %v1539 = vpop.f32.mrb[0].mxu0
    %v1540 = vpop.f32.mrb[0].mxu0
    %v1541 = vadd.f32 %v1465, %v1540
    %v1542 = vpop.f32.mrb[0].mxu0
    %1543 = vdwg.mxu0
    %v1544 = vadd.f32 %v1448, %v1514
    %v1545 = vadd.f32 %v1449, %v1517
    %v1546 = vadd.f32 %v1450, %v1522
    %v1547 = vadd.f32 %v1451, %v1525
    %v1548 = vadd.f32 %v1452, %v1530
    %v1549 = vadd.f32 %v1453, %v1533
    %v1550 = vadd.f32 %v1454, %v1538
    %v1551 = vadd.f32 %v1455, %v1541
    %v1552 = vmul.f32 %v1544, 0.70710677
    %v1553 = vmul.f32 %v1545, 0.70710677
    %v1554 = vmul.f32 %v1546, 0.70710677
    %v1555 = vmul.f32 %v1547, 0.70710677
    %v1556 = vmul.f32 %v1548, 0.70710677
    %v1557 = vmul.f32 %v1549, 0.70710677
    %v1558 = vmul.f32 %v1550, 0.70710677
    %v1559 = vmul.f32 %v1551, 0.70710677
    %v1560 = vpack.c.bf16 %v1553, %v1552
    %v1561 = vpack.c.bf16 %v1555, %v1554
    %v1562 = vpack.c.bf16 %v1557, %v1556
    %v1563 = vpack.c.bf16 %v1559, %v1558
    %v1568 = vunpack.c.l.b16 %v1560
    %v1569 = vunpack.c.h.b16 %v1560
    %v1570 = vunpack.c.l.b16 %v1561
    %v1571 = vunpack.c.h.b16 %v1561
    %v1572 = vunpack.c.l.b16 %v1562
    %v1573 = vunpack.c.h.b16 %v1562
    %v1574 = vunpack.c.l.b16 %v1563
    %v1575 = vunpack.c.h.b16 %v1563
    %v1576 = vpack.c.b16 %v1568, %v1568
    %v1577 = vpack.c.b16 %v1569, %v1569
    %v1578 = vpack.c.b16 %v1570, %v1570
    %v1579 = vpack.c.b16 %v1571, %v1571
    %v1580 = vpack.c.b16 %v1572, %v1572
    %v1581 = vpack.c.b16 %v1573, %v1573
    %v1582 = vpack.c.b16 %v1574, %v1574
    %v1583 = vpack.c.b16 %v1575, %v1575
    %vm1592 = vcmask 257024
    %1593 = vst.msk [vmem:[#allocation35] sm:$0xf] %vm1592, %v1576
    %1594 = vst.msk [vmem:[#allocation35 + $0x4] sm:$0xf] %vm1592, %v1577
    %1595 = vst.msk [vmem:[#allocation35 + $0x8] sm:$0xf] %vm1592, %v1578
    %1596 = vst.msk [vmem:[#allocation35 + $0xc] sm:$0xf] %vm1592, %v1579
    %1597 = vst.msk [vmem:[#allocation35 + $0x10] sm:$0xf] %vm1592, %v1580
    %1598 = vst.msk [vmem:[#allocation35 + $0x14] sm:$0xf] %vm1592, %v1581
    %1599 = vst.msk [vmem:[#allocation35 + $0x18] sm:$0xf] %vm1592, %v1582
    %1600 = vst.msk [vmem:[#allocation35 + $0x1c] sm:$0xf] %vm1592, %v1583
    // Predicated region
    $region170: #{unconditional_cse_style_mapper_forward.4} parent=1 // pred_check
      _
    $region171: #{unconditional_cse_style_mapper_forward.4} parent=1 // pred_check_branch
      %1602 = sbr.rel (0) target = $region173
    $region172: #{unconditional_cse_style_mapper_forward.4} parent=1 // pred_region
      %s1604 = ssub.s32 512, 512
      %1605 = vsyncadd [#allocation4], %s1604
      %s1606 = sshll.u32 [#allocation35], 4
      %s1607 = int_to_ptr.vmem [resolvable:$true] %s1606
      %1612 = dma.vmem_to_hbm [thread:$0]  %s1607, 512, %s21, [#allocation4], 64, 64, 4
    $region173: #{unconditional_cse_style_mapper_forward.4} parent=1 // pred_fallthru
      _
    // Predicated region
    $region174: #{unconditional_cse_style_mapper_forward.4} parent=1 // pred_check
      _
    $region175: #{unconditional_cse_style_mapper_forward.4} parent=1 // pred_check_branch
      %1614 = sbr.rel (0) target = $region177
    $region176: #{unconditional_cse_style_mapper_forward.4} parent=1 // pred_region
      %1615 = dma.done [#allocation4], 512
    $region177: #{unconditional_cse_style_mapper_forward.4} parent=1 // pred_fallthru
      _
    %1616 = vsyncpa [#allocation3], 1
    %1617 = vsyncpa [#allocation6], 1
    %1618 = vsyncpa [#allocation9], 1
    %1619 = vsyncpa [#allocation12], 1
    %1620 = vsyncpa [#allocation15], 1
    %1621 = vsyncpa [#allocation18], 1
    %1622 = vsyncpa [#allocation21], 1
    %1623 = vsyncpa [#allocation24], 1
    %1624 = vsyncpa [#allocation27], 1
    %1625 = vsyncpa [#allocation30], 1
    %1626 = vsyncpa [#allocation33], 1
    %1627 = vsyncpa [#allocation4], 1

// kernel: unconditional_cse_style_mapper_forward.5
$region0: #{unconditional_cse_style_mapper_forward.5}
  #allocation0 [shape = 'u32[]', space=smem, size = 0x4, offset = 0x4, fixed_abs, tag = 'smem constant byte address 0x4 - core index']
  #allocation1 [shape = 'u32[144,128]{1,0:T(1,128)}', space=vmem, size = 0x12000, scoped, tag = 'internal scratch']
  %s0 = inlined_call_operand.hbm [shape: s32[512,1], index: 0, kind: input, shape index: {}]
  %s1 = inlined_call_operand.hbm [shape: f32[512,1], index: 1, kind: input, shape index: {}]
  %s2 = inlined_call_operand.hbm [shape: bf16[64,32], index: 2, kind: input, shape index: {}]
  %s3 = inlined_call_operand.hbm [shape: bf16[32,32], index: 3, kind: input, shape index: {}]
  %s4 = inlined_call_operand.hbm [shape: f32[1,32], index: 4, kind: input, shape index: {}]
  %s5 = inlined_call_operand.hbm [shape: f32[1,32], index: 5, kind: input, shape index: {}]
  %s6 = inlined_call_operand.hbm [shape: bf16[32,16], index: 6, kind: input, shape index: {}]
  %s7 = inlined_call_operand.hbm [shape: f32[1,16], index: 7, kind: input, shape index: {}]
  %s8 = inlined_call_operand.hbm [shape: bf16[32,16], index: 8, kind: input, shape index: {}]
  %s9 = inlined_call_operand.hbm [shape: f32[1,16], index: 9, kind: input, shape index: {}]
  %s10 = inlined_call_operand.hbm [shape: bf16[512,32], index: 10, kind: output, shape index: {0}]
  %s11 = inlined_call_operand.hbm [shape: f32[512,16], index: 11, kind: output, shape index: {1}]
  %s12 = inlined_call_operand.hbm [shape: f32[512,16], index: 12, kind: output, shape index: {2}]
  %13 = xla_tuple %s10, %s11, %s12
  %s14 = sld [smem:[#allocation0]]
  $region129: #{unconditional_cse_style_mapper_forward.5} parent=0
    _
  %s16 = ssub.s32 1, %s14
  %s17 = scalar_select 0, %s16, %s14
  $region1: #{unconditional_cse_style_mapper_forward.5} parent=0
    #allocation2 [shape = 'u8[262144]{0}', space=vmem, size = 0x40000, scoped, tag = 'input window, operand 0']
    #allocation3 [shape = 's32[2]{0}', space=sflag, size = 0x8, scoped, tag = 'scoped memory for unconditional_cse_style_mapper_forward.5']
    #allocation4 [shape = 's32[2]{0}', space=sflag, size = 0x8, scoped, tag = 'scoped memory for unconditional_cse_style_mapper_forward.5']
    #allocation5 [shape = 'u8[262144]{0}', space=vmem, size = 0x40000, scoped, tag = 'input window, operand 1']
    #allocation6 [shape = 's32[2]{0}', space=sflag, size = 0x8, scoped, tag = 'scoped memory for unconditional_cse_style_mapper_forward.5']
    #allocation7 [shape = 'u8[16384]{0}', space=vmem, size = 0x4000, scoped, tag = 'input window, operand 2, single buffered']
    #allocation8 [shape = 'u8[8192]{0}', space=vmem, size = 0x2000, scoped, tag = 'input window, operand 3, single buffered']
    #allocation9 [shape = 's32[1]{0}', space=sflag, size = 0x4, scoped, tag = 'scoped memory for unconditional_cse_style_mapper_forward.5']
    #allocation10 [shape = 'u8[512]{0}', space=vmem, size = 0x400, scoped, tag = 'input window, operand 4, single buffered']
    #allocation11 [shape = 'u8[512]{0}', space=vmem, size = 0x400, scoped, tag = 'input window, operand 5, single buffered']
    #allocation12 [shape = 's32[1]{0}', space=sflag, size = 0x4, scoped, tag = 'scoped memory for unconditional_cse_style_mapper_forward.5']
    #allocation13 [shape = 'u8[8192]{0}', space=vmem, size = 0x2000, scoped, tag = 'input window, operand 6, single buffered']
    #allocation14 [shape = 'u8[512]{0}', space=vmem, size = 0x400, scoped, tag = 'input window, operand 7, single buffered']
    #allocation15 [shape = 's32[1]{0}', space=sflag, size = 0x4, scoped, tag = 'scoped memory for unconditional_cse_style_mapper_forward.5']
    #allocation16 [shape = 'u8[8192]{0}', space=vmem, size = 0x2000, scoped, tag = 'input window, operand 8, single buffered']
    #allocation17 [shape = 'u8[512]{0}', space=vmem, size = 0x400, scoped, tag = 'input window, operand 9, single buffered']
    #allocation18 [shape = 's32[1]{0}', space=sflag, size = 0x4, scoped, tag = 'scoped memory for unconditional_cse_style_mapper_forward.5']
    #allocation19 [shape = 'u8[131072]{0}', space=vmem, size = 0x20000, scoped, tag = 'output window, operand 0']
    #allocation20 [shape = 'u8[262144]{0}', space=vmem, size = 0x40000, scoped, tag = 'output window, operand 1']
    #allocation21 [shape = 's32[2]{0}', space=sflag, size = 0x8, scoped, tag = 'scoped memory for unconditional_cse_style_mapper_forward.5']
    #allocation22 [shape = 'u8[262144]{0}', space=vmem, size = 0x40000, scoped, tag = 'output window, operand 2']
    %18 = vsyncpa [#allocation3], 0
    %s19 = scalar_lea.sflag [#allocation3], 1
    %20 = vsyncpa %s19, 0
    %21 = vsyncpa [#allocation6], 0
    %s22 = scalar_lea.sflag [#allocation6], 1
    %23 = vsyncpa %s22, 0
    %24 = vsyncpa [#allocation9], 0
    %25 = vsyncpa [#allocation12], 0
    %26 = vsyncpa [#allocation15], 0
    %27 = vsyncpa [#allocation18], 0
    %28 = vsyncpa [#allocation4], 0
    %s29 = scalar_lea.sflag [#allocation4], 1
    %30 = vsyncpa %s29, 0
    %31 = vsyncpa [#allocation21], 0
    %s32 = scalar_lea.sflag [#allocation21], 1
    %33 = vsyncpa %s32, 0
    loop: start=0, step=1, limit=4
    $region2: #{unconditional_cse_style_mapper_forward.5} parent=1 // loop_pre_header
      _
    $region3: #{unconditional_cse_style_mapper_forward.5} parent=1 // loop_header
      %s35 = sphi 0, %s39
      %p36 = scmp.ge.s32.totalorder %s35, 4
      %s45 = sphi 0, %s47
      %s48 = sphi 0, %s45
      %s49 = sphi 0, %s48
      %s65 = sphi 0, %s49
      %s71 = sphi 0, %s73
      %s74 = sphi 0, %s71
      %s75 = sphi 0, %s74
      %s91 = sphi 0, %s75
      %s95 = sphi 0, %s95
      %s97 = sphi 0, %s95
      %s98 = sphi 0, %s97
      %s112 = sphi 0, %s98
      %s116 = sphi 0, %s116
      %s118 = sphi 0, %s116
      %s119 = sphi 0, %s118
      %s133 = sphi 0, %s119
      %s137 = sphi 0, %s137
      %s139 = sphi 0, %s137
      %s140 = sphi 0, %s139
      %s154 = sphi 0, %s140
      %s158 = sphi 0, %s158
      %s160 = sphi 0, %s158
      %s161 = sphi 0, %s160
      %s175 = sphi 0, %s161
      %s179 = sphi 0, %s179
      %s181 = sphi 0, %s179
      %s182 = sphi 0, %s181
      %s196 = sphi 0, %s182
      %s200 = sphi 0, %s200
      %s202 = sphi 0, %s200
      %s203 = sphi 0, %s202
      %s217 = sphi 0, %s203
      %s221 = sphi 0, %s221
      %s223 = sphi 0, %s221
      %s224 = sphi 0, %s223
      %s238 = sphi 0, %s224
      %s242 = sphi 0, %s242
      %s244 = sphi 0, %s242
      %s245 = sphi 0, %s244
      %s259 = sphi 0, %s245
      %s265 = sphi 0, %s267
      %s268 = sphi 0, %s265
      %s269 = sphi 0, %s268
      %s285 = sphi 0, %s269
      %s291 = sphi 0, %s293
      %s294 = sphi 0, %s291
      %s295 = sphi 0, %s294
      %s311 = sphi 0, %s295
      %s317 = sphi 0, %s319
      %s320 = sphi 0, %s317
      %s321 = sphi 0, %s320
      %s337 = sphi 0, %s321
    $region4: #{unconditional_cse_style_mapper_forward.5} parent=1 // loop_header_branch
      %38 = sbr.rel (%p36) target = $region8
    $region5: #{unconditional_cse_style_mapper_forward.5} parent=1 // loop_body
      %s40 = ssub.s32 %s35, 1
      %s41 = ssub.s32 %s35, 2
      %s42 = sadd.s32 %s35, 1
      %s43 = ssub.s32 %s35, %s42
      %p44 = scmp.eq.s32.totalorder %s43, 0
      %s46 = sadd.s32 %s45, 1
      %s47 = scalar_select %p44, %s45, %s46
      %p50 = pneg %p44
      %p51 = scmp.eq.s32.totalorder %s35, 1
      %p52 = por %p50, %p51
      %p53 = scmp.ne.s32.totalorder %s45, %s48
      %p54 = scmp.eq.s32.totalorder %s35, 0
      %p55 = por %p53, %p54
      %p56 = scmp.ne.s32.totalorder %s45, %s48
      %p57 = scmp.eq.s32.totalorder %s40, 1
      %p58 = por %p56, %p57
      %p59 = scmp.ne.s32.totalorder %s48, %s49
      %p60 = scmp.eq.s32.totalorder %s40, 0
      %p61 = por %p59, %p60
      %p62 = scmp.ne.s32.totalorder %s48, %s49
      %p63 = scmp.eq.s32.totalorder %s41, 1
      %p64 = por %p62, %p63
      %p66 = scmp.ne.s32.totalorder %s49, %s65
      %p67 = scmp.eq.s32.totalorder %s41, 0
      %p68 = por %p66, %p67
      %s69 = ssub.s32 %s35, %s42
      %p70 = scmp.eq.s32.totalorder %s69, 0
      %s72 = sadd.s32 %s71, 1
      %s73 = scalar_select %p70, %s71, %s72
      %p76 = pneg %p70
      %p77 = scmp.eq.s32.totalorder %s35, 1
      %p78 = por %p76, %p77
      %p79 = scmp.ne.s32.totalorder %s71, %s74
      %p80 = scmp.eq.s32.totalorder %s35, 0
      %p81 = por %p79, %p80
      %p82 = scmp.ne.s32.totalorder %s71, %s74
      %p83 = scmp.eq.s32.totalorder %s40, 1
      %p84 = por %p82, %p83
      %p85 = scmp.ne.s32.totalorder %s74, %s75
      %p86 = scmp.eq.s32.totalorder %s40, 0
      %p87 = por %p85, %p86
      %p88 = scmp.ne.s32.totalorder %s74, %s75
      %p89 = scmp.eq.s32.totalorder %s41, 1
      %p90 = por %p88, %p89
      %p92 = scmp.ne.s32.totalorder %s75, %s91
      %p93 = scmp.eq.s32.totalorder %s41, 0
      %p94 = por %p92, %p93
      %s96 = sadd.s32 %s95, 1
      %p99 = scmp.eq.s32.totalorder %s35, 1
      %p100 = scmp.ne.s32.totalorder %s95, %s97
      %p101 = scmp.eq.s32.totalorder %s35, 0
      %p102 = por %p100, %p101
      %p103 = scmp.ne.s32.totalorder %s95, %s97
      %p104 = scmp.eq.s32.totalorder %s40, 1
      %p105 = por %p103, %p104
      %p106 = scmp.ne.s32.totalorder %s97, %s98
      %p107 = scmp.eq.s32.totalorder %s40, 0
      %p108 = por %p106, %p107
      %p109 = scmp.ne.s32.totalorder %s97, %s98
      %p110 = scmp.eq.s32.totalorder %s41, 1
      %p111 = por %p109, %p110
      %p113 = scmp.ne.s32.totalorder %s98, %s112
      %p114 = scmp.eq.s32.totalorder %s41, 0
      %p115 = por %p113, %p114
      %s117 = sadd.s32 %s116, 1
      %p120 = scmp.eq.s32.totalorder %s35, 1
      %p121 = scmp.ne.s32.totalorder %s116, %s118
      %p122 = scmp.eq.s32.totalorder %s35, 0
      %p123 = por %p121, %p122
      %p124 = scmp.ne.s32.totalorder %s116, %s118
      %p125 = scmp.eq.s32.totalorder %s40, 1
      %p126 = por %p124, %p125
      %p127 = scmp.ne.s32.totalorder %s118, %s119
      %p128 = scmp.eq.s32.totalorder %s40, 0
      %p129 = por %p127, %p128
      %p130 = scmp.ne.s32.totalorder %s118, %s119
      %p131 = scmp.eq.s32.totalorder %s41, 1
      %p132 = por %p130, %p131
      %p134 = scmp.ne.s32.totalorder %s119, %s133
      %p135 = scmp.eq.s32.totalorder %s41, 0
      %p136 = por %p134, %p135
      %s138 = sadd.s32 %s137, 1
      %p141 = scmp.eq.s32.totalorder %s35, 1
      %p142 = scmp.ne.s32.totalorder %s137, %s139
      %p143 = scmp.eq.s32.totalorder %s35, 0
      %p144 = por %p142, %p143
      %p145 = scmp.ne.s32.totalorder %s137, %s139
      %p146 = scmp.eq.s32.totalorder %s40, 1
      %p147 = por %p145, %p146
      %p148 = scmp.ne.s32.totalorder %s139, %s140
      %p149 = scmp.eq.s32.totalorder %s40, 0
      %p150 = por %p148, %p149
      %p151 = scmp.ne.s32.totalorder %s139, %s140
      %p152 = scmp.eq.s32.totalorder %s41, 1
      %p153 = por %p151, %p152
      %p155 = scmp.ne.s32.totalorder %s140, %s154
      %p156 = scmp.eq.s32.totalorder %s41, 0
      %p157 = por %p155, %p156
      %s159 = sadd.s32 %s158, 1
      %p162 = scmp.eq.s32.totalorder %s35, 1
      %p163 = scmp.ne.s32.totalorder %s158, %s160
      %p164 = scmp.eq.s32.totalorder %s35, 0
      %p165 = por %p163, %p164
      %p166 = scmp.ne.s32.totalorder %s158, %s160
      %p167 = scmp.eq.s32.totalorder %s40, 1
      %p168 = por %p166, %p167
      %p169 = scmp.ne.s32.totalorder %s160, %s161
      %p170 = scmp.eq.s32.totalorder %s40, 0
      %p171 = por %p169, %p170
      %p172 = scmp.ne.s32.totalorder %s160, %s161
      %p173 = scmp.eq.s32.totalorder %s41, 1
      %p174 = por %p172, %p173
      %p176 = scmp.ne.s32.totalorder %s161, %s175
      %p177 = scmp.eq.s32.totalorder %s41, 0
      %p178 = por %p176, %p177
      %s180 = sadd.s32 %s179, 1
      %p183 = scmp.eq.s32.totalorder %s35, 1
      %p184 = scmp.ne.s32.totalorder %s179, %s181
      %p185 = scmp.eq.s32.totalorder %s35, 0
      %p186 = por %p184, %p185
      %p187 = scmp.ne.s32.totalorder %s179, %s181
      %p188 = scmp.eq.s32.totalorder %s40, 1
      %p189 = por %p187, %p188
      %p190 = scmp.ne.s32.totalorder %s181, %s182
      %p191 = scmp.eq.s32.totalorder %s40, 0
      %p192 = por %p190, %p191
      %p193 = scmp.ne.s32.totalorder %s181, %s182
      %p194 = scmp.eq.s32.totalorder %s41, 1
      %p195 = por %p193, %p194
      %p197 = scmp.ne.s32.totalorder %s182, %s196
      %p198 = scmp.eq.s32.totalorder %s41, 0
      %p199 = por %p197, %p198
      %s201 = sadd.s32 %s200, 1
      %p204 = scmp.eq.s32.totalorder %s35, 1
      %p205 = scmp.ne.s32.totalorder %s200, %s202
      %p206 = scmp.eq.s32.totalorder %s35, 0
      %p207 = por %p205, %p206
      %p208 = scmp.ne.s32.totalorder %s200, %s202
      %p209 = scmp.eq.s32.totalorder %s40, 1
      %p210 = por %p208, %p209
      %p211 = scmp.ne.s32.totalorder %s202, %s203
      %p212 = scmp.eq.s32.totalorder %s40, 0
      %p213 = por %p211, %p212
      %p214 = scmp.ne.s32.totalorder %s202, %s203
      %p215 = scmp.eq.s32.totalorder %s41, 1
      %p216 = por %p214, %p215
      %p218 = scmp.ne.s32.totalorder %s203, %s217
      %p219 = scmp.eq.s32.totalorder %s41, 0
      %p220 = por %p218, %p219
      %s222 = sadd.s32 %s221, 1
      %p225 = scmp.eq.s32.totalorder %s35, 1
      %p226 = scmp.ne.s32.totalorder %s221, %s223
      %p227 = scmp.eq.s32.totalorder %s35, 0
      %p228 = por %p226, %p227
      %p229 = scmp.ne.s32.totalorder %s221, %s223
      %p230 = scmp.eq.s32.totalorder %s40, 1
      %p231 = por %p229, %p230
      %p232 = scmp.ne.s32.totalorder %s223, %s224
      %p233 = scmp.eq.s32.totalorder %s40, 0
      %p234 = por %p232, %p233
      %p235 = scmp.ne.s32.totalorder %s223, %s224
      %p236 = scmp.eq.s32.totalorder %s41, 1
      %p237 = por %p235, %p236
      %p239 = scmp.ne.s32.totalorder %s224, %s238
      %p240 = scmp.eq.s32.totalorder %s41, 0
      %p241 = por %p239, %p240
      %s243 = sadd.s32 %s242, 1
      %p246 = scmp.eq.s32.totalorder %s35, 1
      %p247 = scmp.ne.s32.totalorder %s242, %s244
      %p248 = scmp.eq.s32.totalorder %s35, 0
      %p249 = por %p247, %p248
      %p250 = scmp.ne.s32.totalorder %s242, %s244
      %p251 = scmp.eq.s32.totalorder %s40, 1
      %p252 = por %p250, %p251
      %p253 = scmp.ne.s32.totalorder %s244, %s245
      %p254 = scmp.eq.s32.totalorder %s40, 0
      %p255 = por %p253, %p254
      %p256 = scmp.ne.s32.totalorder %s244, %s245
      %p257 = scmp.eq.s32.totalorder %s41, 1
      %p258 = por %p256, %p257
      %p260 = scmp.ne.s32.totalorder %s245, %s259
      %p261 = scmp.eq.s32.totalorder %s41, 0
      %p262 = por %p260, %p261
      %s263 = ssub.s32 %s35, %s42
      %p264 = scmp.eq.s32.totalorder %s263, 0
      %s266 = sadd.s32 %s265, 1
      %s267 = scalar_select %p264, %s265, %s266
      %p270 = pneg %p264
      %p271 = scmp.eq.s32.totalorder %s35, 1
      %p272 = por %p270, %p271
      %p273 = scmp.ne.s32.totalorder %s265, %s268
      %p274 = scmp.eq.s32.totalorder %s35, 0
      %p275 = por %p273, %p274
      %p276 = scmp.ne.s32.totalorder %s265, %s268
      %p277 = scmp.eq.s32.totalorder %s40, 1
      %p278 = por %p276, %p277
      %p279 = scmp.ne.s32.totalorder %s268, %s269
      %p280 = scmp.eq.s32.totalorder %s40, 0
      %p281 = por %p279, %p280
      %p282 = scmp.ne.s32.totalorder %s268, %s269
      %p283 = scmp.eq.s32.totalorder %s41, 1
      %p284 = por %p282, %p283
      %p286 = scmp.ne.s32.totalorder %s269, %s285
      %p287 = scmp.eq.s32.totalorder %s41, 0
      %p288 = por %p286, %p287
      %s289 = ssub.s32 %s35, %s42
      %p290 = scmp.eq.s32.totalorder %s289, 0
      %s292 = sadd.s32 %s291, 1
      %s293 = scalar_select %p290, %s291, %s292
      %p296 = pneg %p290
      %p297 = scmp.eq.s32.totalorder %s35, 1
      %p298 = por %p296, %p297
      %p299 = scmp.ne.s32.totalorder %s291, %s294
      %p300 = scmp.eq.s32.totalorder %s35, 0
      %p301 = por %p299, %p300
      %p302 = scmp.ne.s32.totalorder %s291, %s294
      %p303 = scmp.eq.s32.totalorder %s40, 1
      %p304 = por %p302, %p303
      %p305 = scmp.ne.s32.totalorder %s294, %s295
      %p306 = scmp.eq.s32.totalorder %s40, 0
      %p307 = por %p305, %p306
      %p308 = scmp.ne.s32.totalorder %s294, %s295
      %p309 = scmp.eq.s32.totalorder %s41, 1
      %p310 = por %p308, %p309
      %p312 = scmp.ne.s32.totalorder %s295, %s311
      %p313 = scmp.eq.s32.totalorder %s41, 0
      %p314 = por %p312, %p313
      %s315 = ssub.s32 %s35, %s42
      %p316 = scmp.eq.s32.totalorder %s315, 0
      %s318 = sadd.s32 %s317, 1
      %s319 = scalar_select %p316, %s317, %s318
      %p322 = pneg %p316
      %p323 = scmp.eq.s32.totalorder %s35, 1
      %p324 = por %p322, %p323
      %p325 = scmp.ne.s32.totalorder %s317, %s320
      %p326 = scmp.eq.s32.totalorder %s35, 0
      %p327 = por %p325, %p326
      %p328 = scmp.ne.s32.totalorder %s317, %s320
      %p329 = scmp.eq.s32.totalorder %s40, 1
      %p330 = por %p328, %p329
      %p331 = scmp.ne.s32.totalorder %s320, %s321
      %p332 = scmp.eq.s32.totalorder %s40, 0
      %p333 = por %p331, %p332
      %p334 = scmp.ne.s32.totalorder %s320, %s321
      %p335 = scmp.eq.s32.totalorder %s41, 1
      %p336 = por %p334, %p335
      %p338 = scmp.ne.s32.totalorder %s321, %s337
      %p339 = scmp.eq.s32.totalorder %s41, 0
      %p340 = por %p338, %p339
      %p341 = scmp.le.s32.totalorder 1, %s35
      %p342 = scmp.lt.s32.totalorder %s35, 3
      %p343 = pnand %p341, %p342
      %p344 = pneg %p343
      // Predicated region
      $region9: #{unconditional_cse_style_mapper_forward.5} parent=5 // pred_check
        _
      $region10: #{unconditional_cse_style_mapper_forward.5} parent=5 // pred_check_branch
        %346 = sbr.rel (%p343) target = $region12
      $region11: #{unconditional_cse_style_mapper_forward.5} parent=5 // pred_region
        %s347 = ssub.s32 %s35, 1
        // Predicated region
        $region13: #{unconditional_cse_style_mapper_forward.5} parent=11 // pred_check
          %p348 = pneg %p108
        $region14: #{unconditional_cse_style_mapper_forward.5} parent=11 // pred_check_branch
          %350 = sbr.rel (%p348) target = $region16
        $region15: #{unconditional_cse_style_mapper_forward.5} parent=11 // pred_region
          %s352 = ssub.s32 512, 512
          %353 = vsyncadd [#allocation6], %s352
          %s354 = sshll.u32 [#allocation7], 4
          %s355 = int_to_ptr.vmem [resolvable:$true] %s354
          %360 = dma.hbm_to_vmem [thread:$0]  %s2, 512, %s355, [#allocation6], 64, 64, 4
        $region16: #{unconditional_cse_style_mapper_forward.5} parent=11 // pred_fallthru
          _
        // Predicated region
        $region17: #{unconditional_cse_style_mapper_forward.5} parent=11 // pred_check
          %p361 = pneg %p129
        $region18: #{unconditional_cse_style_mapper_forward.5} parent=11 // pred_check_branch
          %363 = sbr.rel (%p361) target = $region20
        $region19: #{unconditional_cse_style_mapper_forward.5} parent=11 // pred_region
          %s365 = ssub.s32 256, 256
          %366 = vsyncadd [#allocation9], %s365
          %s367 = sshll.u32 [#allocation8], 4
          %s368 = int_to_ptr.vmem [resolvable:$true] %s367
          %373 = dma.hbm_to_vmem [thread:$0]  %s3, 256, %s368, [#allocation9], 64, 64, 4
        $region20: #{unconditional_cse_style_mapper_forward.5} parent=11 // pred_fallthru
          _
        // Predicated region
        $region21: #{unconditional_cse_style_mapper_forward.5} parent=11 // pred_check
          %p374 = pneg %p150
        $region22: #{unconditional_cse_style_mapper_forward.5} parent=11 // pred_check_branch
          %376 = sbr.rel (%p374) target = $region24
        $region23: #{unconditional_cse_style_mapper_forward.5} parent=11 // pred_region
          %s378 = ssub.s32 16, 16
          %379 = vsyncadd [#allocation9], %s378
          %s381 = sshll.u32 [#allocation10], 4
          %s382 = int_to_ptr.vmem [resolvable:$true] %s381
          %384 = dma.hbm_to_vmem [thread:$0]  %s4, 16, %s382, [#allocation9]
        $region24: #{unconditional_cse_style_mapper_forward.5} parent=11 // pred_fallthru
          _
        // Predicated region
        $region25: #{unconditional_cse_style_mapper_forward.5} parent=11 // pred_check
          %p385 = pneg %p171
        $region26: #{unconditional_cse_style_mapper_forward.5} parent=11 // pred_check_branch
          %387 = sbr.rel (%p385) target = $region28
        $region27: #{unconditional_cse_style_mapper_forward.5} parent=11 // pred_region
          %s389 = ssub.s32 16, 16
          %390 = vsyncadd [#allocation12], %s389
          %s392 = sshll.u32 [#allocation11], 4
          %s393 = int_to_ptr.vmem [resolvable:$true] %s392
          %395 = dma.hbm_to_vmem [thread:$0]  %s5, 16, %s393, [#allocation12]
        $region28: #{unconditional_cse_style_mapper_forward.5} parent=11 // pred_fallthru
          _
        // Predicated region
        $region29: #{unconditional_cse_style_mapper_forward.5} parent=11 // pred_check
          %p396 = pneg %p192
        $region30: #{unconditional_cse_style_mapper_forward.5} parent=11 // pred_check_branch
          %398 = sbr.rel (%p396) target = $region32
        $region31: #{unconditional_cse_style_mapper_forward.5} parent=11 // pred_region
          %s400 = ssub.s32 256, 256
          %401 = vsyncadd [#allocation12], %s400
          %s402 = sshll.u32 [#allocation13], 4
          %s403 = int_to_ptr.vmem [resolvable:$true] %s402
          %408 = dma.hbm_to_vmem [thread:$0]  %s6, 256, %s403, [#allocation12], 64, 64, 4
        $region32: #{unconditional_cse_style_mapper_forward.5} parent=11 // pred_fallthru
          _
        // Predicated region
        $region33: #{unconditional_cse_style_mapper_forward.5} parent=11 // pred_check
          %p409 = pneg %p213
        $region34: #{unconditional_cse_style_mapper_forward.5} parent=11 // pred_check_branch
          %411 = sbr.rel (%p409) target = $region36
        $region35: #{unconditional_cse_style_mapper_forward.5} parent=11 // pred_region
          %s413 = ssub.s32 16, 16
          %414 = vsyncadd [#allocation15], %s413
          %s416 = sshll.u32 [#allocation14], 4
          %s417 = int_to_ptr.vmem [resolvable:$true] %s416
          %419 = dma.hbm_to_vmem [thread:$0]  %s7, 16, %s417, [#allocation15]
        $region36: #{unconditional_cse_style_mapper_forward.5} parent=11 // pred_fallthru
          _
        // Predicated region
        $region37: #{unconditional_cse_style_mapper_forward.5} parent=11 // pred_check
          %p420 = pneg %p234
        $region38: #{unconditional_cse_style_mapper_forward.5} parent=11 // pred_check_branch
          %422 = sbr.rel (%p420) target = $region40
        $region39: #{unconditional_cse_style_mapper_forward.5} parent=11 // pred_region
          %s424 = ssub.s32 256, 256
          %425 = vsyncadd [#allocation15], %s424
          %s426 = sshll.u32 [#allocation16], 4
          %s427 = int_to_ptr.vmem [resolvable:$true] %s426
          %432 = dma.hbm_to_vmem [thread:$0]  %s8, 256, %s427, [#allocation15], 64, 64, 4
        $region40: #{unconditional_cse_style_mapper_forward.5} parent=11 // pred_fallthru
          _
        // Predicated region
        $region41: #{unconditional_cse_style_mapper_forward.5} parent=11 // pred_check
          %p433 = pneg %p255
        $region42: #{unconditional_cse_style_mapper_forward.5} parent=11 // pred_check_branch
          %435 = sbr.rel (%p433) target = $region44
        $region43: #{unconditional_cse_style_mapper_forward.5} parent=11 // pred_region
          %s437 = ssub.s32 16, 16
          %438 = vsyncadd [#allocation18], %s437
          %s440 = sshll.u32 [#allocation17], 4
          %s441 = int_to_ptr.vmem [resolvable:$true] %s440
          %443 = dma.hbm_to_vmem [thread:$0]  %s9, 16, %s441, [#allocation18]
        $region44: #{unconditional_cse_style_mapper_forward.5} parent=11 // pred_fallthru
          _
      $region12: #{unconditional_cse_style_mapper_forward.5} parent=5 // pred_fallthru
        _
      %p444 = scmp.lt.s32.totalorder %s35, 2
      // Predicated region
      $region45: #{unconditional_cse_style_mapper_forward.5} parent=5 // pred_check
        %p445 = pneg %p444
      $region46: #{unconditional_cse_style_mapper_forward.5} parent=5 // pred_check_branch
        %447 = sbr.rel (%p445) target = $region48
      $region47: #{unconditional_cse_style_mapper_forward.5} parent=5 // pred_region
        // Predicated region
        $region49: #{unconditional_cse_style_mapper_forward.5} parent=47 // pred_check
          %p448 = pneg %p55
        $region50: #{unconditional_cse_style_mapper_forward.5} parent=47 // pred_check_branch
          %450 = sbr.rel (%p448) target = $region52
        $region51: #{unconditional_cse_style_mapper_forward.5} parent=47 // pred_region
          %s451 = sand.u32 %s45, 1
          %s452 = scalar_lea.sflag [#allocation3], %s451
          %s453 = sand.u32 %s45, 1
          %s454 = smul.addr %s453, 256
          %s455 = scalar_lea.vmem [#allocation2], %s454
          %s456 = smul.u32 32, %s35
          %s458 = ssub.s32 4096, 4096
          %459 = vsyncadd %s452, %s458
          %s460 = smul.addr %s456, 128
          %s461 = scalar_lea.hbm %s0, %s460
          %s462 = sshll.u32 %s455, 4
          %s463 = int_to_ptr.vmem [resolvable:$true] %s462
          %468 = dma.hbm_to_vmem [thread:$0]  %s461, 4096, %s463, %s452, 128, 128, 8
        $region52: #{unconditional_cse_style_mapper_forward.5} parent=47 // pred_fallthru
          _
        // Predicated region
        $region53: #{unconditional_cse_style_mapper_forward.5} parent=47 // pred_check
          %p469 = pneg %p81
        $region54: #{unconditional_cse_style_mapper_forward.5} parent=47 // pred_check_branch
          %471 = sbr.rel (%p469) target = $region56
        $region55: #{unconditional_cse_style_mapper_forward.5} parent=47 // pred_region
          %s472 = sand.u32 %s35, 1
          %s473 = scalar_lea.sflag [#allocation6], %s472
          %s474 = sand.u32 %s71, 1
          %s475 = smul.addr %s474, 256
          %s476 = scalar_lea.vmem [#allocation5], %s475
          %s477 = smul.u32 32, %s35
          %s479 = ssub.s32 4096, 4096
          %480 = vsyncadd %s473, %s479
          %s481 = smul.addr %s477, 128
          %s482 = scalar_lea.hbm %s1, %s481
          %s483 = sshll.u32 %s476, 4
          %s484 = int_to_ptr.vmem [resolvable:$true] %s483
          %489 = dma.hbm_to_vmem [thread:$0]  %s482, 4096, %s484, %s473, 128, 128, 8
        $region56: #{unconditional_cse_style_mapper_forward.5} parent=47 // pred_fallthru
          _
      $region48: #{unconditional_cse_style_mapper_forward.5} parent=5 // pred_fallthru
        _
      %p490 = scmp.le.s32.totalorder 1, %s35
      %p491 = scmp.lt.s32.totalorder %s35, 3
      %p492 = pnand %p490, %p491
      %p493 = pneg %p492
      // Predicated region
      $region57: #{unconditional_cse_style_mapper_forward.5} parent=5 // pred_check
        _
      $region58: #{unconditional_cse_style_mapper_forward.5} parent=5 // pred_check_branch
        %495 = sbr.rel (%p492) target = $region60
      $region59: #{unconditional_cse_style_mapper_forward.5} parent=5 // pred_region
        %s496 = ssub.s32 %s35, 1
        %s497 = sand.u32 %s48, 1
        %s498 = scalar_lea.sflag [#allocation3], %s497
        %s499 = sand.u32 %s48, 1
        %s500 = smul.addr %s499, 256
        %s501 = scalar_lea.vmem [#allocation2], %s500
        // Predicated region
        $region61: #{unconditional_cse_style_mapper_forward.5} parent=59 // pred_check
          %p502 = pneg %p61
        $region62: #{unconditional_cse_style_mapper_forward.5} parent=59 // pred_check_branch
          %504 = sbr.rel (%p502) target = $region64
        $region63: #{unconditional_cse_style_mapper_forward.5} parent=59 // pred_region
          %505 = dma.done %s498, 4096
        $region64: #{unconditional_cse_style_mapper_forward.5} parent=59 // pred_fallthru
          _
        %s506 = sand.u32 %s40, 1
        %s507 = scalar_lea.sflag [#allocation6], %s506
        %s508 = sand.u32 %s74, 1
        %s509 = smul.addr %s508, 256
        %s510 = scalar_lea.vmem [#allocation5], %s509
        // Predicated region
        $region65: #{unconditional_cse_style_mapper_forward.5} parent=59 // pred_check
          %p511 = pneg %p87
        $region66: #{unconditional_cse_style_mapper_forward.5} parent=59 // pred_check_branch
          %513 = sbr.rel (%p511) target = $region68
        $region67: #{unconditional_cse_style_mapper_forward.5} parent=59 // pred_region
          %514 = dma.done %s507, 4096
        $region68: #{unconditional_cse_style_mapper_forward.5} parent=59 // pred_fallthru
          _
        // Predicated region
        $region69: #{unconditional_cse_style_mapper_forward.5} parent=59 // pred_check
          %p515 = pneg %p108
        $region70: #{unconditional_cse_style_mapper_forward.5} parent=59 // pred_check_branch
          %517 = sbr.rel (%p515) target = $region72
        $region71: #{unconditional_cse_style_mapper_forward.5} parent=59 // pred_region
          %518 = dma.done [#allocation6], 512
        $region72: #{unconditional_cse_style_mapper_forward.5} parent=59 // pred_fallthru
          _
        // Predicated region
        $region73: #{unconditional_cse_style_mapper_forward.5} parent=59 // pred_check
          %p519 = pneg %p129
        $region74: #{unconditional_cse_style_mapper_forward.5} parent=59 // pred_check_branch
          %521 = sbr.rel (%p519) target = $region76
        $region75: #{unconditional_cse_style_mapper_forward.5} parent=59 // pred_region
          %522 = dma.done [#allocation9], 256
        $region76: #{unconditional_cse_style_mapper_forward.5} parent=59 // pred_fallthru
          _
        // Predicated region
        $region77: #{unconditional_cse_style_mapper_forward.5} parent=59 // pred_check
          %p523 = pneg %p150
        $region78: #{unconditional_cse_style_mapper_forward.5} parent=59 // pred_check_branch
          %525 = sbr.rel (%p523) target = $region80
        $region79: #{unconditional_cse_style_mapper_forward.5} parent=59 // pred_region
          %526 = dma.done [#allocation9], 16
        $region80: #{unconditional_cse_style_mapper_forward.5} parent=59 // pred_fallthru
          _
        // Predicated region
        $region81: #{unconditional_cse_style_mapper_forward.5} parent=59 // pred_check
          %p527 = pneg %p171
        $region82: #{unconditional_cse_style_mapper_forward.5} parent=59 // pred_check_branch
          %529 = sbr.rel (%p527) target = $region84
        $region83: #{unconditional_cse_style_mapper_forward.5} parent=59 // pred_region
          %530 = dma.done [#allocation12], 16
        $region84: #{unconditional_cse_style_mapper_forward.5} parent=59 // pred_fallthru
          _
        // Predicated region
        $region85: #{unconditional_cse_style_mapper_forward.5} parent=59 // pred_check
          %p531 = pneg %p192
        $region86: #{unconditional_cse_style_mapper_forward.5} parent=59 // pred_check_branch
          %533 = sbr.rel (%p531) target = $region88
        $region87: #{unconditional_cse_style_mapper_forward.5} parent=59 // pred_region
          %534 = dma.done [#allocation12], 256
        $region88: #{unconditional_cse_style_mapper_forward.5} parent=59 // pred_fallthru
          _
        // Predicated region
        $region89: #{unconditional_cse_style_mapper_forward.5} parent=59 // pred_check
          %p535 = pneg %p213
        $region90: #{unconditional_cse_style_mapper_forward.5} parent=59 // pred_check_branch
          %537 = sbr.rel (%p535) target = $region92
        $region91: #{unconditional_cse_style_mapper_forward.5} parent=59 // pred_region
          %538 = dma.done [#allocation15], 16
        $region92: #{unconditional_cse_style_mapper_forward.5} parent=59 // pred_fallthru
          _
        // Predicated region
        $region93: #{unconditional_cse_style_mapper_forward.5} parent=59 // pred_check
          %p539 = pneg %p234
        $region94: #{unconditional_cse_style_mapper_forward.5} parent=59 // pred_check_branch
          %541 = sbr.rel (%p539) target = $region96
        $region95: #{unconditional_cse_style_mapper_forward.5} parent=59 // pred_region
          %542 = dma.done [#allocation15], 256
        $region96: #{unconditional_cse_style_mapper_forward.5} parent=59 // pred_fallthru
          _
        // Predicated region
        $region97: #{unconditional_cse_style_mapper_forward.5} parent=59 // pred_check
          %p543 = pneg %p255
        $region98: #{unconditional_cse_style_mapper_forward.5} parent=59 // pred_check_branch
          %545 = sbr.rel (%p543) target = $region100
        $region99: #{unconditional_cse_style_mapper_forward.5} parent=59 // pred_region
          %546 = dma.done [#allocation18], 16
        $region100: #{unconditional_cse_style_mapper_forward.5} parent=59 // pred_fallthru
          _
        %s547 = sand.u32 %s48, 1
        %s548 = scalar_lea.sflag [#allocation3], %s547
        %s549 = sand.u32 %s48, 1
        %s550 = smul.addr %s549, 256
        %s551 = scalar_lea.vmem [#allocation2], %s550
        %p552 = pneg %p61
        %p553 = pneg %p58
        %s554 = sand.u32 %s40, 1
        %s555 = scalar_lea.sflag [#allocation6], %s554
        %s556 = sand.u32 %s74, 1
        %s557 = smul.addr %s556, 256
        %s558 = scalar_lea.vmem [#allocation5], %s557
        %p559 = pneg %p87
        %p560 = pneg %p84
        %p561 = pneg %p108
        %p562 = pneg %p105
        %p563 = pneg %p129
        %p564 = pneg %p126
        %p565 = pneg %p150
        %p566 = pneg %p147
        %p567 = pneg %p171
        %p568 = pneg %p168
        %p569 = pneg %p192
        %p570 = pneg %p189
        %p571 = pneg %p213
        %p572 = pneg %p210
        %p573 = pneg %p234
        %p574 = pneg %p231
        %p575 = pneg %p255
        %p576 = pneg %p252
        %p577 = pneg %p281
        %p578 = pneg %p278
        %s579 = sand.u32 %s268, 1
        %s580 = scalar_lea.sflag [#allocation4], %s579
        %s581 = sand.u32 %s268, 1
        %s582 = smul.addr %s581, 128
        %s583 = scalar_lea.vmem [#allocation19], %s582
        %p584 = pneg %p307
        %p585 = pneg %p304
        %s586 = sand.u32 %s40, 1
        %s587 = scalar_lea.sflag [#allocation21], %s586
        %s588 = sand.u32 %s294, 1
        %s589 = smul.addr %s588, 256
        %s590 = scalar_lea.vmem [#allocation20], %s589
        %p591 = pneg %p333
        %p592 = pneg %p330
        %s593 = sand.u32 %s40, 1
        %s594 = scalar_lea.sflag [#allocation21], %s593
        %s595 = sand.u32 %s320, 1
        %s596 = smul.addr %s595, 256
        %s597 = scalar_lea.vmem [#allocation22], %s596
        %s598 = smul.u32 32, %s40
        %s599 = smul.u32 32, %s40
        %s600 = smul.u32 32, %s40
        %s601 = smul.u32 32, %s40
        %s602 = smul.u32 32, %s40
        %v604 = vld [vmem:[%s501] sm:$0xff]
        %v605 = vld [vmem:[%s501 + $0x8] sm:$0xff]
        %v606 = vld [vmem:[%s501 + $0x10] sm:$0xff]
        %v607 = vld [vmem:[%s501 + $0x18] sm:$0xff]
        %v608 = vld [vmem:[%s501 + $0x20] sm:$0xff]
        %v609 = vld [vmem:[%s501 + $0x28] sm:$0xff]
        %v610 = vld [vmem:[%s501 + $0x30] sm:$0xff]
        %v611 = vld [vmem:[%s501 + $0x38] sm:$0xff]
        %v612 = vld [vmem:[%s501 + $0x40] sm:$0xff]
        %v613 = vld [vmem:[%s501 + $0x48] sm:$0xff]
        %v614 = vld [vmem:[%s501 + $0x50] sm:$0xff]
        %v615 = vld [vmem:[%s501 + $0x58] sm:$0xff]
        %v616 = vld [vmem:[%s501 + $0x60] sm:$0xff]
        %v617 = vld [vmem:[%s501 + $0x68] sm:$0xff]
        %v618 = vld [vmem:[%s501 + $0x70] sm:$0xff]
        %v619 = vld [vmem:[%s501 + $0x78] sm:$0xff]
        %v620 = vld [vmem:[%s501 + $0x80] sm:$0xff]
        %v621 = vld [vmem:[%s501 + $0x88] sm:$0xff]
        %v622 = vld [vmem:[%s501 + $0x90] sm:$0xff]
        %v623 = vld [vmem:[%s501 + $0x98] sm:$0xff]
        %v624 = vld [vmem:[%s501 + $0xa0] sm:$0xff]
        %v625 = vld [vmem:[%s501 + $0xa8] sm:$0xff]
        %v626 = vld [vmem:[%s501 + $0xb0] sm:$0xff]
        %v627 = vld [vmem:[%s501 + $0xb8] sm:$0xff]
        %v628 = vld [vmem:[%s501 + $0xc0] sm:$0xff]
        %v629 = vld [vmem:[%s501 + $0xc8] sm:$0xff]
        %v630 = vld [vmem:[%s501 + $0xd0] sm:$0xff]
        %v631 = vld [vmem:[%s501 + $0xd8] sm:$0xff]
        %v632 = vld [vmem:[%s501 + $0xe0] sm:$0xff]
        %v633 = vld [vmem:[%s501 + $0xe8] sm:$0xff]
        %v634 = vld [vmem:[%s501 + $0xf0] sm:$0xff]
        %v635 = vld [vmem:[%s501 + $0xf8] sm:$0xff]
        %v636 = vlaneseq
        %v637 = vand.u32 %v636, 127
        %638 = vset.pattern.permute.xlu0 0
        %639 = vperm.xlu0 %638, %v604
        %v640 = vpop.permute.xlu0 %639
        %641 = vset.pattern.permute.xlu0 0
        %642 = vperm.xlu0 %641, %v605
        %v643 = vpop.permute.xlu0 %642
        %644 = vset.pattern.permute.xlu0 0
        %645 = vperm.xlu0 %644, %v606
        %v646 = vpop.permute.xlu0 %645
        %647 = vset.pattern.permute.xlu0 0
        %648 = vperm.xlu0 %647, %v607
        %v649 = vpop.permute.xlu0 %648
        %650 = vset.pattern.permute.xlu0 0
        %651 = vperm.xlu0 %650, %v608
        %v652 = vpop.permute.xlu0 %651
        %653 = vset.pattern.permute.xlu0 0
        %654 = vperm.xlu0 %653, %v609
        %v655 = vpop.permute.xlu0 %654
        %656 = vset.pattern.permute.xlu0 0
        %657 = vperm.xlu0 %656, %v610
        %v658 = vpop.permute.xlu0 %657
        %659 = vset.pattern.permute.xlu0 0
        %660 = vperm.xlu0 %659, %v611
        %v661 = vpop.permute.xlu0 %660
        %662 = vset.pattern.permute.xlu0 0
        %663 = vperm.xlu0 %662, %v612
        %v664 = vpop.permute.xlu0 %663
        %665 = vset.pattern.permute.xlu0 0
        %666 = vperm.xlu0 %665, %v613
        %v667 = vpop.permute.xlu0 %666
        %668 = vset.pattern.permute.xlu0 0
        %669 = vperm.xlu0 %668, %v614
        %v670 = vpop.permute.xlu0 %669
        %671 = vset.pattern.permute.xlu0 0
        %672 = vperm.xlu0 %671, %v615
        %v673 = vpop.permute.xlu0 %672
        %674 = vset.pattern.permute.xlu0 0
        %675 = vperm.xlu0 %674, %v616
        %v676 = vpop.permute.xlu0 %675
        %677 = vset.pattern.permute.xlu0 0
        %678 = vperm.xlu0 %677, %v617
        %v679 = vpop.permute.xlu0 %678
        %680 = vset.pattern.permute.xlu0 0
        %681 = vperm.xlu0 %680, %v618
        %v682 = vpop.permute.xlu0 %681
        %683 = vset.pattern.permute.xlu0 0
        %684 = vperm.xlu0 %683, %v619
        %v685 = vpop.permute.xlu0 %684
        %686 = vset.pattern.permute.xlu0 0
        %687 = vperm.xlu0 %686, %v620
        %v688 = vpop.permute.xlu0 %687
        %689 = vset.pattern.permute.xlu0 0
        %690 = vperm.xlu0 %689, %v621
        %v691 = vpop.permute.xlu0 %690
        %692 = vset.pattern.permute.xlu0 0
        %693 = vperm.xlu0 %692, %v622
        %v694 = vpop.permute.xlu0 %693
        %695 = vset.pattern.permute.xlu0 0
        %696 = vperm.xlu0 %695, %v623
        %v697 = vpop.permute.xlu0 %696
        %698 = vset.pattern.permute.xlu0 0
        %699 = vperm.xlu0 %698, %v624
        %v700 = vpop.permute.xlu0 %699
        %701 = vset.pattern.permute.xlu0 0
        %702 = vperm.xlu0 %701, %v625
        %v703 = vpop.permute.xlu0 %702
        %704 = vset.pattern.permute.xlu0 0
        %705 = vperm.xlu0 %704, %v626
        %v706 = vpop.permute.xlu0 %705
        %707 = vset.pattern.permute.xlu0 0
        %708 = vperm.xlu0 %707, %v627
        %v709 = vpop.permute.xlu0 %708
        %710 = vset.pattern.permute.xlu0 0
        %711 = vperm.xlu0 %710, %v628
        %v712 = vpop.permute.xlu0 %711
        %713 = vset.pattern.permute.xlu0 0
        %714 = vperm.xlu0 %713, %v629
        %v715 = vpop.permute.xlu0 %714
        %716 = vset.pattern.permute.xlu0 0
        %717 = vperm.xlu0 %716, %v630
        %v718 = vpop.permute.xlu0 %717
        %719 = vset.pattern.permute.xlu0 0
        %720 = vperm.xlu0 %719, %v631
        %v721 = vpop.permute.xlu0 %720
        %722 = vset.pattern.permute.xlu0 0
        %723 = vperm.xlu0 %722, %v632
        %v724 = vpop.permute.xlu0 %723
        %725 = vset.pattern.permute.xlu0 0
        %726 = vperm.xlu0 %725, %v633
        %v727 = vpop.permute.xlu0 %726
        %728 = vset.pattern.permute.xlu0 0
        %729 = vperm.xlu0 %728, %v634
        %v730 = vpop.permute.xlu0 %729
        %731 = vset.pattern.permute.xlu0 0
        %732 = vperm.xlu0 %731, %v635
        %v733 = vpop.permute.xlu0 %732
        %vm734 = vcmp.eq.s32.totalorder %v640, %v637
        %vm735 = vcmp.eq.s32.totalorder %v643, %v637
        %vm736 = vcmp.eq.s32.totalorder %v646, %v637
        %vm737 = vcmp.eq.s32.totalorder %v649, %v637
        %vm738 = vcmp.eq.s32.totalorder %v652, %v637
        %vm739 = vcmp.eq.s32.totalorder %v655, %v637
        %vm740 = vcmp.eq.s32.totalorder %v658, %v637
        %vm741 = vcmp.eq.s32.totalorder %v661, %v637
        %vm742 = vcmp.eq.s32.totalorder %v664, %v637
        %vm743 = vcmp.eq.s32.totalorder %v667, %v637
        %vm744 = vcmp.eq.s32.totalorder %v670, %v637
        %vm745 = vcmp.eq.s32.totalorder %v673, %v637
        %vm746 = vcmp.eq.s32.totalorder %v676, %v637
        %vm747 = vcmp.eq.s32.totalorder %v679, %v637
        %vm748 = vcmp.eq.s32.totalorder %v682, %v637
        %vm749 = vcmp.eq.s32.totalorder %v685, %v637
        %vm750 = vcmp.eq.s32.totalorder %v688, %v637
        %vm751 = vcmp.eq.s32.totalorder %v691, %v637
        %vm752 = vcmp.eq.s32.totalorder %v694, %v637
        %vm753 = vcmp.eq.s32.totalorder %v697, %v637
        %vm754 = vcmp.eq.s32.totalorder %v700, %v637
        %vm755 = vcmp.eq.s32.totalorder %v703, %v637
        %vm756 = vcmp.eq.s32.totalorder %v706, %v637
        %vm757 = vcmp.eq.s32.totalorder %v709, %v637
        %vm758 = vcmp.eq.s32.totalorder %v712, %v637
        %vm759 = vcmp.eq.s32.totalorder %v715, %v637
        %vm760 = vcmp.eq.s32.totalorder %v718, %v637
        %vm761 = vcmp.eq.s32.totalorder %v721, %v637
        %vm762 = vcmp.eq.s32.totalorder %v724, %v637
        %vm763 = vcmp.eq.s32.totalorder %v727, %v637
        %vm764 = vcmp.eq.s32.totalorder %v730, %v637
        %vm765 = vcmp.eq.s32.totalorder %v733, %v637
        %v766 = vsel %vm734, 1.0, 0.0
        %v767 = vsel %vm735, 1.0, 0.0
        %v768 = vsel %vm736, 1.0, 0.0
        %v769 = vsel %vm737, 1.0, 0.0
        %v770 = vsel %vm738, 1.0, 0.0
        %v771 = vsel %vm739, 1.0, 0.0
        %v772 = vsel %vm740, 1.0, 0.0
        %v773 = vsel %vm741, 1.0, 0.0
        %v774 = vsel %vm742, 1.0, 0.0
        %v775 = vsel %vm743, 1.0, 0.0
        %v776 = vsel %vm744, 1.0, 0.0
        %v777 = vsel %vm745, 1.0, 0.0
        %v778 = vsel %vm746, 1.0, 0.0
        %v779 = vsel %vm747, 1.0, 0.0
        %v780 = vsel %vm748, 1.0, 0.0
        %v781 = vsel %vm749, 1.0, 0.0
        %v782 = vsel %vm750, 1.0, 0.0
        %v783 = vsel %vm751, 1.0, 0.0
        %v784 = vsel %vm752, 1.0, 0.0
        %v785 = vsel %vm753, 1.0, 0.0
        %v786 = vsel %vm754, 1.0, 0.0
        %v787 = vsel %vm755, 1.0, 0.0
        %v788 = vsel %vm756, 1.0, 0.0
        %v789 = vsel %vm757, 1.0, 0.0
        %v790 = vsel %vm758, 1.0, 0.0
        %v791 = vsel %vm759, 1.0, 0.0
        %v792 = vsel %vm760, 1.0, 0.0
        %v793 = vsel %vm761, 1.0, 0.0
        %v794 = vsel %vm762, 1.0, 0.0
        %v795 = vsel %vm763, 1.0, 0.0
        %v796 = vsel %vm764, 1.0, 0.0
        %v797 = vsel %vm765, 1.0, 0.0
        %v798 = vpack.c.bf16 %v767, %v766
        %v799 = vpack.c.bf16 %v769, %v768
        %v800 = vpack.c.bf16 %v771, %v770
        %v801 = vpack.c.bf16 %v773, %v772
        %v802 = vpack.c.bf16 %v775, %v774
        %v803 = vpack.c.bf16 %v777, %v776
        %v804 = vpack.c.bf16 %v779, %v778
        %v805 = vpack.c.bf16 %v781, %v780
        %v806 = vpack.c.bf16 %v783, %v782
        %v807 = vpack.c.bf16 %v785, %v784
        %v808 = vpack.c.bf16 %v787, %v786
        %v809 = vpack.c.bf16 %v789, %v788
        %v810 = vpack.c.bf16 %v791, %v790
        %v811 = vpack.c.bf16 %v793, %v792
        %v812 = vpack.c.bf16 %v795, %v794
        %v813 = vpack.c.bf16 %v797, %v796
        %v814 = vld [vmem:[#allocation7] sm:$0xf]
        %v815 = vld [vmem:[#allocation7 + $0x4] sm:$0xf]
        %v816 = vld [vmem:[#allocation7 + $0x8] sm:$0xf]
        %v817 = vld [vmem:[#allocation7 + $0xc] sm:$0xf]
        %v818 = vld [vmem:[#allocation7 + $0x10] sm:$0xf]
        %v819 = vld [vmem:[#allocation7 + $0x14] sm:$0xf]
        %v820 = vld [vmem:[#allocation7 + $0x18] sm:$0xf]
        %v821 = vld [vmem:[#allocation7 + $0x1c] sm:$0xf]
        %v830 = vunpack.c.l.b16 %v814
        %v831 = vunpack.c.l.b16 %v815
        %v832 = vunpack.c.l.b16 %v816
        %v833 = vunpack.c.l.b16 %v817
        %v834 = vunpack.c.l.b16 %v818
        %v835 = vunpack.c.l.b16 %v819
        %v836 = vunpack.c.l.b16 %v820
        %v837 = vunpack.c.l.b16 %v821
        %v838 = vpack.c.b16 %v831, %v830
        %v839 = vpack.c.b16 %v833, %v832
        %v840 = vpack.c.b16 %v835, %v834
        %v841 = vpack.c.b16 %v837, %v836
        %vm846 = vcmask 523264
        %v848 = vsel %vm846, %v798, 0
        %v851 = vsel %vm846, %v799, 0
        %v854 = vsel %vm846, %v800, 0
        %v857 = vsel %vm846, %v801, 0
        %v860 = vsel %vm846, %v802, 0
        %v863 = vsel %vm846, %v803, 0
        %v866 = vsel %vm846, %v804, 0
        %v869 = vsel %vm846, %v805, 0
        %v872 = vsel %vm846, %v806, 0
        %v875 = vsel %vm846, %v807, 0
        %v878 = vsel %vm846, %v808, 0
        %v881 = vsel %vm846, %v809, 0
        %v884 = vsel %vm846, %v810, 0
        %v887 = vsel %vm846, %v811, 0
        %v890 = vsel %vm846, %v812, 0
        %v893 = vsel %vm846, %v813, 0
        %895 = vmatprep.subr.bf16.mxu0 0
        %896 = vmatpush1.bf16.msra.mxu0 %v838
        %897 = vmatprep.subr.bf16.mxu0 0
        %898 = vmatpush1.bf16.msra.mxu0 %v839
        %899 = vmatprep.subr.bf16.mxu0 0
        %900 = vmatpush1.bf16.msra.mxu0 %v840
        %901 = vmatprep.subr.bf16.mxu0 0
        %902 = vmatpush1.bf16.msra.mxu0 %v841
        %903 = vmatprep.subr.bf16.mxu0 0
        %904 = vmatpush1.bf16.msra.mxu0 0
        %905 = vmatprep.subr.bf16.mxu0 0
        %906 = vmatpush1.bf16.msra.mxu0 0
        %907 = vmatprep.subr.bf16.mxu0 0
        %908 = vmatpush1.bf16.msra.mxu0 0
        %909 = vmatprep.subr.bf16.mxu0 0
        %910 = vmatpush1.bf16.msra.mxu0 0
        %911 = vmatprep.subr.bf16.mxu0 0
        %912 = vmatpush1.bf16.msra.mxu0 0
        %913 = vmatprep.subr.bf16.mxu0 0
        %914 = vmatpush1.bf16.msra.mxu0 0
        %915 = vmatprep.subr.bf16.mxu0 0
        %916 = vmatpush1.bf16.msra.mxu0 0
        %917 = vmatprep.subr.bf16.mxu0 0
        %918 = vmatpush1.bf16.msra.mxu0 0
        %919 = vmatprep.subr.bf16.mxu0 0
        %920 = vmatpush1.bf16.msra.mxu0 0
        %921 = vmatprep.subr.bf16.mxu0 0
        %922 = vmatpush1.bf16.msra.mxu0 0
        %923 = vmatprep.subr.bf16.mxu0 0
        %924 = vmatpush1.bf16.msra.mxu0 0
        %925 = vmatprep.subr.bf16.mxu0 0
        %926 = vmatpush1.bf16.msra.mxu0 0
        %927 = vmatprep.mubr.bf16.mxu0 0
        %928 = vmatmul.mubr.bf16.gmra.mrb[0].mxu0 %v848
        %v929 = vpop.f32.mrb[0].mxu0
        %v930 = vadd.f32 0.0, %v929
        %v931 = vpop.f32.mrb[0].mxu0
        %v932 = vpop.f32.mrb[0].mxu0
        %v933 = vadd.f32 0.0, %v932
        %v934 = vpop.f32.mrb[0].mxu0
        %935 = vmatprep.mubr.bf16.mxu0 0
        %936 = vmatmul.mubr.bf16.gmra.mrb[0].mxu0 %v851
        %v937 = vpop.f32.mrb[0].mxu0
        %v938 = vadd.f32 0.0, %v937
        %v939 = vpop.f32.mrb[0].mxu0
        %v940 = vpop.f32.mrb[0].mxu0
        %v941 = vadd.f32 0.0, %v940
        %v942 = vpop.f32.mrb[0].mxu0
        %943 = vmatprep.mubr.bf16.mxu0 0
        %944 = vmatmul.mubr.bf16.gmra.mrb[0].mxu0 %v854
        %v945 = vpop.f32.mrb[0].mxu0
        %v946 = vadd.f32 0.0, %v945
        %v947 = vpop.f32.mrb[0].mxu0
        %v948 = vpop.f32.mrb[0].mxu0
        %v949 = vadd.f32 0.0, %v948
        %v950 = vpop.f32.mrb[0].mxu0
        %951 = vmatprep.mubr.bf16.mxu0 0
        %952 = vmatmul.mubr.bf16.gmra.mrb[0].mxu0 %v857
        %v953 = vpop.f32.mrb[0].mxu0
        %v954 = vadd.f32 0.0, %v953
        %v955 = vpop.f32.mrb[0].mxu0
        %v956 = vpop.f32.mrb[0].mxu0
        %v957 = vadd.f32 0.0, %v956
        %v958 = vpop.f32.mrb[0].mxu0
        %959 = vmatprep.mubr.bf16.mxu0 0
        %960 = vmatmul.mubr.bf16.gmra.mrb[0].mxu0 %v860
        %v961 = vpop.f32.mrb[0].mxu0
        %v962 = vadd.f32 0.0, %v961
        %v963 = vpop.f32.mrb[0].mxu0
        %v964 = vpop.f32.mrb[0].mxu0
        %v965 = vadd.f32 0.0, %v964
        %v966 = vpop.f32.mrb[0].mxu0
        %967 = vmatprep.mubr.bf16.mxu0 0
        %968 = vmatmul.mubr.bf16.gmra.mrb[0].mxu0 %v863
        %v969 = vpop.f32.mrb[0].mxu0
        %v970 = vadd.f32 0.0, %v969
        %v971 = vpop.f32.mrb[0].mxu0
        %v972 = vpop.f32.mrb[0].mxu0
        %v973 = vadd.f32 0.0, %v972
        %v974 = vpop.f32.mrb[0].mxu0
        %975 = vmatprep.mubr.bf16.mxu0 0
        %976 = vmatmul.mubr.bf16.gmra.mrb[0].mxu0 %v866
        %v977 = vpop.f32.mrb[0].mxu0
        %v978 = vadd.f32 0.0, %v977
        %v979 = vpop.f32.mrb[0].mxu0
        %v980 = vpop.f32.mrb[0].mxu0
        %v981 = vadd.f32 0.0, %v980
        %v982 = vpop.f32.mrb[0].mxu0
        %983 = vmatprep.mubr.bf16.mxu0 0
        %984 = vmatmul.mubr.bf16.gmra.mrb[0].mxu0 %v869
        %v985 = vpop.f32.mrb[0].mxu0
        %v986 = vadd.f32 0.0, %v985
        %v987 = vpop.f32.mrb[0].mxu0
        %v988 = vpop.f32.mrb[0].mxu0
        %v989 = vadd.f32 0.0, %v988
        %v990 = vpop.f32.mrb[0].mxu0
        %991 = vmatprep.mubr.bf16.mxu0 0
        %992 = vmatmul.mubr.bf16.gmra.mrb[0].mxu0 %v872
        %v993 = vpop.f32.mrb[0].mxu0
        %v994 = vadd.f32 0.0, %v993
        %v995 = vpop.f32.mrb[0].mxu0
        %v996 = vpop.f32.mrb[0].mxu0
        %v997 = vadd.f32 0.0, %v996
        %v998 = vpop.f32.mrb[0].mxu0
        %999 = vmatprep.mubr.bf16.mxu0 0
        %1000 = vmatmul.mubr.bf16.gmra.mrb[0].mxu0 %v875
        %v1001 = vpop.f32.mrb[0].mxu0
        %v1002 = vadd.f32 0.0, %v1001
        %v1003 = vpop.f32.mrb[0].mxu0
        %v1004 = vpop.f32.mrb[0].mxu0
        %v1005 = vadd.f32 0.0, %v1004
        %v1006 = vpop.f32.mrb[0].mxu0
        %1007 = vmatprep.mubr.bf16.mxu0 0
        %1008 = vmatmul.mubr.bf16.gmra.mrb[0].mxu0 %v878
        %v1009 = vpop.f32.mrb[0].mxu0
        %v1010 = vadd.f32 0.0, %v1009
        %v1011 = vpop.f32.mrb[0].mxu0
        %v1012 = vpop.f32.mrb[0].mxu0
        %v1013 = vadd.f32 0.0, %v1012
        %v1014 = vpop.f32.mrb[0].mxu0
        %1015 = vmatprep.mubr.bf16.mxu0 0
        %1016 = vmatmul.mubr.bf16.gmra.mrb[0].mxu0 %v881
        %v1017 = vpop.f32.mrb[0].mxu0
        %v1018 = vadd.f32 0.0, %v1017
        %v1019 = vpop.f32.mrb[0].mxu0
        %v1020 = vpop.f32.mrb[0].mxu0
        %v1021 = vadd.f32 0.0, %v1020
        %v1022 = vpop.f32.mrb[0].mxu0
        %1023 = vmatprep.mubr.bf16.mxu0 0
        %1024 = vmatmul.mubr.bf16.gmra.mrb[0].mxu0 %v884
        %v1025 = vpop.f32.mrb[0].mxu0
        %v1026 = vadd.f32 0.0, %v1025
        %v1027 = vpop.f32.mrb[0].mxu0
        %v1028 = vpop.f32.mrb[0].mxu0
        %v1029 = vadd.f32 0.0, %v1028
        %v1030 = vpop.f32.mrb[0].mxu0
        %1031 = vmatprep.mubr.bf16.mxu0 0
        %1032 = vmatmul.mubr.bf16.gmra.mrb[0].mxu0 %v887
        %v1033 = vpop.f32.mrb[0].mxu0
        %v1034 = vadd.f32 0.0, %v1033
        %v1035 = vpop.f32.mrb[0].mxu0
        %v1036 = vpop.f32.mrb[0].mxu0
        %v1037 = vadd.f32 0.0, %v1036
        %v1038 = vpop.f32.mrb[0].mxu0
        %1039 = vmatprep.mubr.bf16.mxu0 0
        %1040 = vmatmul.mubr.bf16.gmra.mrb[0].mxu0 %v890
        %v1041 = vpop.f32.mrb[0].mxu0
        %v1042 = vadd.f32 0.0, %v1041
        %v1043 = vpop.f32.mrb[0].mxu0
        %v1044 = vpop.f32.mrb[0].mxu0
        %v1045 = vadd.f32 0.0, %v1044
        %v1046 = vpop.f32.mrb[0].mxu0
        %1047 = vmatprep.mubr.bf16.mxu0 0
        %1048 = vmatmul.mubr.bf16.gmra.mrb[0].mxu0 %v893
        %v1049 = vpop.f32.mrb[0].mxu0
        %v1050 = vadd.f32 0.0, %v1049
        %v1051 = vpop.f32.mrb[0].mxu0
        %v1052 = vpop.f32.mrb[0].mxu0
        %v1053 = vadd.f32 0.0, %v1052
        %v1054 = vpop.f32.mrb[0].mxu0
        %1055 = vdwg.mxu0
        %v1056 = vld [vmem:[%s510] sm:$0xff]
        %v1057 = vld [vmem:[%s510 + $0x8] sm:$0xff]
        %v1058 = vld [vmem:[%s510 + $0x10] sm:$0xff]
        %v1059 = vld [vmem:[%s510 + $0x18] sm:$0xff]
        %v1060 = vld [vmem:[%s510 + $0x20] sm:$0xff]
        %v1061 = vld [vmem:[%s510 + $0x28] sm:$0xff]
        %v1062 = vld [vmem:[%s510 + $0x30] sm:$0xff]
        %v1063 = vld [vmem:[%s510 + $0x38] sm:$0xff]
        %v1064 = vld [vmem:[%s510 + $0x40] sm:$0xff]
        %v1065 = vld [vmem:[%s510 + $0x48] sm:$0xff]
        %v1066 = vld [vmem:[%s510 + $0x50] sm:$0xff]
        %v1067 = vld [vmem:[%s510 + $0x58] sm:$0xff]
        %v1068 = vld [vmem:[%s510 + $0x60] sm:$0xff]
        %v1069 = vld [vmem:[%s510 + $0x68] sm:$0xff]
        %v1070 = vld [vmem:[%s510 + $0x70] sm:$0xff]
        %v1071 = vld [vmem:[%s510 + $0x78] sm:$0xff]
        %v1072 = vld [vmem:[%s510 + $0x80] sm:$0xff]
        %v1073 = vld [vmem:[%s510 + $0x88] sm:$0xff]
        %v1074 = vld [vmem:[%s510 + $0x90] sm:$0xff]
        %v1075 = vld [vmem:[%s510 + $0x98] sm:$0xff]
        %v1076 = vld [vmem:[%s510 + $0xa0] sm:$0xff]
        %v1077 = vld [vmem:[%s510 + $0xa8] sm:$0xff]
        %v1078 = vld [vmem:[%s510 + $0xb0] sm:$0xff]
        %v1079 = vld [vmem:[%s510 + $0xb8] sm:$0xff]
        %v1080 = vld [vmem:[%s510 + $0xc0] sm:$0xff]
        %v1081 = vld [vmem:[%s510 + $0xc8] sm:$0xff]
        %v1082 = vld [vmem:[%s510 + $0xd0] sm:$0xff]
        %v1083 = vld [vmem:[%s510 + $0xd8] sm:$0xff]
        %v1084 = vld [vmem:[%s510 + $0xe0] sm:$0xff]
        %v1085 = vld [vmem:[%s510 + $0xe8] sm:$0xff]
        %v1086 = vld [vmem:[%s510 + $0xf0] sm:$0xff]
        %v1087 = vld [vmem:[%s510 + $0xf8] sm:$0xff]
        %1089 = vset.pattern.permute.xlu0 0
        %1090 = vperm.xlu0 %1089, %v1056
        %v1091 = vpop.permute.xlu0 %1090
        %1094 = vset.pattern.permute.xlu0 0
        %1095 = vperm.xlu0 %1094, %v1057
        %v1096 = vpop.permute.xlu0 %1095
        %1099 = vset.pattern.permute.xlu0 0
        %1100 = vperm.xlu0 %1099, %v1058
        %v1101 = vpop.permute.xlu0 %1100
        %1104 = vset.pattern.permute.xlu0 0
        %1105 = vperm.xlu0 %1104, %v1059
        %v1106 = vpop.permute.xlu0 %1105
        %1109 = vset.pattern.permute.xlu0 0
        %1110 = vperm.xlu0 %1109, %v1060
        %v1111 = vpop.permute.xlu0 %1110
        %1114 = vset.pattern.permute.xlu0 0
        %1115 = vperm.xlu0 %1114, %v1061
        %v1116 = vpop.permute.xlu0 %1115
        %1119 = vset.pattern.permute.xlu0 0
        %1120 = vperm.xlu0 %1119, %v1062
        %v1121 = vpop.permute.xlu0 %1120
        %1124 = vset.pattern.permute.xlu0 0
        %1125 = vperm.xlu0 %1124, %v1063
        %v1126 = vpop.permute.xlu0 %1125
        %1129 = vset.pattern.permute.xlu0 0
        %1130 = vperm.xlu0 %1129, %v1064
        %v1131 = vpop.permute.xlu0 %1130
        %1134 = vset.pattern.permute.xlu0 0
        %1135 = vperm.xlu0 %1134, %v1065
        %v1136 = vpop.permute.xlu0 %1135
        %1139 = vset.pattern.permute.xlu0 0
        %1140 = vperm.xlu0 %1139, %v1066
        %v1141 = vpop.permute.xlu0 %1140
        %1144 = vset.pattern.permute.xlu0 0
        %1145 = vperm.xlu0 %1144, %v1067
        %v1146 = vpop.permute.xlu0 %1145
        %1149 = vset.pattern.permute.xlu0 0
        %1150 = vperm.xlu0 %1149, %v1068
        %v1151 = vpop.permute.xlu0 %1150
        %1154 = vset.pattern.permute.xlu0 0
        %1155 = vperm.xlu0 %1154, %v1069
        %v1156 = vpop.permute.xlu0 %1155
        %1159 = vset.pattern.permute.xlu0 0
        %1160 = vperm.xlu0 %1159, %v1070
        %v1161 = vpop.permute.xlu0 %1160
        %1164 = vset.pattern.permute.xlu0 0
        %1165 = vperm.xlu0 %1164, %v1071
        %v1166 = vpop.permute.xlu0 %1165
        %1169 = vset.pattern.permute.xlu0 0
        %1170 = vperm.xlu0 %1169, %v1072
        %v1171 = vpop.permute.xlu0 %1170
        %1174 = vset.pattern.permute.xlu0 0
        %1175 = vperm.xlu0 %1174, %v1073
        %v1176 = vpop.permute.xlu0 %1175
        %1179 = vset.pattern.permute.xlu0 0
        %1180 = vperm.xlu0 %1179, %v1074
        %v1181 = vpop.permute.xlu0 %1180
        %1184 = vset.pattern.permute.xlu0 0
        %1185 = vperm.xlu0 %1184, %v1075
        %v1186 = vpop.permute.xlu0 %1185
        %1189 = vset.pattern.permute.xlu0 0
        %1190 = vperm.xlu0 %1189, %v1076
        %v1191 = vpop.permute.xlu0 %1190
        %1194 = vset.pattern.permute.xlu0 0
        %1195 = vperm.xlu0 %1194, %v1077
        %v1196 = vpop.permute.xlu0 %1195
        %1199 = vset.pattern.permute.xlu0 0
        %1200 = vperm.xlu0 %1199, %v1078
        %v1201 = vpop.permute.xlu0 %1200
        %1204 = vset.pattern.permute.xlu0 0
        %1205 = vperm.xlu0 %1204, %v1079
        %v1206 = vpop.permute.xlu0 %1205
        %1209 = vset.pattern.permute.xlu0 0
        %1210 = vperm.xlu0 %1209, %v1080
        %v1211 = vpop.permute.xlu0 %1210
        %1214 = vset.pattern.permute.xlu0 0
        %1215 = vperm.xlu0 %1214, %v1081
        %v1216 = vpop.permute.xlu0 %1215
        %1219 = vset.pattern.permute.xlu0 0
        %1220 = vperm.xlu0 %1219, %v1082
        %v1221 = vpop.permute.xlu0 %1220
        %1224 = vset.pattern.permute.xlu0 0
        %1225 = vperm.xlu0 %1224, %v1083
        %v1226 = vpop.permute.xlu0 %1225
        %1229 = vset.pattern.permute.xlu0 0
        %1230 = vperm.xlu0 %1229, %v1084
        %v1231 = vpop.permute.xlu0 %1230
        %1234 = vset.pattern.permute.xlu0 0
        %1235 = vperm.xlu0 %1234, %v1085
        %v1236 = vpop.permute.xlu0 %1235
        %1239 = vset.pattern.permute.xlu0 0
        %1240 = vperm.xlu0 %1239, %v1086
        %v1241 = vpop.permute.xlu0 %1240
        %1244 = vset.pattern.permute.xlu0 0
        %1245 = vperm.xlu0 %1244, %v1087
        %v1246 = vpop.permute.xlu0 %1245
        %v1248 = vmul.f32 %v930, %v1091
        %v1249 = vmul.f32 %v933, %v1096
        %v1250 = vmul.f32 %v938, %v1101
        %v1251 = vmul.f32 %v941, %v1106
        %v1252 = vmul.f32 %v946, %v1111
        %v1253 = vmul.f32 %v949, %v1116
        %v1254 = vmul.f32 %v954, %v1121
        %v1255 = vmul.f32 %v957, %v1126
        %v1256 = vmul.f32 %v962, %v1131
        %v1257 = vmul.f32 %v965, %v1136
        %v1258 = vmul.f32 %v970, %v1141
        %v1259 = vmul.f32 %v973, %v1146
        %v1260 = vmul.f32 %v978, %v1151
        %v1261 = vmul.f32 %v981, %v1156
        %v1262 = vmul.f32 %v986, %v1161
        %v1263 = vmul.f32 %v989, %v1166
        %v1264 = vmul.f32 %v994, %v1171
        %v1265 = vmul.f32 %v997, %v1176
        %v1266 = vmul.f32 %v1002, %v1181
        %v1267 = vmul.f32 %v1005, %v1186
        %v1268 = vmul.f32 %v1010, %v1191
        %v1269 = vmul.f32 %v1013, %v1196
        %v1270 = vmul.f32 %v1018, %v1201
        %v1271 = vmul.f32 %v1021, %v1206
        %v1272 = vmul.f32 %v1026, %v1211
        %v1273 = vmul.f32 %v1029, %v1216
        %v1274 = vmul.f32 %v1034, %v1221
        %v1275 = vmul.f32 %v1037, %v1226
        %v1276 = vmul.f32 %v1042, %v1231
        %v1277 = vmul.f32 %v1045, %v1236
        %v1278 = vmul.f32 %v1050, %v1241
        %v1279 = vmul.f32 %v1053, %v1246
        %v1280 = vld [vmem:[#allocation8] sm:$0xf]
        %v1281 = vld [vmem:[#allocation8 + $0x4] sm:$0xf]
        %v1282 = vld [vmem:[#allocation8 + $0x8] sm:$0xf]
        %v1283 = vld [vmem:[#allocation8 + $0xc] sm:$0xf]
        %v1284 = vpack.c.bf16 %v1249, %v1248
        %v1285 = vpack.c.bf16 %v1251, %v1250
        %v1286 = vpack.c.bf16 %v1253, %v1252
        %v1287 = vpack.c.bf16 %v1255, %v1254
        %v1288 = vpack.c.bf16 %v1257, %v1256
        %v1289 = vpack.c.bf16 %v1259, %v1258
        %v1290 = vpack.c.bf16 %v1261, %v1260
        %v1291 = vpack.c.bf16 %v1263, %v1262
        %v1292 = vpack.c.bf16 %v1265, %v1264
        %v1293 = vpack.c.bf16 %v1267, %v1266
        %v1294 = vpack.c.bf16 %v1269, %v1268
        %v1295 = vpack.c.bf16 %v1271, %v1270
        %v1296 = vpack.c.bf16 %v1273, %v1272
        %v1297 = vpack.c.bf16 %v1275, %v1274
        %v1298 = vpack.c.bf16 %v1277, %v1276
        %v1299 = vpack.c.bf16 %v1279, %v1278
        %v1300 = vld [vmem:[#allocation10] sm:$0x1]
        %v1302 = vlaneseq
        %v1303 = vshrl.u32 %v1302, 7
        %v1304 = vsub.s32 0, %v1303
        %v1305 = vrot.slane %v1300, %v1304
        %v1311 = vunpack.c.l.b16 %v1280
        %v1312 = vunpack.c.l.b16 %v1281
        %v1313 = vunpack.c.l.b16 %v1282
        %v1314 = vunpack.c.l.b16 %v1283
        %v1315 = vpack.c.b16 %v1312, %v1311
        %v1316 = vpack.c.b16 %v1314, %v1313
        %vm1319 = vcmask 261120
        %v1321 = vsel %vm1319, %v1284, 0
        %v1324 = vsel %vm1319, %v1285, 0
        %v1327 = vsel %vm1319, %v1286, 0
        %v1330 = vsel %vm1319, %v1287, 0
        %v1333 = vsel %vm1319, %v1288, 0
        %v1336 = vsel %vm1319, %v1289, 0
        %v1339 = vsel %vm1319, %v1290, 0
        %v1342 = vsel %vm1319, %v1291, 0
        %v1345 = vsel %vm1319, %v1292, 0
        %v1348 = vsel %vm1319, %v1293, 0
        %v1351 = vsel %vm1319, %v1294, 0
        %v1354 = vsel %vm1319, %v1295, 0
        %v1357 = vsel %vm1319, %v1296, 0
        %v1360 = vsel %vm1319, %v1297, 0
        %v1363 = vsel %vm1319, %v1298, 0
        %v1366 = vsel %vm1319, %v1299, 0
        %1368 = vmatprep.subr.bf16.mxu0 0
        %1369 = vmatpush1.bf16.msra.mxu0 %v1315
        %1370 = vmatprep.subr.bf16.mxu0 0
        %1371 = vmatpush1.bf16.msra.mxu0 %v1316
        %1372 = vmatprep.subr.bf16.mxu0 0
        %1373 = vmatpush1.bf16.msra.mxu0 0
        %1374 = vmatprep.subr.bf16.mxu0 0
        %1375 = vmatpush1.bf16.msra.mxu0 0
        %1376 = vmatprep.subr.bf16.mxu0 0
        %1377 = vmatpush1.bf16.msra.mxu0 0
        %1378 = vmatprep.subr.bf16.mxu0 0
        %1379 = vmatpush1.bf16.msra.mxu0 0
        %1380 = vmatprep.subr.bf16.mxu0 0
        %1381 = vmatpush1.bf16.msra.mxu0 0
        %1382 = vmatprep.subr.bf16.mxu0 0
        %1383 = vmatpush1.bf16.msra.mxu0 0
        %1384 = vmatprep.subr.bf16.mxu0 0
        %1385 = vmatpush1.bf16.msra.mxu0 0
        %1386 = vmatprep.subr.bf16.mxu0 0
        %1387 = vmatpush1.bf16.msra.mxu0 0
        %1388 = vmatprep.subr.bf16.mxu0 0
        %1389 = vmatpush1.bf16.msra.mxu0 0
        %1390 = vmatprep.subr.bf16.mxu0 0
        %1391 = vmatpush1.bf16.msra.mxu0 0
        %1392 = vmatprep.subr.bf16.mxu0 0
        %1393 = vmatpush1.bf16.msra.mxu0 0
        %1394 = vmatprep.subr.bf16.mxu0 0
        %1395 = vmatpush1.bf16.msra.mxu0 0
        %1396 = vmatprep.subr.bf16.mxu0 0
        %1397 = vmatpush1.bf16.msra.mxu0 0
        %1398 = vmatprep.subr.bf16.mxu0 0
        %1399 = vmatpush1.bf16.msra.mxu0 0
        %1400 = vmatprep.mubr.bf16.mxu0 0
        %1401 = vmatmul.mubr.bf16.gmra.mrb[0].mxu0 %v1321
        %v1402 = vpop.f32.mrb[0].mxu0
        %v1403 = vadd.f32 %v1305, %v1402
        %v1404 = vpop.f32.mrb[0].mxu0
        %v1405 = vpop.f32.mrb[0].mxu0
        %v1406 = vadd.f32 %v1305, %v1405
        %v1407 = vpop.f32.mrb[0].mxu0
        %1408 = vmatprep.mubr.bf16.mxu0 0
        %1409 = vmatmul.mubr.bf16.gmra.mrb[0].mxu0 %v1324
        %v1410 = vpop.f32.mrb[0].mxu0
        %v1411 = vadd.f32 %v1305, %v1410
        %v1412 = vpop.f32.mrb[0].mxu0
        %v1413 = vpop.f32.mrb[0].mxu0
        %v1414 = vadd.f32 %v1305, %v1413
        %v1415 = vpop.f32.mrb[0].mxu0
        %1416 = vmatprep.mubr.bf16.mxu0 0
        %1417 = vmatmul.mubr.bf16.gmra.mrb[0].mxu0 %v1327
        %v1418 = vpop.f32.mrb[0].mxu0
        %v1419 = vadd.f32 %v1305, %v1418
        %v1420 = vpop.f32.mrb[0].mxu0
        %v1421 = vpop.f32.mrb[0].mxu0
        %v1422 = vadd.f32 %v1305, %v1421
        %v1423 = vpop.f32.mrb[0].mxu0
        %1424 = vmatprep.mubr.bf16.mxu0 0
        %1425 = vmatmul.mubr.bf16.gmra.mrb[0].mxu0 %v1330
        %v1426 = vpop.f32.mrb[0].mxu0
        %v1427 = vadd.f32 %v1305, %v1426
        %v1428 = vpop.f32.mrb[0].mxu0
        %v1429 = vpop.f32.mrb[0].mxu0
        %v1430 = vadd.f32 %v1305, %v1429
        %v1431 = vpop.f32.mrb[0].mxu0
        %1432 = vmatprep.mubr.bf16.mxu0 0
        %1433 = vmatmul.mubr.bf16.gmra.mrb[0].mxu0 %v1333
        %v1434 = vpop.f32.mrb[0].mxu0
        %v1435 = vadd.f32 %v1305, %v1434
        %v1436 = vpop.f32.mrb[0].mxu0
        %v1437 = vpop.f32.mrb[0].mxu0
        %v1438 = vadd.f32 %v1305, %v1437
        %v1439 = vpop.f32.mrb[0].mxu0
        %1440 = vmatprep.mubr.bf16.mxu0 0
        %1441 = vmatmul.mubr.bf16.gmra.mrb[0].mxu0 %v1336
        %v1442 = vpop.f32.mrb[0].mxu0
        %v1443 = vadd.f32 %v1305, %v1442
        %v1444 = vpop.f32.mrb[0].mxu0
        %v1445 = vpop.f32.mrb[0].mxu0
        %v1446 = vadd.f32 %v1305, %v1445
        %v1447 = vpop.f32.mrb[0].mxu0
        %1448 = vmatprep.mubr.bf16.mxu0 0
        %1449 = vmatmul.mubr.bf16.gmra.mrb[0].mxu0 %v1339
        %v1450 = vpop.f32.mrb[0].mxu0
        %v1451 = vadd.f32 %v1305, %v1450
        %v1452 = vpop.f32.mrb[0].mxu0
        %v1453 = vpop.f32.mrb[0].mxu0
        %v1454 = vadd.f32 %v1305, %v1453
        %v1455 = vpop.f32.mrb[0].mxu0
        %1456 = vmatprep.mubr.bf16.mxu0 0
        %1457 = vmatmul.mubr.bf16.gmra.mrb[0].mxu0 %v1342
        %v1458 = vpop.f32.mrb[0].mxu0
        %v1459 = vadd.f32 %v1305, %v1458
        %v1460 = vpop.f32.mrb[0].mxu0
        %v1461 = vpop.f32.mrb[0].mxu0
        %v1462 = vadd.f32 %v1305, %v1461
        %v1463 = vpop.f32.mrb[0].mxu0
        %1464 = vmatprep.mubr.bf16.mxu0 0
        %1465 = vmatmul.mubr.bf16.gmra.mrb[0].mxu0 %v1345
        %v1466 = vpop.f32.mrb[0].mxu0
        %v1467 = vadd.f32 %v1305, %v1466
        %v1468 = vpop.f32.mrb[0].mxu0
        %v1469 = vpop.f32.mrb[0].mxu0
        %v1470 = vadd.f32 %v1305, %v1469
        %v1471 = vpop.f32.mrb[0].mxu0
        %1472 = vmatprep.mubr.bf16.mxu0 0
        %1473 = vmatmul.mubr.bf16.gmra.mrb[0].mxu0 %v1348
        %v1474 = vpop.f32.mrb[0].mxu0
        %v1475 = vadd.f32 %v1305, %v1474
        %v1476 = vpop.f32.mrb[0].mxu0
        %v1477 = vpop.f32.mrb[0].mxu0
        %v1478 = vadd.f32 %v1305, %v1477
        %v1479 = vpop.f32.mrb[0].mxu0
        %1480 = vmatprep.mubr.bf16.mxu0 0
        %1481 = vmatmul.mubr.bf16.gmra.mrb[0].mxu0 %v1351
        %v1482 = vpop.f32.mrb[0].mxu0
        %v1483 = vadd.f32 %v1305, %v1482
        %v1484 = vpop.f32.mrb[0].mxu0
        %v1485 = vpop.f32.mrb[0].mxu0
        %v1486 = vadd.f32 %v1305, %v1485
        %v1487 = vpop.f32.mrb[0].mxu0
        %1488 = vmatprep.mubr.bf16.mxu0 0
        %1489 = vmatmul.mubr.bf16.gmra.mrb[0].mxu0 %v1354
        %v1490 = vpop.f32.mrb[0].mxu0
        %v1491 = vadd.f32 %v1305, %v1490
        %v1492 = vpop.f32.mrb[0].mxu0
        %v1493 = vpop.f32.mrb[0].mxu0
        %v1494 = vadd.f32 %v1305, %v1493
        %v1495 = vpop.f32.mrb[0].mxu0
        %1496 = vmatprep.mubr.bf16.mxu0 0
        %1497 = vmatmul.mubr.bf16.gmra.mrb[0].mxu0 %v1357
        %v1498 = vpop.f32.mrb[0].mxu0
        %v1499 = vadd.f32 %v1305, %v1498
        %v1500 = vpop.f32.mrb[0].mxu0
        %v1501 = vpop.f32.mrb[0].mxu0
        %v1502 = vadd.f32 %v1305, %v1501
        %v1503 = vpop.f32.mrb[0].mxu0
        %1504 = vmatprep.mubr.bf16.mxu0 0
        %1505 = vmatmul.mubr.bf16.gmra.mrb[0].mxu0 %v1360
        %v1506 = vpop.f32.mrb[0].mxu0
        %v1507 = vadd.f32 %v1305, %v1506
        %v1508 = vpop.f32.mrb[0].mxu0
        %v1509 = vpop.f32.mrb[0].mxu0
        %v1510 = vadd.f32 %v1305, %v1509
        %v1511 = vpop.f32.mrb[0].mxu0
        %1512 = vmatprep.mubr.bf16.mxu0 0
        %1513 = vmatmul.mubr.bf16.gmra.mrb[0].mxu0 %v1363
        %v1514 = vpop.f32.mrb[0].mxu0
        %v1515 = vadd.f32 %v1305, %v1514
        %v1516 = vpop.f32.mrb[0].mxu0
        %v1517 = vpop.f32.mrb[0].mxu0
        %v1518 = vadd.f32 %v1305, %v1517
        %v1519 = vpop.f32.mrb[0].mxu0
        %1520 = vmatprep.mubr.bf16.mxu0 0
        %1521 = vmatmul.mubr.bf16.gmra.mrb[0].mxu0 %v1366
        %v1522 = vpop.f32.mrb[0].mxu0
        %v1523 = vadd.f32 %v1305, %v1522
        %v1524 = vpop.f32.mrb[0].mxu0
        %v1525 = vpop.f32.mrb[0].mxu0
        %v1526 = vadd.f32 %v1305, %v1525
        %v1527 = vpop.f32.mrb[0].mxu0
        %1528 = vdwg.mxu0
        %v1529 = vld [vmem:[#allocation11] sm:$0x1]
        %v1531 = vlaneseq
        %v1532 = vshrl.u32 %v1531, 7
        %v1533 = vsub.s32 0, %v1532
        %v1534 = vrot.slane %v1529, %v1533
        %v1536 = vmul.f32 %v1091, %v1534
        %v1537 = vmul.f32 %v1096, %v1534
        %v1538 = vmul.f32 %v1101, %v1534
        %v1539 = vmul.f32 %v1106, %v1534
        %v1540 = vmul.f32 %v1111, %v1534
        %v1541 = vmul.f32 %v1116, %v1534
        %v1542 = vmul.f32 %v1121, %v1534
        %v1543 = vmul.f32 %v1126, %v1534
        %v1544 = vmul.f32 %v1131, %v1534
        %v1545 = vmul.f32 %v1136, %v1534
        %v1546 = vmul.f32 %v1141, %v1534
        %v1547 = vmul.f32 %v1146, %v1534
        %v1548 = vmul.f32 %v1151, %v1534
        %v1549 = vmul.f32 %v1156, %v1534
        %v1550 = vmul.f32 %v1161, %v1534
        %v1551 = vmul.f32 %v1166, %v1534
        %v1552 = vmul.f32 %v1171, %v1534
        %v1553 = vmul.f32 %v1176, %v1534
        %v1554 = vmul.f32 %v1181, %v1534
        %v1555 = vmul.f32 %v1186, %v1534
        %v1556 = vmul.f32 %v1191, %v1534
        %v1557 = vmul.f32 %v1196, %v1534
        %v1558 = vmul.f32 %v1201, %v1534
        %v1559 = vmul.f32 %v1206, %v1534
        %v1560 = vmul.f32 %v1211, %v1534
        %v1561 = vmul.f32 %v1216, %v1534
        %v1562 = vmul.f32 %v1221, %v1534
        %v1563 = vmul.f32 %v1226, %v1534
        %v1564 = vmul.f32 %v1231, %v1534
        %v1565 = vmul.f32 %v1236, %v1534
        %v1566 = vmul.f32 %v1241, %v1534
        %v1567 = vmul.f32 %v1246, %v1534
        %v1568 = vadd.f32 %v1403, %v1536
        %v1569 = vadd.f32 %v1406, %v1537
        %v1570 = vadd.f32 %v1411, %v1538
        %v1571 = vadd.f32 %v1414, %v1539
        %v1572 = vadd.f32 %v1419, %v1540
        %v1573 = vadd.f32 %v1422, %v1541
        %v1574 = vadd.f32 %v1427, %v1542
        %v1575 = vadd.f32 %v1430, %v1543
        %v1576 = vadd.f32 %v1435, %v1544
        %v1577 = vadd.f32 %v1438, %v1545
        %v1578 = vadd.f32 %v1443, %v1546
        %v1579 = vadd.f32 %v1446, %v1547
        %v1580 = vadd.f32 %v1451, %v1548
        %v1581 = vadd.f32 %v1454, %v1549
        %v1582 = vadd.f32 %v1459, %v1550
        %v1583 = vadd.f32 %v1462, %v1551
        %v1584 = vadd.f32 %v1467, %v1552
        %v1585 = vadd.f32 %v1470, %v1553
        %v1586 = vadd.f32 %v1475, %v1554
        %v1587 = vadd.f32 %v1478, %v1555
        %v1588 = vadd.f32 %v1483, %v1556
        %v1589 = vadd.f32 %v1486, %v1557
        %v1590 = vadd.f32 %v1491, %v1558
        %v1591 = vadd.f32 %v1494, %v1559
        %v1592 = vadd.f32 %v1499, %v1560
        %v1593 = vadd.f32 %v1502, %v1561
        %v1594 = vadd.f32 %v1507, %v1562
        %v1595 = vadd.f32 %v1510, %v1563
        %v1596 = vadd.f32 %v1515, %v1564
        %v1597 = vadd.f32 %v1518, %v1565
        %v1598 = vadd.f32 %v1523, %v1566
        %v1599 = vadd.f32 %v1526, %v1567
        %v1600 = vpack.c.bf16 %v1569, %v1568
        %v1601 = vpack.c.bf16 %v1571, %v1570
        %v1602 = vpack.c.bf16 %v1573, %v1572
        %v1603 = vpack.c.bf16 %v1575, %v1574
        %v1604 = vpack.c.bf16 %v1577, %v1576
        %v1605 = vpack.c.bf16 %v1579, %v1578
        %v1606 = vpack.c.bf16 %v1581, %v1580
        %v1607 = vpack.c.bf16 %v1583, %v1582
        %v1608 = vpack.c.bf16 %v1585, %v1584
        %v1609 = vpack.c.bf16 %v1587, %v1586
        %v1610 = vpack.c.bf16 %v1589, %v1588
        %v1611 = vpack.c.bf16 %v1591, %v1590
        %v1612 = vpack.c.bf16 %v1593, %v1592
        %v1613 = vpack.c.bf16 %v1595, %v1594
        %v1614 = vpack.c.bf16 %v1597, %v1596
        %v1615 = vpack.c.bf16 %v1599, %v1598
        %v1632 = vunpack.c.l.b16 %v1600
        %v1633 = vunpack.c.h.b16 %v1600
        %v1634 = vunpack.c.l.b16 %v1601
        %v1635 = vunpack.c.h.b16 %v1601
        %v1636 = vunpack.c.l.b16 %v1602
        %v1637 = vunpack.c.h.b16 %v1602
        %v1638 = vunpack.c.l.b16 %v1603
        %v1639 = vunpack.c.h.b16 %v1603
        %v1640 = vunpack.c.l.b16 %v1604
        %v1641 = vunpack.c.h.b16 %v1604
        %v1642 = vunpack.c.l.b16 %v1605
        %v1643 = vunpack.c.h.b16 %v1605
        %v1644 = vunpack.c.l.b16 %v1606
        %v1645 = vunpack.c.h.b16 %v1606
        %v1646 = vunpack.c.l.b16 %v1607
        %v1647 = vunpack.c.h.b16 %v1607
        %v1648 = vunpack.c.l.b16 %v1608
        %v1649 = vunpack.c.h.b16 %v1608
        %v1650 = vunpack.c.l.b16 %v1609
        %v1651 = vunpack.c.h.b16 %v1609
        %v1652 = vunpack.c.l.b16 %v1610
        %v1653 = vunpack.c.h.b16 %v1610
        %v1654 = vunpack.c.l.b16 %v1611
        %v1655 = vunpack.c.h.b16 %v1611
        %v1656 = vunpack.c.l.b16 %v1612
        %v1657 = vunpack.c.h.b16 %v1612
        %v1658 = vunpack.c.l.b16 %v1613
        %v1659 = vunpack.c.h.b16 %v1613
        %v1660 = vunpack.c.l.b16 %v1614
        %v1661 = vunpack.c.h.b16 %v1614
        %v1662 = vunpack.c.l.b16 %v1615
        %v1663 = vunpack.c.h.b16 %v1615
        %v1664 = vpack.c.b16 %v1632, %v1632
        %v1665 = vpack.c.b16 %v1633, %v1633
        %v1666 = vpack.c.b16 %v1634, %v1634
        %v1667 = vpack.c.b16 %v1635, %v1635
        %v1668 = vpack.c.b16 %v1636, %v1636
        %v1669 = vpack.c.b16 %v1637, %v1637
        %v1670 = vpack.c.b16 %v1638, %v1638
        %v1671 = vpack.c.b16 %v1639, %v1639
        %v1672 = vpack.c.b16 %v1640, %v1640
        %v1673 = vpack.c.b16 %v1641, %v1641
        %v1674 = vpack.c.b16 %v1642, %v1642
        %v1675 = vpack.c.b16 %v1643, %v1643
        %v1676 = vpack.c.b16 %v1644, %v1644
        %v1677 = vpack.c.b16 %v1645, %v1645
        %v1678 = vpack.c.b16 %v1646, %v1646
        %v1679 = vpack.c.b16 %v1647, %v1647
        %v1680 = vpack.c.b16 %v1648, %v1648
        %v1681 = vpack.c.b16 %v1649, %v1649
        %v1682 = vpack.c.b16 %v1650, %v1650
        %v1683 = vpack.c.b16 %v1651, %v1651
        %v1684 = vpack.c.b16 %v1652, %v1652
        %v1685 = vpack.c.b16 %v1653, %v1653
        %v1686 = vpack.c.b16 %v1654, %v1654
        %v1687 = vpack.c.b16 %v1655, %v1655
        %v1688 = vpack.c.b16 %v1656, %v1656
        %v1689 = vpack.c.b16 %v1657, %v1657
        %v1690 = vpack.c.b16 %v1658, %v1658
        %v1691 = vpack.c.b16 %v1659, %v1659
        %v1692 = vpack.c.b16 %v1660, %v1660
        %v1693 = vpack.c.b16 %v1661, %v1661
        %v1694 = vpack.c.b16 %v1662, %v1662
        %v1695 = vpack.c.b16 %v1663, %v1663
        %vm1728 = vcmask 257024
        %1729 = vst.msk [vmem:[%s583] sm:$0xf] %vm1728, %v1664
        %1730 = vst.msk [vmem:[%s583 + $0x4] sm:$0xf] %vm1728, %v1665
        %1731 = vst.msk [vmem:[%s583 + $0x8] sm:$0xf] %vm1728, %v1666
        %1732 = vst.msk [vmem:[%s583 + $0xc] sm:$0xf] %vm1728, %v1667
        %1733 = vst.msk [vmem:[%s583 + $0x10] sm:$0xf] %vm1728, %v1668
        %1734 = vst.msk [vmem:[%s583 + $0x14] sm:$0xf] %vm1728, %v1669
        %1735 = vst.msk [vmem:[%s583 + $0x18] sm:$0xf] %vm1728, %v1670
        %1736 = vst.msk [vmem:[%s583 + $0x1c] sm:$0xf] %vm1728, %v1671
        %1737 = vst.msk [vmem:[%s583 + $0x20] sm:$0xf] %vm1728, %v1672
        %1738 = vst.msk [vmem:[%s583 + $0x24] sm:$0xf] %vm1728, %v1673
        %1739 = vst.msk [vmem:[%s583 + $0x28] sm:$0xf] %vm1728, %v1674
        %1740 = vst.msk [vmem:[%s583 + $0x2c] sm:$0xf] %vm1728, %v1675
        %1741 = vst.msk [vmem:[%s583 + $0x30] sm:$0xf] %vm1728, %v1676
        %1742 = vst.msk [vmem:[%s583 + $0x34] sm:$0xf] %vm1728, %v1677
        %1743 = vst.msk [vmem:[%s583 + $0x38] sm:$0xf] %vm1728, %v1678
        %1744 = vst.msk [vmem:[%s583 + $0x3c] sm:$0xf] %vm1728, %v1679
        %1745 = vst.msk [vmem:[%s583 + $0x40] sm:$0xf] %vm1728, %v1680
        %1746 = vst.msk [vmem:[%s583 + $0x44] sm:$0xf] %vm1728, %v1681
        %1747 = vst.msk [vmem:[%s583 + $0x48] sm:$0xf] %vm1728, %v1682
        %1748 = vst.msk [vmem:[%s583 + $0x4c] sm:$0xf] %vm1728, %v1683
        %1749 = vst.msk [vmem:[%s583 + $0x50] sm:$0xf] %vm1728, %v1684
        %1750 = vst.msk [vmem:[%s583 + $0x54] sm:$0xf] %vm1728, %v1685
        %1751 = vst.msk [vmem:[%s583 + $0x58] sm:$0xf] %vm1728, %v1686
        %1752 = vst.msk [vmem:[%s583 + $0x5c] sm:$0xf] %vm1728, %v1687
        %1753 = vst.msk [vmem:[%s583 + $0x60] sm:$0xf] %vm1728, %v1688
        %1754 = vst.msk [vmem:[%s583 + $0x64] sm:$0xf] %vm1728, %v1689
        %1755 = vst.msk [vmem:[%s583 + $0x68] sm:$0xf] %vm1728, %v1690
        %1756 = vst.msk [vmem:[%s583 + $0x6c] sm:$0xf] %vm1728, %v1691
        %1757 = vst.msk [vmem:[%s583 + $0x70] sm:$0xf] %vm1728, %v1692
        %1758 = vst.msk [vmem:[%s583 + $0x74] sm:$0xf] %vm1728, %v1693
        %1759 = vst.msk [vmem:[%s583 + $0x78] sm:$0xf] %vm1728, %v1694
        %1760 = vst.msk [vmem:[%s583 + $0x7c] sm:$0xf] %vm1728, %v1695
        %v1761 = vld [vmem:[#allocation13] sm:$0xf]
        %v1762 = vld [vmem:[#allocation13 + $0x4] sm:$0xf]
        %v1763 = vld [vmem:[#allocation13 + $0x8] sm:$0xf]
        %v1764 = vld [vmem:[#allocation13 + $0xc] sm:$0xf]
        %v1765 = vld [vmem:[#allocation14] sm:$0x1]
        %v1767 = vlaneseq
        %v1768 = vshrl.u32 %v1767, 7
        %v1769 = vsub.s32 0, %v1768
        %v1770 = vrot.slane %v1765, %v1769
        %v1776 = vunpack.c.l.b16 %v1761
        %v1777 = vunpack.c.l.b16 %v1762
        %v1778 = vunpack.c.l.b16 %v1763
        %v1779 = vunpack.c.l.b16 %v1764
        %v1780 = vpack.c.b16 %v1777, %v1776
        %v1781 = vpack.c.b16 %v1779, %v1778
        %v1785 = vsel %vm1319, %v1600, 0
        %v1788 = vsel %vm1319, %v1601, 0
        %v1791 = vsel %vm1319, %v1602, 0
        %v1794 = vsel %vm1319, %v1603, 0
        %v1797 = vsel %vm1319, %v1604, 0
        %v1800 = vsel %vm1319, %v1605, 0
        %v1803 = vsel %vm1319, %v1606, 0
        %v1806 = vsel %vm1319, %v1607, 0
        %v1809 = vsel %vm1319, %v1608, 0
        %v1812 = vsel %vm1319, %v1609, 0
        %v1815 = vsel %vm1319, %v1610, 0
        %v1818 = vsel %vm1319, %v1611, 0
        %v1821 = vsel %vm1319, %v1612, 0
        %v1824 = vsel %vm1319, %v1613, 0
        %v1827 = vsel %vm1319, %v1614, 0
        %v1830 = vsel %vm1319, %v1615, 0
        %1832 = vmatprep.subr.bf16.mxu0 0
        %1833 = vmatpush1.bf16.msra.mxu0 %v1780
        %1834 = vmatprep.subr.bf16.mxu0 0
        %1835 = vmatpush1.bf16.msra.mxu0 %v1781
        %1836 = vmatprep.subr.bf16.mxu0 0
        %1837 = vmatpush1.bf16.msra.mxu0 0
        %1838 = vmatprep.subr.bf16.mxu0 0
        %1839 = vmatpush1.bf16.msra.mxu0 0
        %1840 = vmatprep.subr.bf16.mxu0 0
        %1841 = vmatpush1.bf16.msra.mxu0 0
        %1842 = vmatprep.subr.bf16.mxu0 0
        %1843 = vmatpush1.bf16.msra.mxu0 0
        %1844 = vmatprep.subr.bf16.mxu0 0
        %1845 = vmatpush1.bf16.msra.mxu0 0
        %1846 = vmatprep.subr.bf16.mxu0 0
        %1847 = vmatpush1.bf16.msra.mxu0 0
        %1848 = vmatprep.subr.bf16.mxu0 0
        %1849 = vmatpush1.bf16.msra.mxu0 0
        %1850 = vmatprep.subr.bf16.mxu0 0
        %1851 = vmatpush1.bf16.msra.mxu0 0
        %1852 = vmatprep.subr.bf16.mxu0 0
        %1853 = vmatpush1.bf16.msra.mxu0 0
        %1854 = vmatprep.subr.bf16.mxu0 0
        %1855 = vmatpush1.bf16.msra.mxu0 0
        %1856 = vmatprep.subr.bf16.mxu0 0
        %1857 = vmatpush1.bf16.msra.mxu0 0
        %1858 = vmatprep.subr.bf16.mxu0 0
        %1859 = vmatpush1.bf16.msra.mxu0 0
        %1860 = vmatprep.subr.bf16.mxu0 0
        %1861 = vmatpush1.bf16.msra.mxu0 0
        %1862 = vmatprep.subr.bf16.mxu0 0
        %1863 = vmatpush1.bf16.msra.mxu0 0
        %1864 = vmatprep.mubr.bf16.mxu0 0
        %1865 = vmatmul.mubr.bf16.gmra.mrb[0].mxu0 %v1785
        %v1866 = vpop.f32.mrb[0].mxu0
        %v1867 = vadd.f32 %v1770, %v1866
        %v1868 = vpop.f32.mrb[0].mxu0
        %v1869 = vpop.f32.mrb[0].mxu0
        %v1870 = vadd.f32 %v1770, %v1869
        %v1871 = vpop.f32.mrb[0].mxu0
        %1872 = vmatprep.mubr.bf16.mxu0 0
        %1873 = vmatmul.mubr.bf16.gmra.mrb[0].mxu0 %v1788
        %v1874 = vpop.f32.mrb[0].mxu0
        %v1875 = vadd.f32 %v1770, %v1874
        %v1876 = vpop.f32.mrb[0].mxu0
        %v1877 = vpop.f32.mrb[0].mxu0
        %v1878 = vadd.f32 %v1770, %v1877
        %v1879 = vpop.f32.mrb[0].mxu0
        %1880 = vmatprep.mubr.bf16.mxu0 0
        %1881 = vmatmul.mubr.bf16.gmra.mrb[0].mxu0 %v1791
        %v1882 = vpop.f32.mrb[0].mxu0
        %v1883 = vadd.f32 %v1770, %v1882
        %v1884 = vpop.f32.mrb[0].mxu0
        %v1885 = vpop.f32.mrb[0].mxu0
        %v1886 = vadd.f32 %v1770, %v1885
        %v1887 = vpop.f32.mrb[0].mxu0
        %1888 = vmatprep.mubr.bf16.mxu0 0
        %1889 = vmatmul.mubr.bf16.gmra.mrb[0].mxu0 %v1794
        %v1890 = vpop.f32.mrb[0].mxu0
        %v1891 = vadd.f32 %v1770, %v1890
        %v1892 = vpop.f32.mrb[0].mxu0
        %v1893 = vpop.f32.mrb[0].mxu0
        %v1894 = vadd.f32 %v1770, %v1893
        %v1895 = vpop.f32.mrb[0].mxu0
        %1896 = vmatprep.mubr.bf16.mxu0 0
        %1897 = vmatmul.mubr.bf16.gmra.mrb[0].mxu0 %v1797
        %v1898 = vpop.f32.mrb[0].mxu0
        %v1899 = vadd.f32 %v1770, %v1898
        %v1900 = vpop.f32.mrb[0].mxu0
        %v1901 = vpop.f32.mrb[0].mxu0
        %v1902 = vadd.f32 %v1770, %v1901
        %v1903 = vpop.f32.mrb[0].mxu0
        %1904 = vmatprep.mubr.bf16.mxu0 0
        %1905 = vmatmul.mubr.bf16.gmra.mrb[0].mxu0 %v1800
        %v1906 = vpop.f32.mrb[0].mxu0
        %v1907 = vadd.f32 %v1770, %v1906
        %v1908 = vpop.f32.mrb[0].mxu0
        %v1909 = vpop.f32.mrb[0].mxu0
        %v1910 = vadd.f32 %v1770, %v1909
        %v1911 = vpop.f32.mrb[0].mxu0
        %1912 = vmatprep.mubr.bf16.mxu0 0
        %1913 = vmatmul.mubr.bf16.gmra.mrb[0].mxu0 %v1803
        %v1914 = vpop.f32.mrb[0].mxu0
        %v1915 = vadd.f32 %v1770, %v1914
        %v1916 = vpop.f32.mrb[0].mxu0
        %v1917 = vpop.f32.mrb[0].mxu0
        %v1918 = vadd.f32 %v1770, %v1917
        %v1919 = vpop.f32.mrb[0].mxu0
        %1920 = vmatprep.mubr.bf16.mxu0 0
        %1921 = vmatmul.mubr.bf16.gmra.mrb[0].mxu0 %v1806
        %v1922 = vpop.f32.mrb[0].mxu0
        %v1923 = vadd.f32 %v1770, %v1922
        %v1924 = vpop.f32.mrb[0].mxu0
        %v1925 = vpop.f32.mrb[0].mxu0
        %v1926 = vadd.f32 %v1770, %v1925
        %v1927 = vpop.f32.mrb[0].mxu0
        %1928 = vmatprep.mubr.bf16.mxu0 0
        %1929 = vmatmul.mubr.bf16.gmra.mrb[0].mxu0 %v1809
        %v1930 = vpop.f32.mrb[0].mxu0
        %v1931 = vadd.f32 %v1770, %v1930
        %v1932 = vpop.f32.mrb[0].mxu0
        %v1933 = vpop.f32.mrb[0].mxu0
        %v1934 = vadd.f32 %v1770, %v1933
        %v1935 = vpop.f32.mrb[0].mxu0
        %1936 = vmatprep.mubr.bf16.mxu0 0
        %1937 = vmatmul.mubr.bf16.gmra.mrb[0].mxu0 %v1812
        %v1938 = vpop.f32.mrb[0].mxu0
        %v1939 = vadd.f32 %v1770, %v1938
        %v1940 = vpop.f32.mrb[0].mxu0
        %v1941 = vpop.f32.mrb[0].mxu0
        %v1942 = vadd.f32 %v1770, %v1941
        %v1943 = vpop.f32.mrb[0].mxu0
        %1944 = vmatprep.mubr.bf16.mxu0 0
        %1945 = vmatmul.mubr.bf16.gmra.mrb[0].mxu0 %v1815
        %v1946 = vpop.f32.mrb[0].mxu0
        %v1947 = vadd.f32 %v1770, %v1946
        %v1948 = vpop.f32.mrb[0].mxu0
        %v1949 = vpop.f32.mrb[0].mxu0
        %v1950 = vadd.f32 %v1770, %v1949
        %v1951 = vpop.f32.mrb[0].mxu0
        %1952 = vmatprep.mubr.bf16.mxu0 0
        %1953 = vmatmul.mubr.bf16.gmra.mrb[0].mxu0 %v1818
        %v1954 = vpop.f32.mrb[0].mxu0
        %v1955 = vadd.f32 %v1770, %v1954
        %v1956 = vpop.f32.mrb[0].mxu0
        %v1957 = vpop.f32.mrb[0].mxu0
        %v1958 = vadd.f32 %v1770, %v1957
        %v1959 = vpop.f32.mrb[0].mxu0
        %1960 = vmatprep.mubr.bf16.mxu0 0
        %1961 = vmatmul.mubr.bf16.gmra.mrb[0].mxu0 %v1821
        %v1962 = vpop.f32.mrb[0].mxu0
        %v1963 = vadd.f32 %v1770, %v1962
        %v1964 = vpop.f32.mrb[0].mxu0
        %v1965 = vpop.f32.mrb[0].mxu0
        %v1966 = vadd.f32 %v1770, %v1965
        %v1967 = vpop.f32.mrb[0].mxu0
        %1968 = vmatprep.mubr.bf16.mxu0 0
        %1969 = vmatmul.mubr.bf16.gmra.mrb[0].mxu0 %v1824
        %v1970 = vpop.f32.mrb[0].mxu0
        %v1971 = vadd.f32 %v1770, %v1970
        %v1972 = vpop.f32.mrb[0].mxu0
        %v1973 = vpop.f32.mrb[0].mxu0
        %v1974 = vadd.f32 %v1770, %v1973
        %v1975 = vpop.f32.mrb[0].mxu0
        %1976 = vmatprep.mubr.bf16.mxu0 0
        %1977 = vmatmul.mubr.bf16.gmra.mrb[0].mxu0 %v1827
        %v1978 = vpop.f32.mrb[0].mxu0
        %v1979 = vadd.f32 %v1770, %v1978
        %v1980 = vpop.f32.mrb[0].mxu0
        %v1981 = vpop.f32.mrb[0].mxu0
        %v1982 = vadd.f32 %v1770, %v1981
        %v1983 = vpop.f32.mrb[0].mxu0
        %1984 = vmatprep.mubr.bf16.mxu0 0
        %1985 = vmatmul.mubr.bf16.gmra.mrb[0].mxu0 %v1830
        %v1986 = vpop.f32.mrb[0].mxu0
        %v1987 = vadd.f32 %v1770, %v1986
        %v1988 = vpop.f32.mrb[0].mxu0
        %v1989 = vpop.f32.mrb[0].mxu0
        %v1990 = vadd.f32 %v1770, %v1989
        %v1991 = vpop.f32.mrb[0].mxu0
        %1992 = vdwg.mxu0
        %vm1993 = vcmask 130048
        %1994 = vst.msk [vmem:[%s590] sm:$0xff] %vm1993, %v1867
        %1995 = vst.msk [vmem:[%s590 + $0x8] sm:$0xff] %vm1993, %v1870
        %1996 = vst.msk [vmem:[%s590 + $0x10] sm:$0xff] %vm1993, %v1875
        %1997 = vst.msk [vmem:[%s590 + $0x18] sm:$0xff] %vm1993, %v1878
        %1998 = vst.msk [vmem:[%s590 + $0x20] sm:$0xff] %vm1993, %v1883
        %1999 = vst.msk [vmem:[%s590 + $0x28] sm:$0xff] %vm1993, %v1886
        %2000 = vst.msk [vmem:[%s590 + $0x30] sm:$0xff] %vm1993, %v1891
        %2001 = vst.msk [vmem:[%s590 + $0x38] sm:$0xff] %vm1993, %v1894
        %2002 = vst.msk [vmem:[%s590 + $0x40] sm:$0xff] %vm1993, %v1899
        %2003 = vst.msk [vmem:[%s590 + $0x48] sm:$0xff] %vm1993, %v1902
        %2004 = vst.msk [vmem:[%s590 + $0x50] sm:$0xff] %vm1993, %v1907
        %2005 = vst.msk [vmem:[%s590 + $0x58] sm:$0xff] %vm1993, %v1910
        %2006 = vst.msk [vmem:[%s590 + $0x60] sm:$0xff] %vm1993, %v1915
        %2007 = vst.msk [vmem:[%s590 + $0x68] sm:$0xff] %vm1993, %v1918
        %2008 = vst.msk [vmem:[%s590 + $0x70] sm:$0xff] %vm1993, %v1923
        %2009 = vst.msk [vmem:[%s590 + $0x78] sm:$0xff] %vm1993, %v1926
        %2010 = vst.msk [vmem:[%s590 + $0x80] sm:$0xff] %vm1993, %v1931
        %2011 = vst.msk [vmem:[%s590 + $0x88] sm:$0xff] %vm1993, %v1934
        %2012 = vst.msk [vmem:[%s590 + $0x90] sm:$0xff] %vm1993, %v1939
        %2013 = vst.msk [vmem:[%s590 + $0x98] sm:$0xff] %vm1993, %v1942
        %2014 = vst.msk [vmem:[%s590 + $0xa0] sm:$0xff] %vm1993, %v1947
        %2015 = vst.msk [vmem:[%s590 + $0xa8] sm:$0xff] %vm1993, %v1950
        %2016 = vst.msk [vmem:[%s590 + $0xb0] sm:$0xff] %vm1993, %v1955
        %2017 = vst.msk [vmem:[%s590 + $0xb8] sm:$0xff] %vm1993, %v1958
        %2018 = vst.msk [vmem:[%s590 + $0xc0] sm:$0xff] %vm1993, %v1963
        %2019 = vst.msk [vmem:[%s590 + $0xc8] sm:$0xff] %vm1993, %v1966
        %2020 = vst.msk [vmem:[%s590 + $0xd0] sm:$0xff] %vm1993, %v1971
        %2021 = vst.msk [vmem:[%s590 + $0xd8] sm:$0xff] %vm1993, %v1974
        %2022 = vst.msk [vmem:[%s590 + $0xe0] sm:$0xff] %vm1993, %v1979
        %2023 = vst.msk [vmem:[%s590 + $0xe8] sm:$0xff] %vm1993, %v1982
        %2024 = vst.msk [vmem:[%s590 + $0xf0] sm:$0xff] %vm1993, %v1987
        %2025 = vst.msk [vmem:[%s590 + $0xf8] sm:$0xff] %vm1993, %v1990
        %v2026 = vld [vmem:[#allocation16] sm:$0xf]
        %v2027 = vld [vmem:[#allocation16 + $0x4] sm:$0xf]
        %v2028 = vld [vmem:[#allocation16 + $0x8] sm:$0xf]
        %v2029 = vld [vmem:[#allocation16 + $0xc] sm:$0xf]
        %v2030 = vld [vmem:[#allocation17] sm:$0x1]
        %v2032 = vlaneseq
        %v2033 = vshrl.u32 %v2032, 7
        %v2034 = vsub.s32 0, %v2033
        %v2035 = vrot.slane %v2030, %v2034
        %v2041 = vunpack.c.l.b16 %v2026
        %v2042 = vunpack.c.l.b16 %v2027
        %v2043 = vunpack.c.l.b16 %v2028
        %v2044 = vunpack.c.l.b16 %v2029
        %v2045 = vpack.c.b16 %v2042, %v2041
        %v2046 = vpack.c.b16 %v2044, %v2043
        %2049 = vmatprep.subr.bf16.mxu0 0
        %2050 = vmatpush1.bf16.msra.mxu0 %v2045
        %2051 = vmatprep.subr.bf16.mxu0 0
        %2052 = vmatpush1.bf16.msra.mxu0 %v2046
        %2053 = vmatprep.subr.bf16.mxu0 0
        %2054 = vmatpush1.bf16.msra.mxu0 0
        %2055 = vmatprep.subr.bf16.mxu0 0
        %2056 = vmatpush1.bf16.msra.mxu0 0
        %2057 = vmatprep.subr.bf16.mxu0 0
        %2058 = vmatpush1.bf16.msra.mxu0 0
        %2059 = vmatprep.subr.bf16.mxu0 0
        %2060 = vmatpush1.bf16.msra.mxu0 0
        %2061 = vmatprep.subr.bf16.mxu0 0
        %2062 = vmatpush1.bf16.msra.mxu0 0
        %2063 = vmatprep.subr.bf16.mxu0 0
        %2064 = vmatpush1.bf16.msra.mxu0 0
        %2065 = vmatprep.subr.bf16.mxu0 0
        %2066 = vmatpush1.bf16.msra.mxu0 0
        %2067 = vmatprep.subr.bf16.mxu0 0
        %2068 = vmatpush1.bf16.msra.mxu0 0
        %2069 = vmatprep.subr.bf16.mxu0 0
        %2070 = vmatpush1.bf16.msra.mxu0 0
        %2071 = vmatprep.subr.bf16.mxu0 0
        %2072 = vmatpush1.bf16.msra.mxu0 0
        %2073 = vmatprep.subr.bf16.mxu0 0
        %2074 = vmatpush1.bf16.msra.mxu0 0
        %2075 = vmatprep.subr.bf16.mxu0 0
        %2076 = vmatpush1.bf16.msra.mxu0 0
        %2077 = vmatprep.subr.bf16.mxu0 0
        %2078 = vmatpush1.bf16.msra.mxu0 0
        %2079 = vmatprep.subr.bf16.mxu0 0
        %2080 = vmatpush1.bf16.msra.mxu0 0
        %2081 = vmatprep.mubr.bf16.mxu0 0
        %2082 = vmatmul.mubr.bf16.gmra.mrb[0].mxu0 %v1785
        %v2083 = vpop.f32.mrb[0].mxu0
        %v2084 = vadd.f32 %v2035, %v2083
        %v2085 = vpop.f32.mrb[0].mxu0
        %v2086 = vpop.f32.mrb[0].mxu0
        %v2087 = vadd.f32 %v2035, %v2086
        %v2088 = vpop.f32.mrb[0].mxu0
        %2089 = vmatprep.mubr.bf16.mxu0 0
        %2090 = vmatmul.mubr.bf16.gmra.mrb[0].mxu0 %v1788
        %v2091 = vpop.f32.mrb[0].mxu0
        %v2092 = vadd.f32 %v2035, %v2091
        %v2093 = vpop.f32.mrb[0].mxu0
        %v2094 = vpop.f32.mrb[0].mxu0
        %v2095 = vadd.f32 %v2035, %v2094
        %v2096 = vpop.f32.mrb[0].mxu0
        %2097 = vmatprep.mubr.bf16.mxu0 0
        %2098 = vmatmul.mubr.bf16.gmra.mrb[0].mxu0 %v1791
        %v2099 = vpop.f32.mrb[0].mxu0
        %v2100 = vadd.f32 %v2035, %v2099
        %v2101 = vpop.f32.mrb[0].mxu0
        %v2102 = vpop.f32.mrb[0].mxu0
        %v2103 = vadd.f32 %v2035, %v2102
        %v2104 = vpop.f32.mrb[0].mxu0
        %2105 = vmatprep.mubr.bf16.mxu0 0
        %2106 = vmatmul.mubr.bf16.gmra.mrb[0].mxu0 %v1794
        %v2107 = vpop.f32.mrb[0].mxu0
        %v2108 = vadd.f32 %v2035, %v2107
        %v2109 = vpop.f32.mrb[0].mxu0
        %v2110 = vpop.f32.mrb[0].mxu0
        %v2111 = vadd.f32 %v2035, %v2110
        %v2112 = vpop.f32.mrb[0].mxu0
        %2113 = vmatprep.mubr.bf16.mxu0 0
        %2114 = vmatmul.mubr.bf16.gmra.mrb[0].mxu0 %v1797
        %v2115 = vpop.f32.mrb[0].mxu0
        %v2116 = vadd.f32 %v2035, %v2115
        %v2117 = vpop.f32.mrb[0].mxu0
        %v2118 = vpop.f32.mrb[0].mxu0
        %v2119 = vadd.f32 %v2035, %v2118
        %v2120 = vpop.f32.mrb[0].mxu0
        %2121 = vmatprep.mubr.bf16.mxu0 0
        %2122 = vmatmul.mubr.bf16.gmra.mrb[0].mxu0 %v1800
        %v2123 = vpop.f32.mrb[0].mxu0
        %v2124 = vadd.f32 %v2035, %v2123
        %v2125 = vpop.f32.mrb[0].mxu0
        %v2126 = vpop.f32.mrb[0].mxu0
        %v2127 = vadd.f32 %v2035, %v2126
        %v2128 = vpop.f32.mrb[0].mxu0
        %2129 = vmatprep.mubr.bf16.mxu0 0
        %2130 = vmatmul.mubr.bf16.gmra.mrb[0].mxu0 %v1803
        %v2131 = vpop.f32.mrb[0].mxu0
        %v2132 = vadd.f32 %v2035, %v2131
        %v2133 = vpop.f32.mrb[0].mxu0
        %v2134 = vpop.f32.mrb[0].mxu0
        %v2135 = vadd.f32 %v2035, %v2134
        %v2136 = vpop.f32.mrb[0].mxu0
        %2137 = vmatprep.mubr.bf16.mxu0 0
        %2138 = vmatmul.mubr.bf16.gmra.mrb[0].mxu0 %v1806
        %v2139 = vpop.f32.mrb[0].mxu0
        %v2140 = vadd.f32 %v2035, %v2139
        %v2141 = vpop.f32.mrb[0].mxu0
        %v2142 = vpop.f32.mrb[0].mxu0
        %v2143 = vadd.f32 %v2035, %v2142
        %v2144 = vpop.f32.mrb[0].mxu0
        %2145 = vmatprep.mubr.bf16.mxu0 0
        %2146 = vmatmul.mubr.bf16.gmra.mrb[0].mxu0 %v1809
        %v2147 = vpop.f32.mrb[0].mxu0
        %v2148 = vadd.f32 %v2035, %v2147
        %v2149 = vpop.f32.mrb[0].mxu0
        %v2150 = vpop.f32.mrb[0].mxu0
        %v2151 = vadd.f32 %v2035, %v2150
        %v2152 = vpop.f32.mrb[0].mxu0
        %2153 = vmatprep.mubr.bf16.mxu0 0
        %2154 = vmatmul.mubr.bf16.gmra.mrb[0].mxu0 %v1812
        %v2155 = vpop.f32.mrb[0].mxu0
        %v2156 = vadd.f32 %v2035, %v2155
        %v2157 = vpop.f32.mrb[0].mxu0
        %v2158 = vpop.f32.mrb[0].mxu0
        %v2159 = vadd.f32 %v2035, %v2158
        %v2160 = vpop.f32.mrb[0].mxu0
        %2161 = vmatprep.mubr.bf16.mxu0 0
        %2162 = vmatmul.mubr.bf16.gmra.mrb[0].mxu0 %v1815
        %v2163 = vpop.f32.mrb[0].mxu0
        %v2164 = vadd.f32 %v2035, %v2163
        %v2165 = vpop.f32.mrb[0].mxu0
        %v2166 = vpop.f32.mrb[0].mxu0
        %v2167 = vadd.f32 %v2035, %v2166
        %v2168 = vpop.f32.mrb[0].mxu0
        %2169 = vmatprep.mubr.bf16.mxu0 0
        %2170 = vmatmul.mubr.bf16.gmra.mrb[0].mxu0 %v1818
        %v2171 = vpop.f32.mrb[0].mxu0
        %v2172 = vadd.f32 %v2035, %v2171
        %v2173 = vpop.f32.mrb[0].mxu0
        %v2174 = vpop.f32.mrb[0].mxu0
        %v2175 = vadd.f32 %v2035, %v2174
        %v2176 = vpop.f32.mrb[0].mxu0
        %2177 = vmatprep.mubr.bf16.mxu0 0
        %2178 = vmatmul.mubr.bf16.gmra.mrb[0].mxu0 %v1821
        %v2179 = vpop.f32.mrb[0].mxu0
        %v2180 = vadd.f32 %v2035, %v2179
        %v2181 = vpop.f32.mrb[0].mxu0
        %v2182 = vpop.f32.mrb[0].mxu0
        %v2183 = vadd.f32 %v2035, %v2182
        %v2184 = vpop.f32.mrb[0].mxu0
        %2185 = vmatprep.mubr.bf16.mxu0 0
        %2186 = vmatmul.mubr.bf16.gmra.mrb[0].mxu0 %v1824
        %v2187 = vpop.f32.mrb[0].mxu0
        %v2188 = vadd.f32 %v2035, %v2187
        %v2189 = vpop.f32.mrb[0].mxu0
        %v2190 = vpop.f32.mrb[0].mxu0
        %v2191 = vadd.f32 %v2035, %v2190
        %v2192 = vpop.f32.mrb[0].mxu0
        %2193 = vmatprep.mubr.bf16.mxu0 0
        %2194 = vmatmul.mubr.bf16.gmra.mrb[0].mxu0 %v1827
        %v2195 = vpop.f32.mrb[0].mxu0
        %v2196 = vadd.f32 %v2035, %v2195
        %v2197 = vpop.f32.mrb[0].mxu0
        %v2198 = vpop.f32.mrb[0].mxu0
        %v2199 = vadd.f32 %v2035, %v2198
        %v2200 = vpop.f32.mrb[0].mxu0
        %2201 = vmatprep.mubr.bf16.mxu0 0
        %2202 = vmatmul.mubr.bf16.gmra.mrb[0].mxu0 %v1830
        %v2203 = vpop.f32.mrb[0].mxu0
        %v2204 = vadd.f32 %v2035, %v2203
        %v2205 = vpop.f32.mrb[0].mxu0
        %v2206 = vpop.f32.mrb[0].mxu0
        %v2207 = vadd.f32 %v2035, %v2206
        %v2208 = vpop.f32.mrb[0].mxu0
        %2209 = vdwg.mxu0
        %2210 = vst.msk [vmem:[%s597] sm:$0xff] %vm1993, %v2084
        %2211 = vst.msk [vmem:[%s597 + $0x8] sm:$0xff] %vm1993, %v2087
        %2212 = vst.msk [vmem:[%s597 + $0x10] sm:$0xff] %vm1993, %v2092
        %2213 = vst.msk [vmem:[%s597 + $0x18] sm:$0xff] %vm1993, %v2095
        %2214 = vst.msk [vmem:[%s597 + $0x20] sm:$0xff] %vm1993, %v2100
        %2215 = vst.msk [vmem:[%s597 + $0x28] sm:$0xff] %vm1993, %v2103
        %2216 = vst.msk [vmem:[%s597 + $0x30] sm:$0xff] %vm1993, %v2108
        %2217 = vst.msk [vmem:[%s597 + $0x38] sm:$0xff] %vm1993, %v2111
        %2218 = vst.msk [vmem:[%s597 + $0x40] sm:$0xff] %vm1993, %v2116
        %2219 = vst.msk [vmem:[%s597 + $0x48] sm:$0xff] %vm1993, %v2119
        %2220 = vst.msk [vmem:[%s597 + $0x50] sm:$0xff] %vm1993, %v2124
        %2221 = vst.msk [vmem:[%s597 + $0x58] sm:$0xff] %vm1993, %v2127
        %2222 = vst.msk [vmem:[%s597 + $0x60] sm:$0xff] %vm1993, %v2132
        %2223 = vst.msk [vmem:[%s597 + $0x68] sm:$0xff] %vm1993, %v2135
        %2224 = vst.msk [vmem:[%s597 + $0x70] sm:$0xff] %vm1993, %v2140
        %2225 = vst.msk [vmem:[%s597 + $0x78] sm:$0xff] %vm1993, %v2143
        %2226 = vst.msk [vmem:[%s597 + $0x80] sm:$0xff] %vm1993, %v2148
        %2227 = vst.msk [vmem:[%s597 + $0x88] sm:$0xff] %vm1993, %v2151
        %2228 = vst.msk [vmem:[%s597 + $0x90] sm:$0xff] %vm1993, %v2156
        %2229 = vst.msk [vmem:[%s597 + $0x98] sm:$0xff] %vm1993, %v2159
        %2230 = vst.msk [vmem:[%s597 + $0xa0] sm:$0xff] %vm1993, %v2164
        %2231 = vst.msk [vmem:[%s597 + $0xa8] sm:$0xff] %vm1993, %v2167
        %2232 = vst.msk [vmem:[%s597 + $0xb0] sm:$0xff] %vm1993, %v2172
        %2233 = vst.msk [vmem:[%s597 + $0xb8] sm:$0xff] %vm1993, %v2175
        %2234 = vst.msk [vmem:[%s597 + $0xc0] sm:$0xff] %vm1993, %v2180
        %2235 = vst.msk [vmem:[%s597 + $0xc8] sm:$0xff] %vm1993, %v2183
        %2236 = vst.msk [vmem:[%s597 + $0xd0] sm:$0xff] %vm1993, %v2188
        %2237 = vst.msk [vmem:[%s597 + $0xd8] sm:$0xff] %vm1993, %v2191
        %2238 = vst.msk [vmem:[%s597 + $0xe0] sm:$0xff] %vm1993, %v2196
        %2239 = vst.msk [vmem:[%s597 + $0xe8] sm:$0xff] %vm1993, %v2199
        %2240 = vst.msk [vmem:[%s597 + $0xf0] sm:$0xff] %vm1993, %v2204
        %2241 = vst.msk [vmem:[%s597 + $0xf8] sm:$0xff] %vm1993, %v2207
        %s2242 = sand.u32 %s268, 1
        %s2243 = scalar_lea.sflag [#allocation4], %s2242
        %s2244 = sand.u32 %s268, 1
        %s2245 = smul.addr %s2244, 128
        %s2246 = scalar_lea.vmem [#allocation19], %s2245
        %s2247 = sand.u32 %s40, 1
        %s2248 = scalar_lea.sflag [#allocation21], %s2247
        %s2249 = sand.u32 %s294, 1
        %s2250 = smul.addr %s2249, 256
        %s2251 = scalar_lea.vmem [#allocation20], %s2250
        %s2252 = sand.u32 %s40, 1
        %s2253 = scalar_lea.sflag [#allocation21], %s2252
        %s2254 = sand.u32 %s320, 1
        %s2255 = smul.addr %s2254, 256
        %s2256 = scalar_lea.vmem [#allocation22], %s2255
        // Predicated region
        $region101: #{unconditional_cse_style_mapper_forward.5} parent=59 // pred_check
          %p2257 = pneg %p278
        $region102: #{unconditional_cse_style_mapper_forward.5} parent=59 // pred_check_branch
          %2259 = sbr.rel (%p2257) target = $region104
        $region103: #{unconditional_cse_style_mapper_forward.5} parent=59 // pred_region
          %s2260 = smul.u32 32, %s40
          %s2262 = ssub.s32 2048, 2048
          %2263 = vsyncadd %s2243, %s2262
          %s2264 = smul.addr %s2260, 64
          %s2265 = scalar_lea.hbm %s10, %s2264
          %s2266 = sshll.u32 %s2246, 4
          %s2267 = int_to_ptr.vmem [resolvable:$true] %s2266
          %2272 = dma.vmem_to_hbm [thread:$0]  %s2267, 2048, %s2265, %s2243, 64, 64, 4
        $region104: #{unconditional_cse_style_mapper_forward.5} parent=59 // pred_fallthru
          _
        // Predicated region
        $region105: #{unconditional_cse_style_mapper_forward.5} parent=59 // pred_check
          %p2273 = pneg %p304
        $region106: #{unconditional_cse_style_mapper_forward.5} parent=59 // pred_check_branch
          %2275 = sbr.rel (%p2273) target = $region108
        $region107: #{unconditional_cse_style_mapper_forward.5} parent=59 // pred_region
          %s2276 = smul.u32 32, %s40
          %s2278 = ssub.s32 4096, 4096
          %2279 = vsyncadd %s2248, %s2278
          %s2280 = smul.addr %s2276, 128
          %s2281 = scalar_lea.hbm %s11, %s2280
          %s2282 = sshll.u32 %s2251, 4
          %s2283 = int_to_ptr.vmem [resolvable:$true] %s2282
          %2288 = dma.vmem_to_hbm [thread:$0]  %s2283, 4096, %s2281, %s2248, 128, 128, 8
        $region108: #{unconditional_cse_style_mapper_forward.5} parent=59 // pred_fallthru
          _
        // Predicated region
        $region109: #{unconditional_cse_style_mapper_forward.5} parent=59 // pred_check
          %p2289 = pneg %p330
        $region110: #{unconditional_cse_style_mapper_forward.5} parent=59 // pred_check_branch
          %2291 = sbr.rel (%p2289) target = $region112
        $region111: #{unconditional_cse_style_mapper_forward.5} parent=59 // pred_region
          %s2292 = smul.u32 32, %s40
          %s2294 = ssub.s32 4096, 4096
          %2295 = vsyncadd %s2253, %s2294
          %s2296 = smul.addr %s2292, 128
          %s2297 = scalar_lea.hbm %s12, %s2296
          %s2298 = sshll.u32 %s2256, 4
          %s2299 = int_to_ptr.vmem [resolvable:$true] %s2298
          %2304 = dma.vmem_to_hbm [thread:$0]  %s2299, 4096, %s2297, %s2253, 128, 128, 8
        $region112: #{unconditional_cse_style_mapper_forward.5} parent=59 // pred_fallthru
          _
      $region60: #{unconditional_cse_style_mapper_forward.5} parent=5 // pred_fallthru
        _
      %p2305 = scmp.le.s32.totalorder 2, %s35
      // Predicated region
      $region113: #{unconditional_cse_style_mapper_forward.5} parent=5 // pred_check
        %p2306 = pneg %p2305
      $region114: #{unconditional_cse_style_mapper_forward.5} parent=5 // pred_check_branch
        %2308 = sbr.rel (%p2306) target = $region116
      $region115: #{unconditional_cse_style_mapper_forward.5} parent=5 // pred_region
        %s2309 = ssub.s32 %s35, 2
        // Predicated region
        $region117: #{unconditional_cse_style_mapper_forward.5} parent=115 // pred_check
          %p2310 = pneg %p284
        $region118: #{unconditional_cse_style_mapper_forward.5} parent=115 // pred_check_branch
          %2312 = sbr.rel (%p2310) target = $region120
        $region119: #{unconditional_cse_style_mapper_forward.5} parent=115 // pred_region
          %s2313 = sand.u32 %s269, 1
          %s2314 = scalar_lea.sflag [#allocation4], %s2313
          %s2315 = sand.u32 %s269, 1
          %s2316 = smul.addr %s2315, 128
          %s2317 = scalar_lea.vmem [#allocation19], %s2316
          %2318 = dma.done %s2314, 2048
        $region120: #{unconditional_cse_style_mapper_forward.5} parent=115 // pred_fallthru
          _
        // Predicated region
        $region121: #{unconditional_cse_style_mapper_forward.5} parent=115 // pred_check
          %p2319 = pneg %p310
        $region122: #{unconditional_cse_style_mapper_forward.5} parent=115 // pred_check_branch
          %2321 = sbr.rel (%p2319) target = $region124
        $region123: #{unconditional_cse_style_mapper_forward.5} parent=115 // pred_region
          %s2322 = sand.u32 %s41, 1
          %s2323 = scalar_lea.sflag [#allocation21], %s2322
          %s2324 = sand.u32 %s295, 1
          %s2325 = smul.addr %s2324, 256
          %s2326 = scalar_lea.vmem [#allocation20], %s2325
          %2327 = dma.done %s2323, 4096
        $region124: #{unconditional_cse_style_mapper_forward.5} parent=115 // pred_fallthru
          _
        // Predicated region
        $region125: #{unconditional_cse_style_mapper_forward.5} parent=115 // pred_check
          %p2328 = pneg %p336
        $region126: #{unconditional_cse_style_mapper_forward.5} parent=115 // pred_check_branch
          %2330 = sbr.rel (%p2328) target = $region128
        $region127: #{unconditional_cse_style_mapper_forward.5} parent=115 // pred_region
          %s2331 = sand.u32 %s41, 1
          %s2332 = scalar_lea.sflag [#allocation21], %s2331
          %s2333 = sand.u32 %s321, 1
          %s2334 = smul.addr %s2333, 256
          %s2335 = scalar_lea.vmem [#allocation22], %s2334
          %2336 = dma.done %s2332, 4096
        $region128: #{unconditional_cse_style_mapper_forward.5} parent=115 // pred_fallthru
          _
      $region116: #{unconditional_cse_style_mapper_forward.5} parent=5 // pred_fallthru
        _
    $region6: #{unconditional_cse_style_mapper_forward.5} parent=1 // loop_footer
      %s39 = sadd.s32 1, %s35
    $region7: #{unconditional_cse_style_mapper_forward.5} parent=1 // loop_footer_branch
      %34 = sbr.rel target = $region3
    $region8: #{unconditional_cse_style_mapper_forward.5} parent=1 // loop_exit
      _
    %2337 = vsyncpa [#allocation3], 1
    %s2338 = scalar_lea.sflag [#allocation3], 1
    %2339 = vsyncpa %s2338, 1
    %2340 = vsyncpa [#allocation6], 1
    %s2341 = scalar_lea.sflag [#allocation6], 1
    %2342 = vsyncpa %s2341, 1
    %2343 = vsyncpa [#allocation9], 1
    %2344 = vsyncpa [#allocation12], 1
    %2345 = vsyncpa [#allocation15], 1
    %2346 = vsyncpa [#allocation18], 1
    %2347 = vsyncpa [#allocation4], 1
    %s2348 = scalar_lea.sflag [#allocation4], 1
    %2349 = vsyncpa %s2348, 1
    %2350 = vsyncpa [#allocation21], 1
    %s2351 = scalar_lea.sflag [#allocation21], 1
    %2352 = vsyncpa %s2351, 1

// kernel: unconditional_cse_style_mapper_forward.6
$region0: #{unconditional_cse_style_mapper_forward.6}
  #allocation0 [shape = 'u32[]', space=smem, size = 0x4, offset = 0x4, fixed_abs, tag = 'smem constant byte address 0x4 - core index']
  #allocation1 [shape = 'u32[144,128]{1,0:T(1,128)}', space=vmem, size = 0x12000, scoped, tag = 'internal scratch']
  %s0 = inlined_call_operand.hbm [shape: bf16[128,32], index: 0, kind: input, shape index: {}]
  %s1 = inlined_call_operand.hbm [shape: bf16[32,8], index: 1, kind: input, shape index: {}]
  %s2 = inlined_call_operand.hbm [shape: f32[1,8], index: 2, kind: input, shape index: {}]
  %s3 = inlined_call_operand.hbm [shape: bf16[32,8], index: 3, kind: input, shape index: {}]
  %s4 = inlined_call_operand.hbm [shape: f32[1,8], index: 4, kind: input, shape index: {}]
  %s5 = inlined_call_operand.hbm [shape: f32[128,8], index: 5, kind: output, shape index: {0}]
  %s6 = inlined_call_operand.hbm [shape: f32[128,8], index: 6, kind: output, shape index: {1}]
  %7 = xla_tuple %s5, %s6
  %s8 = sld [smem:[#allocation0]]
  $region81: #{unconditional_cse_style_mapper_forward.6} parent=0
    _
  %s10 = ssub.s32 1, %s8
  %s11 = scalar_select 0, %s10, %s8
  $region1: #{unconditional_cse_style_mapper_forward.6} parent=0
    #allocation2 [shape = 'u8[32768]{0}', space=vmem, size = 0x8000, scoped, tag = 'input window, operand 0']
    #allocation3 [shape = 's32[2]{0}', space=sflag, size = 0x8, scoped, tag = 'scoped memory for unconditional_cse_style_mapper_forward.6']
    #allocation4 [shape = 's32[2]{0}', space=sflag, size = 0x8, scoped, tag = 'scoped memory for unconditional_cse_style_mapper_forward.6']
    #allocation5 [shape = 'u8[8192]{0}', space=vmem, size = 0x2000, scoped, tag = 'input window, operand 1, single buffered']
    #allocation6 [shape = 's32[1]{0}', space=sflag, size = 0x4, scoped, tag = 'scoped memory for unconditional_cse_style_mapper_forward.6']
    #allocation7 [shape = 'u8[512]{0}', space=vmem, size = 0x400, scoped, tag = 'input window, operand 2, single buffered']
    #allocation8 [shape = 'u8[8192]{0}', space=vmem, size = 0x2000, scoped, tag = 'input window, operand 3, single buffered']
    #allocation9 [shape = 's32[1]{0}', space=sflag, size = 0x4, scoped, tag = 'scoped memory for unconditional_cse_style_mapper_forward.6']
    #allocation10 [shape = 'u8[512]{0}', space=vmem, size = 0x400, scoped, tag = 'input window, operand 4, single buffered']
    #allocation11 [shape = 'u8[65536]{0}', space=vmem, size = 0x10000, scoped, tag = 'output window, operand 0']
    #allocation12 [shape = 'u8[65536]{0}', space=vmem, size = 0x10000, scoped, tag = 'output window, operand 1']
    #allocation13 [shape = 's32[2]{0}', space=sflag, size = 0x8, scoped, tag = 'scoped memory for unconditional_cse_style_mapper_forward.6']
    %12 = vsyncpa [#allocation3], 0
    %s13 = scalar_lea.sflag [#allocation3], 1
    %14 = vsyncpa %s13, 0
    %15 = vsyncpa [#allocation6], 0
    %16 = vsyncpa [#allocation9], 0
    %17 = vsyncpa [#allocation4], 0
    %s18 = scalar_lea.sflag [#allocation4], 1
    %19 = vsyncpa %s18, 0
    %20 = vsyncpa [#allocation13], 0
    %s21 = scalar_lea.sflag [#allocation13], 1
    %22 = vsyncpa %s21, 0
    loop: start=0, step=1, limit=4
    $region2: #{unconditional_cse_style_mapper_forward.6} parent=1 // loop_pre_header
      _
    $region3: #{unconditional_cse_style_mapper_forward.6} parent=1 // loop_header
      %s24 = sphi 0, %s28
      %p25 = scmp.ge.s32.totalorder %s24, 4
      %s34 = sphi 0, %s36
      %s37 = sphi 0, %s34
      %s38 = sphi 0, %s37
      %s54 = sphi 0, %s38
      %s58 = sphi 0, %s58
      %s60 = sphi 0, %s58
      %s61 = sphi 0, %s60
      %s75 = sphi 0, %s61
      %s79 = sphi 0, %s79
      %s81 = sphi 0, %s79
      %s82 = sphi 0, %s81
      %s96 = sphi 0, %s82
      %s100 = sphi 0, %s100
      %s102 = sphi 0, %s100
      %s103 = sphi 0, %s102
      %s117 = sphi 0, %s103
      %s121 = sphi 0, %s121
      %s123 = sphi 0, %s121
      %s124 = sphi 0, %s123
      %s138 = sphi 0, %s124
      %s144 = sphi 0, %s146
      %s147 = sphi 0, %s144
      %s148 = sphi 0, %s147
      %s164 = sphi 0, %s148
      %s170 = sphi 0, %s172
      %s173 = sphi 0, %s170
      %s174 = sphi 0, %s173
      %s190 = sphi 0, %s174
    $region4: #{unconditional_cse_style_mapper_forward.6} parent=1 // loop_header_branch
      %27 = sbr.rel (%p25) target = $region8
    $region5: #{unconditional_cse_style_mapper_forward.6} parent=1 // loop_body
      %s29 = ssub.s32 %s24, 1
      %s30 = ssub.s32 %s24, 2
      %s31 = sadd.s32 %s24, 1
      %s32 = ssub.s32 %s24, %s31
      %p33 = scmp.eq.s32.totalorder %s32, 0
      %s35 = sadd.s32 %s34, 1
      %s36 = scalar_select %p33, %s34, %s35
      %p39 = pneg %p33
      %p40 = scmp.eq.s32.totalorder %s24, 1
      %p41 = por %p39, %p40
      %p42 = scmp.ne.s32.totalorder %s34, %s37
      %p43 = scmp.eq.s32.totalorder %s24, 0
      %p44 = por %p42, %p43
      %p45 = scmp.ne.s32.totalorder %s34, %s37
      %p46 = scmp.eq.s32.totalorder %s29, 1
      %p47 = por %p45, %p46
      %p48 = scmp.ne.s32.totalorder %s37, %s38
      %p49 = scmp.eq.s32.totalorder %s29, 0
      %p50 = por %p48, %p49
      %p51 = scmp.ne.s32.totalorder %s37, %s38
      %p52 = scmp.eq.s32.totalorder %s30, 1
      %p53 = por %p51, %p52
      %p55 = scmp.ne.s32.totalorder %s38, %s54
      %p56 = scmp.eq.s32.totalorder %s30, 0
      %p57 = por %p55, %p56
      %s59 = sadd.s32 %s58, 1
      %p62 = scmp.eq.s32.totalorder %s24, 1
      %p63 = scmp.ne.s32.totalorder %s58, %s60
      %p64 = scmp.eq.s32.totalorder %s24, 0
      %p65 = por %p63, %p64
      %p66 = scmp.ne.s32.totalorder %s58, %s60
      %p67 = scmp.eq.s32.totalorder %s29, 1
      %p68 = por %p66, %p67
      %p69 = scmp.ne.s32.totalorder %s60, %s61
      %p70 = scmp.eq.s32.totalorder %s29, 0
      %p71 = por %p69, %p70
      %p72 = scmp.ne.s32.totalorder %s60, %s61
      %p73 = scmp.eq.s32.totalorder %s30, 1
      %p74 = por %p72, %p73
      %p76 = scmp.ne.s32.totalorder %s61, %s75
      %p77 = scmp.eq.s32.totalorder %s30, 0
      %p78 = por %p76, %p77
      %s80 = sadd.s32 %s79, 1
      %p83 = scmp.eq.s32.totalorder %s24, 1
      %p84 = scmp.ne.s32.totalorder %s79, %s81
      %p85 = scmp.eq.s32.totalorder %s24, 0
      %p86 = por %p84, %p85
      %p87 = scmp.ne.s32.totalorder %s79, %s81
      %p88 = scmp.eq.s32.totalorder %s29, 1
      %p89 = por %p87, %p88
      %p90 = scmp.ne.s32.totalorder %s81, %s82
      %p91 = scmp.eq.s32.totalorder %s29, 0
      %p92 = por %p90, %p91
      %p93 = scmp.ne.s32.totalorder %s81, %s82
      %p94 = scmp.eq.s32.totalorder %s30, 1
      %p95 = por %p93, %p94
      %p97 = scmp.ne.s32.totalorder %s82, %s96
      %p98 = scmp.eq.s32.totalorder %s30, 0
      %p99 = por %p97, %p98
      %s101 = sadd.s32 %s100, 1
      %p104 = scmp.eq.s32.totalorder %s24, 1
      %p105 = scmp.ne.s32.totalorder %s100, %s102
      %p106 = scmp.eq.s32.totalorder %s24, 0
      %p107 = por %p105, %p106
      %p108 = scmp.ne.s32.totalorder %s100, %s102
      %p109 = scmp.eq.s32.totalorder %s29, 1
      %p110 = por %p108, %p109
      %p111 = scmp.ne.s32.totalorder %s102, %s103
      %p112 = scmp.eq.s32.totalorder %s29, 0
      %p113 = por %p111, %p112
      %p114 = scmp.ne.s32.totalorder %s102, %s103
      %p115 = scmp.eq.s32.totalorder %s30, 1
      %p116 = por %p114, %p115
      %p118 = scmp.ne.s32.totalorder %s103, %s117
      %p119 = scmp.eq.s32.totalorder %s30, 0
      %p120 = por %p118, %p119
      %s122 = sadd.s32 %s121, 1
      %p125 = scmp.eq.s32.totalorder %s24, 1
      %p126 = scmp.ne.s32.totalorder %s121, %s123
      %p127 = scmp.eq.s32.totalorder %s24, 0
      %p128 = por %p126, %p127
      %p129 = scmp.ne.s32.totalorder %s121, %s123
      %p130 = scmp.eq.s32.totalorder %s29, 1
      %p131 = por %p129, %p130
      %p132 = scmp.ne.s32.totalorder %s123, %s124
      %p133 = scmp.eq.s32.totalorder %s29, 0
      %p134 = por %p132, %p133
      %p135 = scmp.ne.s32.totalorder %s123, %s124
      %p136 = scmp.eq.s32.totalorder %s30, 1
      %p137 = por %p135, %p136
      %p139 = scmp.ne.s32.totalorder %s124, %s138
      %p140 = scmp.eq.s32.totalorder %s30, 0
      %p141 = por %p139, %p140
      %s142 = ssub.s32 %s24, %s31
      %p143 = scmp.eq.s32.totalorder %s142, 0
      %s145 = sadd.s32 %s144, 1
      %s146 = scalar_select %p143, %s144, %s145
      %p149 = pneg %p143
      %p150 = scmp.eq.s32.totalorder %s24, 1
      %p151 = por %p149, %p150
      %p152 = scmp.ne.s32.totalorder %s144, %s147
      %p153 = scmp.eq.s32.totalorder %s24, 0
      %p154 = por %p152, %p153
      %p155 = scmp.ne.s32.totalorder %s144, %s147
      %p156 = scmp.eq.s32.totalorder %s29, 1
      %p157 = por %p155, %p156
      %p158 = scmp.ne.s32.totalorder %s147, %s148
      %p159 = scmp.eq.s32.totalorder %s29, 0
      %p160 = por %p158, %p159
      %p161 = scmp.ne.s32.totalorder %s147, %s148
      %p162 = scmp.eq.s32.totalorder %s30, 1
      %p163 = por %p161, %p162
      %p165 = scmp.ne.s32.totalorder %s148, %s164
      %p166 = scmp.eq.s32.totalorder %s30, 0
      %p167 = por %p165, %p166
      %s168 = ssub.s32 %s24, %s31
      %p169 = scmp.eq.s32.totalorder %s168, 0
      %s171 = sadd.s32 %s170, 1
      %s172 = scalar_select %p169, %s170, %s171
      %p175 = pneg %p169
      %p176 = scmp.eq.s32.totalorder %s24, 1
      %p177 = por %p175, %p176
      %p178 = scmp.ne.s32.totalorder %s170, %s173
      %p179 = scmp.eq.s32.totalorder %s24, 0
      %p180 = por %p178, %p179
      %p181 = scmp.ne.s32.totalorder %s170, %s173
      %p182 = scmp.eq.s32.totalorder %s29, 1
      %p183 = por %p181, %p182
      %p184 = scmp.ne.s32.totalorder %s173, %s174
      %p185 = scmp.eq.s32.totalorder %s29, 0
      %p186 = por %p184, %p185
      %p187 = scmp.ne.s32.totalorder %s173, %s174
      %p188 = scmp.eq.s32.totalorder %s30, 1
      %p189 = por %p187, %p188
      %p191 = scmp.ne.s32.totalorder %s174, %s190
      %p192 = scmp.eq.s32.totalorder %s30, 0
      %p193 = por %p191, %p192
      %p194 = scmp.le.s32.totalorder 1, %s24
      %p195 = scmp.lt.s32.totalorder %s24, 3
      %p196 = pnand %p194, %p195
      %p197 = pneg %p196
      // Predicated region
      $region9: #{unconditional_cse_style_mapper_forward.6} parent=5 // pred_check
        _
      $region10: #{unconditional_cse_style_mapper_forward.6} parent=5 // pred_check_branch
        %199 = sbr.rel (%p196) target = $region12
      $region11: #{unconditional_cse_style_mapper_forward.6} parent=5 // pred_region
        %s200 = ssub.s32 %s24, 1
        // Predicated region
        $region13: #{unconditional_cse_style_mapper_forward.6} parent=11 // pred_check
          %p201 = pneg %p71
        $region14: #{unconditional_cse_style_mapper_forward.6} parent=11 // pred_check_branch
          %203 = sbr.rel (%p201) target = $region16
        $region15: #{unconditional_cse_style_mapper_forward.6} parent=11 // pred_region
          %s205 = ssub.s32 256, 256
          %206 = vsyncadd [#allocation6], %s205
          %s207 = sshll.u32 [#allocation5], 4
          %s208 = int_to_ptr.vmem [resolvable:$true] %s207
          %213 = dma.hbm_to_vmem [thread:$0]  %s1, 256, %s208, [#allocation6], 64, 64, 4
        $region16: #{unconditional_cse_style_mapper_forward.6} parent=11 // pred_fallthru
          _
        // Predicated region
        $region17: #{unconditional_cse_style_mapper_forward.6} parent=11 // pred_check
          %p214 = pneg %p92
        $region18: #{unconditional_cse_style_mapper_forward.6} parent=11 // pred_check_branch
          %216 = sbr.rel (%p214) target = $region20
        $region19: #{unconditional_cse_style_mapper_forward.6} parent=11 // pred_region
          %s218 = ssub.s32 16, 16
          %219 = vsyncadd [#allocation6], %s218
          %s221 = sshll.u32 [#allocation7], 4
          %s222 = int_to_ptr.vmem [resolvable:$true] %s221
          %224 = dma.hbm_to_vmem [thread:$0]  %s2, 16, %s222, [#allocation6]
        $region20: #{unconditional_cse_style_mapper_forward.6} parent=11 // pred_fallthru
          _
        // Predicated region
        $region21: #{unconditional_cse_style_mapper_forward.6} parent=11 // pred_check
          %p225 = pneg %p113
        $region22: #{unconditional_cse_style_mapper_forward.6} parent=11 // pred_check_branch
          %227 = sbr.rel (%p225) target = $region24
        $region23: #{unconditional_cse_style_mapper_forward.6} parent=11 // pred_region
          %s229 = ssub.s32 256, 256
          %230 = vsyncadd [#allocation9], %s229
          %s231 = sshll.u32 [#allocation8], 4
          %s232 = int_to_ptr.vmem [resolvable:$true] %s231
          %237 = dma.hbm_to_vmem [thread:$0]  %s3, 256, %s232, [#allocation9], 64, 64, 4
        $region24: #{unconditional_cse_style_mapper_forward.6} parent=11 // pred_fallthru
          _
        // Predicated region
        $region25: #{unconditional_cse_style_mapper_forward.6} parent=11 // pred_check
          %p238 = pneg %p134
        $region26: #{unconditional_cse_style_mapper_forward.6} parent=11 // pred_check_branch
          %240 = sbr.rel (%p238) target = $region28
        $region27: #{unconditional_cse_style_mapper_forward.6} parent=11 // pred_region
          %s242 = ssub.s32 16, 16
          %243 = vsyncadd [#allocation9], %s242
          %s245 = sshll.u32 [#allocation10], 4
          %s246 = int_to_ptr.vmem [resolvable:$true] %s245
          %248 = dma.hbm_to_vmem [thread:$0]  %s4, 16, %s246, [#allocation9]
        $region28: #{unconditional_cse_style_mapper_forward.6} parent=11 // pred_fallthru
          _
      $region12: #{unconditional_cse_style_mapper_forward.6} parent=5 // pred_fallthru
        _
      %p249 = scmp.lt.s32.totalorder %s24, 2
      // Predicated region
      $region29: #{unconditional_cse_style_mapper_forward.6} parent=5 // pred_check
        %p250 = pneg %p249
      $region30: #{unconditional_cse_style_mapper_forward.6} parent=5 // pred_check_branch
        %252 = sbr.rel (%p250) target = $region32
      $region31: #{unconditional_cse_style_mapper_forward.6} parent=5 // pred_region
        // Predicated region
        $region33: #{unconditional_cse_style_mapper_forward.6} parent=31 // pred_check
          %p253 = pneg %p44
        $region34: #{unconditional_cse_style_mapper_forward.6} parent=31 // pred_check_branch
          %255 = sbr.rel (%p253) target = $region36
        $region35: #{unconditional_cse_style_mapper_forward.6} parent=31 // pred_region
          %s256 = sand.u32 %s34, 1
          %s257 = scalar_lea.sflag [#allocation3], %s256
          %s258 = sand.u32 %s34, 1
          %s259 = smul.addr %s258, 32
          %s260 = scalar_lea.vmem [#allocation2], %s259
          %s261 = smul.u32 8, %s24
          %s263 = ssub.s32 512, 512
          %264 = vsyncadd %s257, %s263
          %s265 = smul.addr %s261, 64
          %s266 = scalar_lea.hbm %s0, %s265
          %s267 = sshll.u32 %s260, 4
          %s268 = int_to_ptr.vmem [resolvable:$true] %s267
          %273 = dma.hbm_to_vmem [thread:$0]  %s266, 512, %s268, %s257, 64, 64, 4
        $region36: #{unconditional_cse_style_mapper_forward.6} parent=31 // pred_fallthru
          _
      $region32: #{unconditional_cse_style_mapper_forward.6} parent=5 // pred_fallthru
        _
      %p274 = scmp.le.s32.totalorder 1, %s24
      %p275 = scmp.lt.s32.totalorder %s24, 3
      %p276 = pnand %p274, %p275
      %p277 = pneg %p276
      // Predicated region
      $region37: #{unconditional_cse_style_mapper_forward.6} parent=5 // pred_check
        _
      $region38: #{unconditional_cse_style_mapper_forward.6} parent=5 // pred_check_branch
        %279 = sbr.rel (%p276) target = $region40
      $region39: #{unconditional_cse_style_mapper_forward.6} parent=5 // pred_region
        %s280 = ssub.s32 %s24, 1
        %s281 = sand.u32 %s37, 1
        %s282 = scalar_lea.sflag [#allocation3], %s281
        %s283 = sand.u32 %s37, 1
        %s284 = smul.addr %s283, 32
        %s285 = scalar_lea.vmem [#allocation2], %s284
        // Predicated region
        $region41: #{unconditional_cse_style_mapper_forward.6} parent=39 // pred_check
          %p286 = pneg %p50
        $region42: #{unconditional_cse_style_mapper_forward.6} parent=39 // pred_check_branch
          %288 = sbr.rel (%p286) target = $region44
        $region43: #{unconditional_cse_style_mapper_forward.6} parent=39 // pred_region
          %289 = dma.done %s282, 512
        $region44: #{unconditional_cse_style_mapper_forward.6} parent=39 // pred_fallthru
          _
        // Predicated region
        $region45: #{unconditional_cse_style_mapper_forward.6} parent=39 // pred_check
          %p290 = pneg %p71
        $region46: #{unconditional_cse_style_mapper_forward.6} parent=39 // pred_check_branch
          %292 = sbr.rel (%p290) target = $region48
        $region47: #{unconditional_cse_style_mapper_forward.6} parent=39 // pred_region
          %293 = dma.done [#allocation6], 256
        $region48: #{unconditional_cse_style_mapper_forward.6} parent=39 // pred_fallthru
          _
        // Predicated region
        $region49: #{unconditional_cse_style_mapper_forward.6} parent=39 // pred_check
          %p294 = pneg %p92
        $region50: #{unconditional_cse_style_mapper_forward.6} parent=39 // pred_check_branch
          %296 = sbr.rel (%p294) target = $region52
        $region51: #{unconditional_cse_style_mapper_forward.6} parent=39 // pred_region
          %297 = dma.done [#allocation6], 16
        $region52: #{unconditional_cse_style_mapper_forward.6} parent=39 // pred_fallthru
          _
        // Predicated region
        $region53: #{unconditional_cse_style_mapper_forward.6} parent=39 // pred_check
          %p298 = pneg %p113
        $region54: #{unconditional_cse_style_mapper_forward.6} parent=39 // pred_check_branch
          %300 = sbr.rel (%p298) target = $region56
        $region55: #{unconditional_cse_style_mapper_forward.6} parent=39 // pred_region
          %301 = dma.done [#allocation9], 256
        $region56: #{unconditional_cse_style_mapper_forward.6} parent=39 // pred_fallthru
          _
        // Predicated region
        $region57: #{unconditional_cse_style_mapper_forward.6} parent=39 // pred_check
          %p302 = pneg %p134
        $region58: #{unconditional_cse_style_mapper_forward.6} parent=39 // pred_check_branch
          %304 = sbr.rel (%p302) target = $region60
        $region59: #{unconditional_cse_style_mapper_forward.6} parent=39 // pred_region
          %305 = dma.done [#allocation9], 16
        $region60: #{unconditional_cse_style_mapper_forward.6} parent=39 // pred_fallthru
          _
        %s306 = sand.u32 %s37, 1
        %s307 = scalar_lea.sflag [#allocation3], %s306
        %s308 = sand.u32 %s37, 1
        %s309 = smul.addr %s308, 32
        %s310 = scalar_lea.vmem [#allocation2], %s309
        %p311 = pneg %p50
        %p312 = pneg %p47
        %p313 = pneg %p71
        %p314 = pneg %p68
        %p315 = pneg %p92
        %p316 = pneg %p89
        %p317 = pneg %p113
        %p318 = pneg %p110
        %p319 = pneg %p134
        %p320 = pneg %p131
        %p321 = pneg %p160
        %p322 = pneg %p157
        %s323 = sand.u32 %s147, 1
        %s324 = scalar_lea.sflag [#allocation4], %s323
        %s325 = sand.u32 %s147, 1
        %s326 = smul.addr %s325, 64
        %s327 = scalar_lea.vmem [#allocation11], %s326
        %p328 = pneg %p186
        %p329 = pneg %p183
        %s330 = sand.u32 %s173, 1
        %s331 = scalar_lea.sflag [#allocation13], %s330
        %s332 = sand.u32 %s173, 1
        %s333 = smul.addr %s332, 64
        %s334 = scalar_lea.vmem [#allocation12], %s333
        %s335 = smul.u32 8, %s29
        %s336 = smul.u32 8, %s29
        %s337 = smul.u32 8, %s29
        %v339 = vld [vmem:[%s285] sm:$0xf]
        %v340 = vld [vmem:[%s285 + $0x4] sm:$0xf]
        %v341 = vld [vmem:[%s285 + $0x8] sm:$0xf]
        %v342 = vld [vmem:[%s285 + $0xc] sm:$0xf]
        %v343 = vld [vmem:[%s285 + $0x10] sm:$0xf]
        %v344 = vld [vmem:[%s285 + $0x14] sm:$0xf]
        %v345 = vld [vmem:[%s285 + $0x18] sm:$0xf]
        %v346 = vld [vmem:[%s285 + $0x1c] sm:$0xf]
        %v347 = vld [vmem:[#allocation5] sm:$0xf]
        %v348 = vld [vmem:[#allocation5 + $0x4] sm:$0xf]
        %v349 = vld [vmem:[#allocation5 + $0x8] sm:$0xf]
        %v350 = vld [vmem:[#allocation5 + $0xc] sm:$0xf]
        %v351 = vld [vmem:[#allocation7] sm:$0x1]
        %v353 = vlaneseq
        %v354 = vshrl.u32 %v353, 7
        %v355 = vsub.s32 0, %v354
        %v356 = vrot.slane %v351, %v355
        %v366 = vunpack.c.l.b16 %v339
        %v367 = vunpack.c.l.b16 %v340
        %v368 = vunpack.c.l.b16 %v341
        %v369 = vunpack.c.l.b16 %v342
        %v370 = vunpack.c.l.b16 %v343
        %v371 = vunpack.c.l.b16 %v344
        %v372 = vunpack.c.l.b16 %v345
        %v373 = vunpack.c.l.b16 %v346
        %v374 = vpack.c.b16 %v367, %v366
        %v375 = vpack.c.b16 %v369, %v368
        %v376 = vpack.c.b16 %v371, %v370
        %v377 = vpack.c.b16 %v373, %v372
        %v382 = vunpack.c.l.b16 %v347
        %v383 = vunpack.c.l.b16 %v348
        %v384 = vunpack.c.l.b16 %v349
        %v385 = vunpack.c.l.b16 %v350
        %v386 = vpack.c.b16 %v383, %v382
        %v387 = vpack.c.b16 %v385, %v384
        %vm390 = vcmask 261120
        %v392 = vsel %vm390, %v374, 0
        %v395 = vsel %vm390, %v375, 0
        %v398 = vsel %vm390, %v376, 0
        %v401 = vsel %vm390, %v377, 0
        %403 = vmatprep.subr.bf16.mxu0 0
        %404 = vmatpush1.bf16.msra.mxu0 %v386
        %405 = vmatprep.subr.bf16.mxu0 0
        %406 = vmatpush1.bf16.msra.mxu0 %v387
        %407 = vmatprep.subr.bf16.mxu0 0
        %408 = vmatpush1.bf16.msra.mxu0 0
        %409 = vmatprep.subr.bf16.mxu0 0
        %410 = vmatpush1.bf16.msra.mxu0 0
        %411 = vmatprep.subr.bf16.mxu0 0
        %412 = vmatpush1.bf16.msra.mxu0 0
        %413 = vmatprep.subr.bf16.mxu0 0
        %414 = vmatpush1.bf16.msra.mxu0 0
        %415 = vmatprep.subr.bf16.mxu0 0
        %416 = vmatpush1.bf16.msra.mxu0 0
        %417 = vmatprep.subr.bf16.mxu0 0
        %418 = vmatpush1.bf16.msra.mxu0 0
        %419 = vmatprep.subr.bf16.mxu0 0
        %420 = vmatpush1.bf16.msra.mxu0 0
        %421 = vmatprep.subr.bf16.mxu0 0
        %422 = vmatpush1.bf16.msra.mxu0 0
        %423 = vmatprep.subr.bf16.mxu0 0
        %424 = vmatpush1.bf16.msra.mxu0 0
        %425 = vmatprep.subr.bf16.mxu0 0
        %426 = vmatpush1.bf16.msra.mxu0 0
        %427 = vmatprep.subr.bf16.mxu0 0
        %428 = vmatpush1.bf16.msra.mxu0 0
        %429 = vmatprep.subr.bf16.mxu0 0
        %430 = vmatpush1.bf16.msra.mxu0 0
        %431 = vmatprep.subr.bf16.mxu0 0
        %432 = vmatpush1.bf16.msra.mxu0 0
        %433 = vmatprep.subr.bf16.mxu0 0
        %434 = vmatpush1.bf16.msra.mxu0 0
        %435 = vmatprep.mubr.bf16.mxu0 0
        %436 = vmatmul.mubr.bf16.gmra.mrb[0].mxu0 %v392
        %v437 = vpop.f32.mrb[0].mxu0
        %v438 = vadd.f32 %v356, %v437
        %v439 = vpop.f32.mrb[0].mxu0
        %v440 = vpop.f32.mrb[0].mxu0
        %v441 = vadd.f32 %v356, %v440
        %v442 = vpop.f32.mrb[0].mxu0
        %443 = vmatprep.mubr.bf16.mxu0 0
        %444 = vmatmul.mubr.bf16.gmra.mrb[0].mxu0 %v395
        %v445 = vpop.f32.mrb[0].mxu0
        %v446 = vadd.f32 %v356, %v445
        %v447 = vpop.f32.mrb[0].mxu0
        %v448 = vpop.f32.mrb[0].mxu0
        %v449 = vadd.f32 %v356, %v448
        %v450 = vpop.f32.mrb[0].mxu0
        %451 = vmatprep.mubr.bf16.mxu0 0
        %452 = vmatmul.mubr.bf16.gmra.mrb[0].mxu0 %v398
        %v453 = vpop.f32.mrb[0].mxu0
        %v454 = vadd.f32 %v356, %v453
        %v455 = vpop.f32.mrb[0].mxu0
        %v456 = vpop.f32.mrb[0].mxu0
        %v457 = vadd.f32 %v356, %v456
        %v458 = vpop.f32.mrb[0].mxu0
        %459 = vmatprep.mubr.bf16.mxu0 0
        %460 = vmatmul.mubr.bf16.gmra.mrb[0].mxu0 %v401
        %v461 = vpop.f32.mrb[0].mxu0
        %v462 = vadd.f32 %v356, %v461
        %v463 = vpop.f32.mrb[0].mxu0
        %v464 = vpop.f32.mrb[0].mxu0
        %v465 = vadd.f32 %v356, %v464
        %v466 = vpop.f32.mrb[0].mxu0
        %467 = vdwg.mxu0
        %vm468 = vcmask 64512
        %469 = vst.msk [vmem:[%s327] sm:$0xff] %vm468, %v438
        %470 = vst.msk [vmem:[%s327 + $0x8] sm:$0xff] %vm468, %v441
        %471 = vst.msk [vmem:[%s327 + $0x10] sm:$0xff] %vm468, %v446
        %472 = vst.msk [vmem:[%s327 + $0x18] sm:$0xff] %vm468, %v449
        %473 = vst.msk [vmem:[%s327 + $0x20] sm:$0xff] %vm468, %v454
        %474 = vst.msk [vmem:[%s327 + $0x28] sm:$0xff] %vm468, %v457
        %475 = vst.msk [vmem:[%s327 + $0x30] sm:$0xff] %vm468, %v462
        %476 = vst.msk [vmem:[%s327 + $0x38] sm:$0xff] %vm468, %v465
        %v477 = vld [vmem:[#allocation8] sm:$0xf]
        %v478 = vld [vmem:[#allocation8 + $0x4] sm:$0xf]
        %v479 = vld [vmem:[#allocation8 + $0x8] sm:$0xf]
        %v480 = vld [vmem:[#allocation8 + $0xc] sm:$0xf]
        %v481 = vld [vmem:[#allocation10] sm:$0x1]
        %v483 = vlaneseq
        %v484 = vshrl.u32 %v483, 7
        %v485 = vsub.s32 0, %v484
        %v486 = vrot.slane %v481, %v485
        %v492 = vunpack.c.l.b16 %v477
        %v493 = vunpack.c.l.b16 %v478
        %v494 = vunpack.c.l.b16 %v479
        %v495 = vunpack.c.l.b16 %v480
        %v496 = vpack.c.b16 %v493, %v492
        %v497 = vpack.c.b16 %v495, %v494
        %500 = vmatprep.subr.bf16.mxu0 0
        %501 = vmatpush1.bf16.msra.mxu0 %v496
        %502 = vmatprep.subr.bf16.mxu0 0
        %503 = vmatpush1.bf16.msra.mxu0 %v497
        %504 = vmatprep.subr.bf16.mxu0 0
        %505 = vmatpush1.bf16.msra.mxu0 0
        %506 = vmatprep.subr.bf16.mxu0 0
        %507 = vmatpush1.bf16.msra.mxu0 0
        %508 = vmatprep.subr.bf16.mxu0 0
        %509 = vmatpush1.bf16.msra.mxu0 0
        %510 = vmatprep.subr.bf16.mxu0 0
        %511 = vmatpush1.bf16.msra.mxu0 0
        %512 = vmatprep.subr.bf16.mxu0 0
        %513 = vmatpush1.bf16.msra.mxu0 0
        %514 = vmatprep.subr.bf16.mxu0 0
        %515 = vmatpush1.bf16.msra.mxu0 0
        %516 = vmatprep.subr.bf16.mxu0 0
        %517 = vmatpush1.bf16.msra.mxu0 0
        %518 = vmatprep.subr.bf16.mxu0 0
        %519 = vmatpush1.bf16.msra.mxu0 0
        %520 = vmatprep.subr.bf16.mxu0 0
        %521 = vmatpush1.bf16.msra.mxu0 0
        %522 = vmatprep.subr.bf16.mxu0 0
        %523 = vmatpush1.bf16.msra.mxu0 0
        %524 = vmatprep.subr.bf16.mxu0 0
        %525 = vmatpush1.bf16.msra.mxu0 0
        %526 = vmatprep.subr.bf16.mxu0 0
        %527 = vmatpush1.bf16.msra.mxu0 0
        %528 = vmatprep.subr.bf16.mxu0 0
        %529 = vmatpush1.bf16.msra.mxu0 0
        %530 = vmatprep.subr.bf16.mxu0 0
        %531 = vmatpush1.bf16.msra.mxu0 0
        %532 = vmatprep.mubr.bf16.mxu0 0
        %533 = vmatmul.mubr.bf16.gmra.mrb[0].mxu0 %v392
        %v534 = vpop.f32.mrb[0].mxu0
        %v535 = vadd.f32 %v486, %v534
        %v536 = vpop.f32.mrb[0].mxu0
        %v537 = vpop.f32.mrb[0].mxu0
        %v538 = vadd.f32 %v486, %v537
        %v539 = vpop.f32.mrb[0].mxu0
        %540 = vmatprep.mubr.bf16.mxu0 0
        %541 = vmatmul.mubr.bf16.gmra.mrb[0].mxu0 %v395
        %v542 = vpop.f32.mrb[0].mxu0
        %v543 = vadd.f32 %v486, %v542
        %v544 = vpop.f32.mrb[0].mxu0
        %v545 = vpop.f32.mrb[0].mxu0
        %v546 = vadd.f32 %v486, %v545
        %v547 = vpop.f32.mrb[0].mxu0
        %548 = vmatprep.mubr.bf16.mxu0 0
        %549 = vmatmul.mubr.bf16.gmra.mrb[0].mxu0 %v398
        %v550 = vpop.f32.mrb[0].mxu0
        %v551 = vadd.f32 %v486, %v550
        %v552 = vpop.f32.mrb[0].mxu0
        %v553 = vpop.f32.mrb[0].mxu0
        %v554 = vadd.f32 %v486, %v553
        %v555 = vpop.f32.mrb[0].mxu0
        %556 = vmatprep.mubr.bf16.mxu0 0
        %557 = vmatmul.mubr.bf16.gmra.mrb[0].mxu0 %v401
        %v558 = vpop.f32.mrb[0].mxu0
        %v559 = vadd.f32 %v486, %v558
        %v560 = vpop.f32.mrb[0].mxu0
        %v561 = vpop.f32.mrb[0].mxu0
        %v562 = vadd.f32 %v486, %v561
        %v563 = vpop.f32.mrb[0].mxu0
        %564 = vdwg.mxu0
        %565 = vst.msk [vmem:[%s334] sm:$0xff] %vm468, %v535
        %566 = vst.msk [vmem:[%s334 + $0x8] sm:$0xff] %vm468, %v538
        %567 = vst.msk [vmem:[%s334 + $0x10] sm:$0xff] %vm468, %v543
        %568 = vst.msk [vmem:[%s334 + $0x18] sm:$0xff] %vm468, %v546
        %569 = vst.msk [vmem:[%s334 + $0x20] sm:$0xff] %vm468, %v551
        %570 = vst.msk [vmem:[%s334 + $0x28] sm:$0xff] %vm468, %v554
        %571 = vst.msk [vmem:[%s334 + $0x30] sm:$0xff] %vm468, %v559
        %572 = vst.msk [vmem:[%s334 + $0x38] sm:$0xff] %vm468, %v562
        %s573 = sand.u32 %s147, 1
        %s574 = scalar_lea.sflag [#allocation4], %s573
        %s575 = sand.u32 %s147, 1
        %s576 = smul.addr %s575, 64
        %s577 = scalar_lea.vmem [#allocation11], %s576
        %s578 = sand.u32 %s173, 1
        %s579 = scalar_lea.sflag [#allocation13], %s578
        %s580 = sand.u32 %s173, 1
        %s581 = smul.addr %s580, 64
        %s582 = scalar_lea.vmem [#allocation12], %s581
        // Predicated region
        $region61: #{unconditional_cse_style_mapper_forward.6} parent=39 // pred_check
          %p583 = pneg %p157
        $region62: #{unconditional_cse_style_mapper_forward.6} parent=39 // pred_check_branch
          %585 = sbr.rel (%p583) target = $region64
        $region63: #{unconditional_cse_style_mapper_forward.6} parent=39 // pred_region
          %s586 = smul.u32 8, %s29
          %s588 = ssub.s32 1024, 1024
          %589 = vsyncadd %s574, %s588
          %s590 = smul.addr %s586, 128
          %s591 = scalar_lea.hbm %s5, %s590
          %s592 = sshll.u32 %s577, 4
          %s593 = int_to_ptr.vmem [resolvable:$true] %s592
          %598 = dma.vmem_to_hbm [thread:$0]  %s593, 1024, %s591, %s574, 128, 128, 8
        $region64: #{unconditional_cse_style_mapper_forward.6} parent=39 // pred_fallthru
          _
        // Predicated region
        $region65: #{unconditional_cse_style_mapper_forward.6} parent=39 // pred_check
          %p599 = pneg %p183
        $region66: #{unconditional_cse_style_mapper_forward.6} parent=39 // pred_check_branch
          %601 = sbr.rel (%p599) target = $region68
        $region67: #{unconditional_cse_style_mapper_forward.6} parent=39 // pred_region
          %s602 = smul.u32 8, %s29
          %s604 = ssub.s32 1024, 1024
          %605 = vsyncadd %s579, %s604
          %s606 = smul.addr %s602, 128
          %s607 = scalar_lea.hbm %s6, %s606
          %s608 = sshll.u32 %s582, 4
          %s609 = int_to_ptr.vmem [resolvable:$true] %s608
          %614 = dma.vmem_to_hbm [thread:$0]  %s609, 1024, %s607, %s579, 128, 128, 8
        $region68: #{unconditional_cse_style_mapper_forward.6} parent=39 // pred_fallthru
          _
      $region40: #{unconditional_cse_style_mapper_forward.6} parent=5 // pred_fallthru
        _
      %p615 = scmp.le.s32.totalorder 2, %s24
      // Predicated region
      $region69: #{unconditional_cse_style_mapper_forward.6} parent=5 // pred_check
        %p616 = pneg %p615
      $region70: #{unconditional_cse_style_mapper_forward.6} parent=5 // pred_check_branch
        %618 = sbr.rel (%p616) target = $region72
      $region71: #{unconditional_cse_style_mapper_forward.6} parent=5 // pred_region
        %s619 = ssub.s32 %s24, 2
        // Predicated region
        $region73: #{unconditional_cse_style_mapper_forward.6} parent=71 // pred_check
          %p620 = pneg %p163
        $region74: #{unconditional_cse_style_mapper_forward.6} parent=71 // pred_check_branch
          %622 = sbr.rel (%p620) target = $region76
        $region75: #{unconditional_cse_style_mapper_forward.6} parent=71 // pred_region
          %s623 = sand.u32 %s148, 1
          %s624 = scalar_lea.sflag [#allocation4], %s623
          %s625 = sand.u32 %s148, 1
          %s626 = smul.addr %s625, 64
          %s627 = scalar_lea.vmem [#allocation11], %s626
          %628 = dma.done %s624, 1024
        $region76: #{unconditional_cse_style_mapper_forward.6} parent=71 // pred_fallthru
          _
        // Predicated region
        $region77: #{unconditional_cse_style_mapper_forward.6} parent=71 // pred_check
          %p629 = pneg %p189
        $region78: #{unconditional_cse_style_mapper_forward.6} parent=71 // pred_check_branch
          %631 = sbr.rel (%p629) target = $region80
        $region79: #{unconditional_cse_style_mapper_forward.6} parent=71 // pred_region
          %s632 = sand.u32 %s174, 1
          %s633 = scalar_lea.sflag [#allocation13], %s632
          %s634 = sand.u32 %s174, 1
          %s635 = smul.addr %s634, 64
          %s636 = scalar_lea.vmem [#allocation12], %s635
          %637 = dma.done %s633, 1024
        $region80: #{unconditional_cse_style_mapper_forward.6} parent=71 // pred_fallthru
          _
      $region72: #{unconditional_cse_style_mapper_forward.6} parent=5 // pred_fallthru
        _
    $region6: #{unconditional_cse_style_mapper_forward.6} parent=1 // loop_footer
      %s28 = sadd.s32 1, %s24
    $region7: #{unconditional_cse_style_mapper_forward.6} parent=1 // loop_footer_branch
      %23 = sbr.rel target = $region3
    $region8: #{unconditional_cse_style_mapper_forward.6} parent=1 // loop_exit
      _
    %638 = vsyncpa [#allocation3], 1
    %s639 = scalar_lea.sflag [#allocation3], 1
    %640 = vsyncpa %s639, 1
    %641 = vsyncpa [#allocation6], 1
    %642 = vsyncpa [#allocation9], 1
    %643 = vsyncpa [#allocation4], 1
    %s644 = scalar_lea.sflag [#allocation4], 1
    %645 = vsyncpa %s644, 1
    %646 = vsyncpa [#allocation13], 1
    %s647 = scalar_lea.sflag [#allocation13], 1
    %648 = vsyncpa %s647, 1

</llo_original>
